<compile_context>
chip_gen: v6e
topology: v6e:2x2x1
jax: 0.10.0
libtpu: 0.0.40
codegen_flags: <defaults>
</compile_context>

<pallas_src>
import math

import jax
import jax.numpy as jnp
from jax import lax
from jax.experimental import pallas as pl
from jax.experimental.pallas import tpu as pltpu

SOFTMAX_TEMP = 0.1        # self.softmax_temp in the PyTorch module (no trainable params)
TILE_K_TARGET = 4096      # max lane-tile width; 2 streams x 2 buffers x B x 4096 x 4B
                          # stays far below every generation's scoped-VMEM default
                          # (16 MiB v5e / 32 MiB v6e / 32 MiB v7x) for loss-sized batches.

# Entropic-GW solver constants (fixed iteration counts -> static in-kernel loops)
GW_EPSILON = 0.02
GW_OUTER_ITERS = 20
GW_SINKHORN_ITERS = 50

# K-axis is a reduction into a resident accumulator -> "arbitrary".
_CPARAMS = pltpu.CompilerParams(dimension_semantics=("arbitrary",))


def _round_up(n, m):
    return ((n + m - 1) // m) * m


def _pick_tile(f, target_lanes=TILE_K_TARGET):
    """Largest lane-aligned tile (<= target) that divides the 128-padded feature length.

    Choosing a divisor of round_up(f, 128) means _pad_cols only ever pads to lane
    alignment (< 128 zero columns), never to a full extra tile -> no large jnp.pad
    HBM copies, while tiles stay big enough to amortize per-grid-step overhead.
    """
    f128 = _round_up(f, 128)
    if f128 <= target_lanes:
        return f128
    n = f128 // 128
    best = 1
    d = 1
    while d * d <= n:
        if n % d == 0:
            for cand in (d, n // d):
                if cand * 128 <= target_lanes and cand > best:
                    best = cand
        d += 1
    return best * 128


def _pad_cols(x2d, tk):
    """Zero-pad the feature axis to a multiple of `tk`.

    Zero feature-columns are exact no-ops for cdist (they add 0 to norms and dot
    products) and contribute exactly 0 to the JS sum (both inputs get the same
    uniform batch-softmax column), so padding keeps semantics while allowing
    lane-aligned tiles.
    """
    b, f = x2d.shape
    fp = _round_up(f, tk)
    if fp != f:
        x2d = jnp.pad(x2d, ((0, 0), (0, fp - f)))
    return x2d


def _cdist_from_gram(gram):
    """Turn an accumulated Gram matrix into torch.cdist distances (epilogue, O(B^2))."""
    b = gram.shape[0]
    ii = lax.broadcasted_iota(jnp.int32, (b, b), 0)
    jj = lax.broadcasted_iota(jnp.int32, (b, b), 1)
    # ||x_i||^2 is the Gram diagonal; recovered once in the epilogue so the per-tile
    # loop is a single MXU accumulate.
    diag = jnp.where(ii == jj, gram, 0.0)
    sq_row = jnp.sum(diag, axis=1, keepdims=True)   # [B, 1]
    sq_col = jnp.sum(diag, axis=0, keepdims=True)   # [1, B]
    d = jnp.sqrt(jnp.maximum(sq_row + sq_col - 2.0 * gram, 0.0))
    # torch.cdist has an exactly-zero diagonal
    return jnp.where(ii == jj, 0.0, d)


# ----------------------------------------------------------------------------
# Kernel 1: pairwise cdist of lr, K-tiled Gram accumulation
# ----------------------------------------------------------------------------
def _cdist_kernel(x_ref, d_ref, gram_ref):
    """Pairwise Euclidean distances of rows of x, streaming [B, TK] feature tiles."""
    k = pl.program_id(0)

    @pl.when(k == 0)
    def _init():
        gram_ref[...] = jnp.zeros_like(gram_ref)

    # Kept f32 (not bf16): the Gram-decomposition cdist already loses precision for
    # near-identical rows vs torch.cdist's explicit differences; bf16 inputs would
    # amplify that.
    x = x_ref[...].astype(jnp.float32)                               # [B, TK]
    gram_ref[...] += lax.dot_general(
        x, x, (((1,), (1,)), ((), ())), preferred_element_type=jnp.float32)

    @pl.when(k == pl.num_programs(0) - 1)
    def _finalize():
        d_ref[...] = _cdist_from_gram(gram_ref[...])


def pairwise_cdist(x2d, target_tk=TILE_K_TARGET):
    b, f = x2d.shape
    tk = _pick_tile(f, target_tk)
    x2d = _pad_cols(x2d, tk)
    kt = x2d.shape[1] // tk
    return pl.pallas_call(
        _cdist_kernel,
        grid=(kt,),
        in_specs=[pl.BlockSpec((b, tk), lambda k: (0, k))],
        out_specs=pl.BlockSpec((b, b), lambda k: (0, 0)),
        out_shape=jax.ShapeDtypeStruct((b, b), jnp.float32),
        scratch_shapes=[pltpu.VMEM((b, b), jnp.float32)],
        compiler_params=_CPARAMS,
    )(x2d)


# ----------------------------------------------------------------------------
# Kernel 2: fused single pass over sr/hr -> cdist(sr) Gram + JS(sr, hr) partial sums
# ----------------------------------------------------------------------------
def _sr_fused_kernel(sr_ref, hr_ref, d_ref, js_ref, gram_ref, js_acc_ref):
    k = pl.program_id(0)

    @pl.when(k == 0)
    def _init():
        gram_ref[...] = jnp.zeros_like(gram_ref)
        js_acc_ref[...] = jnp.zeros_like(js_acc_ref)

    s = sr_ref[...].astype(jnp.float32)                              # [B, TK]
    h = hr_ref[...].astype(jnp.float32)                              # [B, TK]

    # --- cdist(sr): Gram accumulation on the MXU -----------------------------
    gram_ref[...] += lax.dot_general(
        s, s, (((1,), (1,)), ((), ())), preferred_element_type=jnp.float32)

    # --- JS(sr, hr): softmax over the batch axis (axis 0) is column-local, so
    #     every [B, TK] feature tile contributes an exact partial sum.
    def _stats(x):
        m = jnp.max(x, axis=0, keepdims=True)
        z = x - m
        e = jnp.exp(z)
        ssum = jnp.sum(e, axis=0, keepdims=True)
        lp = z - jnp.log(ssum)                       # log_softmax(x, dim=0)
        p = e / ssum                                 # softmax(x, dim=0)
        return lp, p

    lpa, pa = _stats(s)
    lpb, pb = _stats(h)
    mix = 0.5 * (pa + pb)
    logm = jnp.log(mix)
    kl = mix * (2.0 * logm - lpa - lpb)              # kl(m||pa) + kl(m||pb), fused
    tot = jnp.sum(kl, axis=1, keepdims=True)         # [B, 1]
    js_acc_ref[...] += jnp.sum(tot, axis=0, keepdims=True)           # [1, 1]

    @pl.when(k == pl.num_programs(0) - 1)
    def _finalize():
        d_ref[...] = _cdist_from_gram(gram_ref[...])
        bsz = gram_ref.shape[0]
        # F.kl_div(..., reduction='batchmean') divides by batch size; js = 0.5*(kl1+kl2)
        js_ref[...] = 0.5 * js_acc_ref[...] * jnp.float32(1.0 / bsz)


def sr_cdist_and_js(sr2d, hr2d, target_tk=TILE_K_TARGET):
    b, f = sr2d.shape
    tk = _pick_tile(f, target_tk)
    sr2d = _pad_cols(sr2d, tk)
    hr2d = _pad_cols(hr2d, tk)
    kt = sr2d.shape[1] // tk
    d, js = pl.pallas_call(
        _sr_fused_kernel,
        grid=(kt,),
        in_specs=[pl.BlockSpec((b, tk), lambda k: (0, k)),
                  pl.BlockSpec((b, tk), lambda k: (0, k))],
        out_specs=(pl.BlockSpec((b, b), lambda k: (0, 0)),
                   pl.BlockSpec((1, 1), lambda k: (0, 0))),
        out_shape=(jax.ShapeDtypeStruct((b, b), jnp.float32),
                   jax.ShapeDtypeStruct((1, 1), jnp.float32)),
        scratch_shapes=[pltpu.VMEM((b, b), jnp.float32),
                        pltpu.VMEM((1, 1), jnp.float32)],
        compiler_params=_CPARAMS,
    )(sr2d, hr2d)
    return d, js


# ----------------------------------------------------------------------------
# Kernel 3: entropic Gromov-Wasserstein solve + BCE(adv) + softmax-weighted combine
# ----------------------------------------------------------------------------
# TODO(synk): ot.gromov.gromov_wasserstein uses a conditional-gradient solver with an
# exact network-simplex EMD inner step; that LP has no Pallas equivalent, so a
# fixed-iteration entropic (log-domain Sinkhorn) GW approximation is used instead.
def _gw_entropic(c1, c2):
    """Entropic GW distance (square_loss, uniform marginals) of two [B,B] matrices."""
    b = c1.shape[0]

    def _max_all(x):
        return jnp.max(jnp.max(x, axis=1, keepdims=True), axis=0, keepdims=True)

    # c /= c.max(); tiny guard for the degenerate all-identical-rows batch
    c1 = c1 / jnp.maximum(_max_all(c1), 1e-30)
    c2 = c2 / jnp.maximum(_max_all(c2), 1e-30)

    inv_b = 1.0 / b
    log_unif = -math.log(b)            # log p_i = log q_j = -log(B) (uniform marginals)
    inv_eps = 1.0 / GW_EPSILON

    # square_loss decomposition (f1(a)=a^2, f2(b)=b^2, h1(a)=a, h2(b)=2b); C2 is a
    # symmetric distance matrix, so its column sums equal its row sums and h2(C2)^T == h2(C2).
    const_c = (inv_b * jnp.sum(c1 * c1, axis=1, keepdims=True)          # [B, 1]
               + inv_b * jnp.sum(c2 * c2, axis=0, keepdims=True))       # [1, B] -> [B, B]
    h_c1 = c1
    h_c2 = 2.0 * c2

    def _mm(a, bmat):
        return lax.dot_general(a, bmat, (((1,), (0,)), ((), ())),
                               preferred_element_type=jnp.float32)

    def _tens(t):
        return const_c - _mm(_mm(h_c1, t), h_c2)

    def _lse_rows(x):      # logsumexp over axis=1 -> [B, 1]
        m = jnp.max(x, axis=1, keepdims=True)
        return m + jnp.log(jnp.sum(jnp.exp(x - m), axis=1, keepdims=True))

    def _lse_cols(x):      # logsumexp over axis=0 -> [1, B]
        m = jnp.max(x, axis=0, keepdims=True)
        return m + jnp.log(jnp.sum(jnp.exp(x - m), axis=0, keepdims=True))

    def _sinkhorn_log(cost):
        # Work with eps-scaled potentials (f~ = f/eps, g~ = g/eps) and eps-scaled
        # cost: mathematically identical updates, two fewer multiplies on the
        # fully-sequential (latency-bound) dependency chain per iteration.
        cost_s = cost * inv_eps

        def body(_, fg):
            f, g = fg
            f = log_unif - _lse_rows(g - cost_s)
            g = log_unif - _lse_cols(f - cost_s)
            return (f, g)

        f0 = jnp.zeros((b, 1), jnp.float32)
        g0 = jnp.zeros((1, b), jnp.float32)
        f, g = lax.fori_loop(0, GW_SINKHORN_ITERS, body, (f0, g0))
        return jnp.exp(f + g - cost_s)

    t0 = jnp.full((b, b), inv_b * inv_b, jnp.float32)
    t = lax.fori_loop(0, GW_OUTER_ITERS, lambda _, t: _sinkhorn_log(_tens(t)), t0)
    tens = _tens(t)
    return jnp.sum(jnp.sum(tens * t, axis=1, keepdims=True), axis=0, keepdims=True)


def _gw_combine_kernel(c1_ref, c2_ref, js_ref, disc_ref, out_ref):
    c1 = c1_ref[...].astype(jnp.float32)
    c2 = c2_ref[...].astype(jnp.float32)
    gw = _gw_entropic(c1, c2)                                        # [1, 1]
    js = js_ref[...]                                                 # [1, 1]

    # BCEWithLogitsLoss(disc_fake, ones) == mean(softplus(-x)), numerically stable form.
    x = disc_ref[...].astype(jnp.float32)                            # [B, D]
    sp = jnp.maximum(-x, 0.0) + jnp.log(1.0 + jnp.exp(-jnp.abs(x)))
    adv = (jnp.sum(jnp.sum(sp, axis=1, keepdims=True), axis=0, keepdims=True)
           * jnp.float32(1.0 / (x.shape[0] * x.shape[1])))           # [1, 1]

    # loss = sum(softmax([gw, js, adv] / T) * [gw, js, adv])
    inv_t = jnp.float32(1.0 / SOFTMAX_TEMP)
    sg, sj, sa = gw * inv_t, js * inv_t, adv * inv_t
    m = jnp.maximum(jnp.maximum(sg, sj), sa)
    eg, ej, ea = jnp.exp(sg - m), jnp.exp(sj - m), jnp.exp(sa - m)
    out_ref[...] = (gw * eg + js * ej + adv * ea) / (eg + ej + ea)


def gw_and_combine(c1, c2, js, disc2d):
    b = c1.shape[0]
    dcols = disc2d.shape[1]
    out = pl.pallas_call(
        _gw_combine_kernel,
        grid=(1,),
        in_specs=[pl.BlockSpec((b, b), lambda i: (0, 0)),
                  pl.BlockSpec((b, b), lambda i: (0, 0)),
                  pl.BlockSpec((1, 1), lambda i: (0, 0)),
                  pl.BlockSpec((b, dcols), lambda i: (0, 0))],
        out_specs=pl.BlockSpec((1, 1), lambda i: (0, 0)),
        out_shape=jax.ShapeDtypeStruct((1, 1), jnp.float32),
        compiler_params=_CPARAMS,
    )(c1, c2, js, disc2d)
    return out[0, 0]


# ----------------------------------------------------------------------------
# dwloss.forward
# ----------------------------------------------------------------------------
@jax.jit
def dwloss_forward(lr, sr, hr, disc_fake):
    b = sr.shape[0]
    lr2d = lr.reshape(b, -1).astype(jnp.float32)
    sr2d = sr.reshape(b, -1).astype(jnp.float32)
    hr2d = hr.reshape(b, -1).astype(jnp.float32)
    df2d = disc_fake.reshape(b, -1).astype(jnp.float32)

    c1 = pairwise_cdist(lr2d)                 # K1: K-tiled Gram -> cdist(lr)
    c2, js = sr_cdist_and_js(sr2d, hr2d)      # K2: one streamed pass over sr/hr
    return gw_and_combine(c1, c2, js, df2d)   # K3: GW solve + BCE + weighted combine


if __name__ == "__main__":
    key = jax.random.PRNGKey(0)
    k1, k2, k3, k4 = jax.random.split(key, 4)
    B = 4
    lr = jax.random.normal(k1, (B, 3, 16, 16), jnp.float32)        # low-res batch
    sr = jax.random.normal(k2, (B, 3, 32, 32), jnp.float32)        # super-resolved
    hr = jax.random.normal(k3, (B, 3, 32, 32), jnp.float32)        # high-res target
    disc_fake = jax.random.normal(k4, (B, 1), jnp.float32)         # discriminator logits

    loss = dwloss_forward(lr, sr, hr, disc_fake)
    jax.block_until_ready(loss)
    assert loss.shape == () and jnp.isfinite(loss)
    print("KERNEL_OK")
</pallas_src>

<mosaic_0001>
module attributes {stable_mosaic.version = 11 : i64} {
  func.func @_sr_fused_kernel(%arg0: i32, %arg1: memref<4x3072xf32, #tpu.memory_space<vmem>>, %arg2: memref<4x3072xf32, #tpu.memory_space<vmem>>, %arg3: memref<4x4xf32, #tpu.memory_space<vmem>>, %arg4: memref<1x1xf32, #tpu.memory_space<vmem>>, %arg5: memref<4x4xf32, #tpu.memory_space<vmem>>, %arg6: memref<1x1xf32, #tpu.memory_space<vmem>>) attributes {dimension_semantics = [#tpu.dimension_semantics<arbitrary>], iteration_bounds = array<i64: 1>, scalar_prefetch = 0 : i64, scratch_operands = 2 : i64, tpu.core_type = #tpu.core_type<tc>, window_params = [{transform_indices = @transform_0, window_bounds = array<i64: 4, 3072>}, {transform_indices = @transform_1, window_bounds = array<i64: 4, 3072>}, {pipeline_mode = #tpu.pipeline_mode<synchronous>, transform_indices = @transform_2, window_bounds = array<i64: 4, 4>}, {pipeline_mode = #tpu.pipeline_mode<synchronous>, transform_indices = @transform_3, window_bounds = array<i64: 1, 1>}]} {
    %c0_i32 = arith.constant 0 : i32
    %0 = arith.cmpi eq, %arg0, %c0_i32 : i32
    %1 = arith.extui %0 : i1 to i32
    %c0_i32_0 = arith.constant 0 : i32
    %2 = arith.cmpi ne, %1, %c0_i32_0 : i32
    scf.if %2 {
      %cst_22 = arith.constant 0.000000e+00 : f32
      %52 = vector.broadcast %cst_22 : f32 to vector<4x4xf32>
      %c0_23 = arith.constant 0 : index
      %c0_24 = arith.constant 0 : index
      %53 = vector.load %arg5[%c0_23, %c0_24] : memref<4x4xf32, #tpu.memory_space<vmem>>, vector<4x4xf32>
      tpu.vector_store %arg5[%c0_23, %c0_24], %52 {strides = array<i32>} : memref<4x4xf32, #tpu.memory_space<vmem>>, vector<4x4xf32>,
      %cst_25 = arith.constant 0.000000e+00 : f32
      %54 = vector.broadcast %cst_25 : f32 to vector<1x1xf32>
      %c0_26 = arith.constant 0 : index
      %c0_27 = arith.constant 0 : index
      %55 = vector.load %arg6[%c0_26, %c0_27] : memref<1x1xf32, #tpu.memory_space<vmem>>, vector<1x1xf32>
      tpu.vector_store %arg6[%c0_26, %c0_27], %54 {strides = array<i32>} : memref<1x1xf32, #tpu.memory_space<vmem>>, vector<1x1xf32>,
    } else {
    }
    %c0 = arith.constant 0 : index
    %c0_1 = arith.constant 0 : index
    %3 = vector.load %arg1[%c0, %c0_1] : memref<4x3072xf32, #tpu.memory_space<vmem>>, vector<4x3072xf32>
    %c0_2 = arith.constant 0 : index
    %c0_3 = arith.constant 0 : index
    %4 = vector.load %arg2[%c0_2, %c0_3] : memref<4x3072xf32, #tpu.memory_space<vmem>>, vector<4x3072xf32>
    %c0_4 = arith.constant 0 : index
    %c0_5 = arith.constant 0 : index
    %5 = vector.load %arg5[%c0_4, %c0_5] : memref<4x4xf32, #tpu.memory_space<vmem>>, vector<4x4xf32>
    %cst = arith.constant dense<0.000000e+00> : vector<4x4xf32>
    %6 = tpu.matmul %3, %3, %cst {dimension_numbers = #tpu.dot_dimension_numbers<[1], [1], [0], [0], [0, 0, 1, 0], [], []>} : vector<4x3072xf32>, vector<4x3072xf32>, vector<4x4xf32> -> vector<4x4xf32>
    %7 = arith.addf %5, %6 : vector<4x4xf32>
    %c0_6 = arith.constant 0 : index
    %c0_7 = arith.constant 0 : index
    %8 = vector.load %arg5[%c0_6, %c0_7] : memref<4x4xf32, #tpu.memory_space<vmem>>, vector<4x4xf32>
    tpu.vector_store %arg5[%c0_6, %c0_7], %7 {strides = array<i32>} : memref<4x4xf32, #tpu.memory_space<vmem>>, vector<4x4xf32>,
    %cst_8 = arith.constant dense<0xFF800000> : vector<3072xf32>
    %9 = vector.multi_reduction <maximumf>, %3, %cst_8 [0] : vector<4x3072xf32> to vector<3072xf32>
    %10 = vector.shape_cast %9 : vector<3072xf32> to vector<1x3072xf32>
    %11 = vector.broadcast %10 : vector<1x3072xf32> to vector<4x3072xf32>
    %12 = arith.subf %3, %11 : vector<4x3072xf32>
    %13 = math.exp %12 : vector<4x3072xf32>
    %cst_9 = arith.constant dense<0.000000e+00> : vector<3072xf32>
    %14 = vector.multi_reduction <add>, %13, %cst_9 [0] : vector<4x3072xf32> to vector<3072xf32>
    %15 = vector.shape_cast %14 : vector<3072xf32> to vector<1x3072xf32>
    %16 = math.log %15 : vector<1x3072xf32>
    %17 = vector.broadcast %16 : vector<1x3072xf32> to vector<4x3072xf32>
    %18 = arith.subf %12, %17 : vector<4x3072xf32>
    %19 = vector.broadcast %15 : vector<1x3072xf32> to vector<4x3072xf32>
    %20 = arith.divf %13, %19 : vector<4x3072xf32>
    %cst_10 = arith.constant dense<0xFF800000> : vector<3072xf32>
    %21 = vector.multi_reduction <maximumf>, %4, %cst_10 [0] : vector<4x3072xf32> to vector<3072xf32>
    %22 = vector.shape_cast %21 : vector<3072xf32> to vector<1x3072xf32>
    %23 = vector.broadcast %22 : vector<1x3072xf32> to vector<4x3072xf32>
    %24 = arith.subf %4, %23 : vector<4x3072xf32>
    %25 = math.exp %24 : vector<4x3072xf32>
    %cst_11 = arith.constant dense<0.000000e+00> : vector<3072xf32>
    %26 = vector.multi_reduction <add>, %25, %cst_11 [0] : vector<4x3072xf32> to vector<3072xf32>
    %27 = vector.shape_cast %26 : vector<3072xf32> to vector<1x3072xf32>
    %28 = math.log %27 : vector<1x3072xf32>
    %29 = vector.broadcast %28 : vector<1x3072xf32> to vector<4x3072xf32>
    %30 = arith.subf %24, %29 : vector<4x3072xf32>
    %31 = vector.broadcast %27 : vector<1x3072xf32> to vector<4x3072xf32>
    %32 = arith.divf %25, %31 : vector<4x3072xf32>
    %33 = arith.addf %20, %32 : vector<4x3072xf32>
    %cst_12 = arith.constant 5.000000e-01 : f32
    %34 = vector.broadcast %cst_12 : f32 to vector<4x3072xf32>
    %35 = arith.mulf %34, %33 : vector<4x3072xf32>
    %36 = math.log %35 : vector<4x3072xf32>
    %cst_13 = arith.constant 2.000000e+00 : f32
    %37 = vector.broadcast %cst_13 : f32 to vector<4x3072xf32>
    %38 = arith.mulf %37, %36 : vector<4x3072xf32>
    %39 = arith.subf %38, %18 : vector<4x3072xf32>
    %40 = arith.subf %39, %30 : vector<4x3072xf32>
    %41 = arith.mulf %35, %40 : vector<4x3072xf32>
    %cst_14 = arith.constant dense<0.000000e+00> : vector<4xf32>
    %42 = vector.multi_reduction <add>, %41, %cst_14 [1] : vector<4x3072xf32> to vector<4xf32>
    %43 = vector.shape_cast %42 : vector<4xf32> to vector<4x1xf32>
    %c0_15 = arith.constant 0 : index
    %c0_16 = arith.constant 0 : index
    %44 = vector.load %arg6[%c0_15, %c0_16] : memref<1x1xf32, #tpu.memory_space<vmem>>, vector<1x1xf32>
    %cst_17 = arith.constant dense<0.000000e+00> : vector<1xf32>
    %45 = vector.multi_reduction <add>, %43, %cst_17 [0] : vector<4x1xf32> to vector<1xf32>
    %46 = vector.shape_cast %45 : vector<1xf32> to vector<1x1xf32>
    %47 = arith.addf %44, %46 : vector<1x1xf32>
    %c0_18 = arith.constant 0 : index
    %c0_19 = arith.constant 0 : index
    %48 = vector.load %arg6[%c0_18, %c0_19] : memref<1x1xf32, #tpu.memory_space<vmem>>, vector<1x1xf32>
    tpu.vector_store %arg6[%c0_18, %c0_19], %47 {strides = array<i32>} : memref<1x1xf32, #tpu.memory_space<vmem>>, vector<1x1xf32>,
    %c0_i32_20 = arith.constant 0 : i32
    %49 = arith.cmpi eq, %arg0, %c0_i32_20 : i32
    %50 = arith.extui %49 : i1 to i32
    %c0_i32_21 = arith.constant 0 : i32
    %51 = arith.cmpi ne, %50, %c0_i32_21 : i32
    scf.if %51 {
      %c0_22 = arith.constant 0 : index
      %c0_23 = arith.constant 0 : index
      %52 = vector.load %arg5[%c0_22, %c0_23] : memref<4x4xf32, #tpu.memory_space<vmem>>, vector<4x4xf32>
      %53 = tpu.iota {dimensions = array<i32: 0>} : vector<4x4xi32>
      %54 = tpu.iota {dimensions = array<i32: 1>} : vector<4x4xi32>
      %55 = arith.cmpi eq, %53, %54 : vector<4x4xi32>
      %cst_24 = arith.constant 0.000000e+00 : f32
      %56 = vector.broadcast %cst_24 : f32 to vector<4x4xf32>
      %57 = arith.select %55, %52, %56 : vector<4x4xi1>, vector<4x4xf32>
      %cst_25 = arith.constant dense<0.000000e+00> : vector<4xf32>
      %58 = vector.multi_reduction <add>, %57, %cst_25 [1] : vector<4x4xf32> to vector<4xf32>
      %59 = vector.shape_cast %58 : vector<4xf32> to vector<4x1xf32>
      %cst_26 = arith.constant dense<0.000000e+00> : vector<4xf32>
      %60 = vector.multi_reduction <add>, %57, %cst_26 [0] : vector<4x4xf32> to vector<4xf32>
      %61 = vector.shape_cast %60 : vector<4xf32> to vector<1x4xf32>
      %62 = vector.broadcast %59 : vector<4x1xf32> to vector<4x4xf32>
      %63 = vector.broadcast %61 : vector<1x4xf32> to vector<4x4xf32>
      %64 = arith.addf %62, %63 : vector<4x4xf32>
      %cst_27 = arith.constant 2.000000e+00 : f32
      %65 = vector.broadcast %cst_27 : f32 to vector<4x4xf32>
      %66 = arith.mulf %65, %52 : vector<4x4xf32>
      %67 = arith.subf %64, %66 : vector<4x4xf32>
      %cst_28 = arith.constant 0.000000e+00 : f32
      %68 = vector.broadcast %cst_28 : f32 to vector<4x4xf32>
      %69 = arith.maximumf %67, %68 : vector<4x4xf32>
      %70 = math.sqrt %69 : vector<4x4xf32>
      %71 = arith.cmpi eq, %53, %54 : vector<4x4xi32>
      %cst_29 = arith.constant 0.000000e+00 : f32
      %72 = vector.broadcast %cst_29 : f32 to vector<4x4xf32>
      %73 = arith.select %71, %72, %70 : vector<4x4xi1>, vector<4x4xf32>
      %c0_30 = arith.constant 0 : index
      %c0_31 = arith.constant 0 : index
      %74 = vector.load %arg3[%c0_30, %c0_31] : memref<4x4xf32, #tpu.memory_space<vmem>>, vector<4x4xf32>
      tpu.vector_store %arg3[%c0_30, %c0_31], %73 {strides = array<i32>} : memref<4x4xf32, #tpu.memory_space<vmem>>, vector<4x4xf32>,
      %c0_32 = arith.constant 0 : index
      %c0_33 = arith.constant 0 : index
      %75 = vector.load %arg6[%c0_32, %c0_33] : memref<1x1xf32, #tpu.memory_space<vmem>>, vector<1x1xf32>
      %cst_34 = arith.constant 5.000000e-01 : f32
      %76 = vector.broadcast %cst_34 : f32 to vector<1x1xf32>
      %77 = arith.mulf %76, %75 : vector<1x1xf32>
      %cst_35 = arith.constant 2.500000e-01 : f32
      %78 = vector.broadcast %cst_35 : f32 to vector<1x1xf32>
      %79 = arith.mulf %77, %78 : vector<1x1xf32>
      %c0_36 = arith.constant 0 : index
      %c0_37 = arith.constant 0 : index
      %80 = vector.load %arg4[%c0_36, %c0_37] : memref<1x1xf32, #tpu.memory_space<vmem>>, vector<1x1xf32>
      tpu.vector_store %arg4[%c0_36, %c0_37], %79 {strides = array<i32>} : memref<1x1xf32, #tpu.memory_space<vmem>>, vector<1x1xf32>,
    } else {
    }
    return
  }
  func.func @transform_0(%arg0: i32) -> (i32, i32) {
    %c0_i32 = arith.constant 0 : i32
    %c0_i32_0 = arith.constant 0 : i32
    return %c0_i32, %arg0 : i32, i32
  }
  func.func @transform_1(%arg0: i32) -> (i32, i32) {
    %c0_i32 = arith.constant 0 : i32
    %c0_i32_0 = arith.constant 0 : i32
    return %c0_i32, %arg0 : i32, i32
  }
  func.func @transform_2(%arg0: i32) -> (i32, i32) {
    %c0_i32 = arith.constant 0 : i32
    %c0_i32_0 = arith.constant 0 : i32
    %c0_i32_1 = arith.constant 0 : i32
    return %c0_i32, %c0_i32_0 : i32, i32
  }
  func.func @transform_3(%arg0: i32) -> (i32, i32) {
    %c0_i32 = arith.constant 0 : i32
    %c0_i32_0 = arith.constant 0 : i32
    %c0_i32_1 = arith.constant 0 : i32
    return %c0_i32, %c0_i32_0 : i32, i32
  }
}

module attributes {stable_mosaic.version = 11 : i64} {
  func.func @_cdist_kernel(%arg0: i32, %arg1: memref<4x768xf32, #tpu.memory_space<vmem>>, %arg2: memref<4x4xf32, #tpu.memory_space<vmem>>, %arg3: memref<4x4xf32, #tpu.memory_space<vmem>>) attributes {dimension_semantics = [#tpu.dimension_semantics<arbitrary>], iteration_bounds = array<i64: 1>, scalar_prefetch = 0 : i64, scratch_operands = 1 : i64, tpu.core_type = #tpu.core_type<tc>, window_params = [{transform_indices = @transform_0, window_bounds = array<i64: 4, 768>}, {pipeline_mode = #tpu.pipeline_mode<synchronous>, transform_indices = @transform_1, window_bounds = array<i64: 4, 4>}]} {
    %c0_i32 = arith.constant 0 : i32
    %0 = arith.cmpi eq, %arg0, %c0_i32 : i32
    %1 = arith.extui %0 : i1 to i32
    %c0_i32_0 = arith.constant 0 : i32
    %2 = arith.cmpi ne, %1, %c0_i32_0 : i32
    scf.if %2 {
      %cst_8 = arith.constant 0.000000e+00 : f32
      %11 = vector.broadcast %cst_8 : f32 to vector<4x4xf32>
      %c0_9 = arith.constant 0 : index
      %c0_10 = arith.constant 0 : index
      %12 = vector.load %arg3[%c0_9, %c0_10] : memref<4x4xf32, #tpu.memory_space<vmem>>, vector<4x4xf32>
      tpu.vector_store %arg3[%c0_9, %c0_10], %11 {strides = array<i32>} : memref<4x4xf32, #tpu.memory_space<vmem>>, vector<4x4xf32>,
    } else {
    }
    %c0 = arith.constant 0 : index
    %c0_1 = arith.constant 0 : index
    %3 = vector.load %arg1[%c0, %c0_1] : memref<4x768xf32, #tpu.memory_space<vmem>>, vector<4x768xf32>
    %c0_2 = arith.constant 0 : index
    %c0_3 = arith.constant 0 : index
    %4 = vector.load %arg3[%c0_2, %c0_3] : memref<4x4xf32, #tpu.memory_space<vmem>>, vector<4x4xf32>
    %cst = arith.constant dense<0.000000e+00> : vector<4x4xf32>
    %5 = tpu.matmul %3, %3, %cst {dimension_numbers = #tpu.dot_dimension_numbers<[1], [1], [0], [0], [0, 0, 1, 0], [], []>} : vector<4x768xf32>, vector<4x768xf32>, vector<4x4xf32> -> vector<4x4xf32>
    %6 = arith.addf %4, %5 : vector<4x4xf32>
    %c0_4 = arith.constant 0 : index
    %c0_5 = arith.constant 0 : index
    %7 = vector.load %arg3[%c0_4, %c0_5] : memref<4x4xf32, #tpu.memory_space<vmem>>, vector<4x4xf32>
    tpu.vector_store %arg3[%c0_4, %c0_5], %6 {strides = array<i32>} : memref<4x4xf32, #tpu.memory_space<vmem>>, vector<4x4xf32>,
    %c0_i32_6 = arith.constant 0 : i32
    %8 = arith.cmpi eq, %arg0, %c0_i32_6 : i32
    %9 = arith.extui %8 : i1 to i32
    %c0_i32_7 = arith.constant 0 : i32
    %10 = arith.cmpi ne, %9, %c0_i32_7 : i32
    scf.if %10 {
      %c0_8 = arith.constant 0 : index
      %c0_9 = arith.constant 0 : index
      %11 = vector.load %arg3[%c0_8, %c0_9] : memref<4x4xf32, #tpu.memory_space<vmem>>, vector<4x4xf32>
      %12 = tpu.iota {dimensions = array<i32: 0>} : vector<4x4xi32>
      %13 = tpu.iota {dimensions = array<i32: 1>} : vector<4x4xi32>
      %14 = arith.cmpi eq, %12, %13 : vector<4x4xi32>
      %cst_10 = arith.constant 0.000000e+00 : f32
      %15 = vector.broadcast %cst_10 : f32 to vector<4x4xf32>
      %16 = arith.select %14, %11, %15 : vector<4x4xi1>, vector<4x4xf32>
      %cst_11 = arith.constant dense<0.000000e+00> : vector<4xf32>
      %17 = vector.multi_reduction <add>, %16, %cst_11 [1] : vector<4x4xf32> to vector<4xf32>
      %18 = vector.shape_cast %17 : vector<4xf32> to vector<4x1xf32>
      %cst_12 = arith.constant dense<0.000000e+00> : vector<4xf32>
      %19 = vector.multi_reduction <add>, %16, %cst_12 [0] : vector<4x4xf32> to vector<4xf32>
      %20 = vector.shape_cast %19 : vector<4xf32> to vector<1x4xf32>
      %21 = vector.broadcast %18 : vector<4x1xf32> to vector<4x4xf32>
      %22 = vector.broadcast %20 : vector<1x4xf32> to vector<4x4xf32>
      %23 = arith.addf %21, %22 : vector<4x4xf32>
      %cst_13 = arith.constant 2.000000e+00 : f32
      %24 = vector.broadcast %cst_13 : f32 to vector<4x4xf32>
      %25 = arith.mulf %24, %11 : vector<4x4xf32>
      %26 = arith.subf %23, %25 : vector<4x4xf32>
      %cst_14 = arith.constant 0.000000e+00 : f32
      %27 = vector.broadcast %cst_14 : f32 to vector<4x4xf32>
      %28 = arith.maximumf %26, %27 : vector<4x4xf32>
      %29 = math.sqrt %28 : vector<4x4xf32>
      %30 = arith.cmpi eq, %12, %13 : vector<4x4xi32>
      %cst_15 = arith.constant 0.000000e+00 : f32
      %31 = vector.broadcast %cst_15 : f32 to vector<4x4xf32>
      %32 = arith.select %30, %31, %29 : vector<4x4xi1>, vector<4x4xf32>
      %c0_16 = arith.constant 0 : index
      %c0_17 = arith.constant 0 : index
      %33 = vector.load %arg2[%c0_16, %c0_17] : memref<4x4xf32, #tpu.memory_space<vmem>>, vector<4x4xf32>
      tpu.vector_store %arg2[%c0_16, %c0_17], %32 {strides = array<i32>} : memref<4x4xf32, #tpu.memory_space<vmem>>, vector<4x4xf32>,
    } else {
    }
    return
  }
  func.func @transform_0(%arg0: i32) -> (i32, i32) {
    %c0_i32 = arith.constant 0 : i32
    %c0_i32_0 = arith.constant 0 : i32
    return %c0_i32, %arg0 : i32, i32
  }
  func.func @transform_1(%arg0: i32) -> (i32, i32) {
    %c0_i32 = arith.constant 0 : i32
    %c0_i32_0 = arith.constant 0 : i32
    %c0_i32_1 = arith.constant 0 : i32
    return %c0_i32, %c0_i32_0 : i32, i32
  }
}

module attributes {stable_mosaic.version = 11 : i64} {
  func.func @_gw_combine_kernel(%arg0: i32, %arg1: memref<4x4xf32, #tpu.memory_space<vmem>>, %arg2: memref<4x4xf32, #tpu.memory_space<vmem>>, %arg3: memref<1x1xf32, #tpu.memory_space<vmem>>, %arg4: memref<4x1xf32, #tpu.memory_space<vmem>>, %arg5: memref<1x1xf32, #tpu.memory_space<vmem>>) attributes {dimension_semantics = [#tpu.dimension_semantics<arbitrary>], iteration_bounds = array<i64: 1>, scalar_prefetch = 0 : i64, scratch_operands = 0 : i64, tpu.core_type = #tpu.core_type<tc>, window_params = [{pipeline_mode = #tpu.pipeline_mode<synchronous>, transform_indices = @transform_0, window_bounds = array<i64: 4, 4>}, {pipeline_mode = #tpu.pipeline_mode<synchronous>, transform_indices = @transform_1, window_bounds = array<i64: 4, 4>}, {pipeline_mode = #tpu.pipeline_mode<synchronous>, transform_indices = @transform_2, window_bounds = array<i64: 1, 1>}, {pipeline_mode = #tpu.pipeline_mode<synchronous>, transform_indices = @transform_3, window_bounds = array<i64: 4, 1>}, {pipeline_mode = #tpu.pipeline_mode<synchronous>, transform_indices = @transform_4, window_bounds = array<i64: 1, 1>}]} {
    %c0 = arith.constant 0 : index
    %c0_0 = arith.constant 0 : index
    %0 = vector.load %arg1[%c0, %c0_0] : memref<4x4xf32, #tpu.memory_space<vmem>>, vector<4x4xf32>
    %c0_1 = arith.constant 0 : index
    %c0_2 = arith.constant 0 : index
    %1 = vector.load %arg2[%c0_1, %c0_2] : memref<4x4xf32, #tpu.memory_space<vmem>>, vector<4x4xf32>
    %cst = arith.constant dense<0xFF800000> : vector<4xf32>
    %2 = vector.multi_reduction <maximumf>, %0, %cst [1] : vector<4x4xf32> to vector<4xf32>
    %3 = vector.shape_cast %2 : vector<4xf32> to vector<4x1xf32>
    %cst_3 = arith.constant dense<0xFF800000> : vector<1xf32>
    %4 = vector.multi_reduction <maximumf>, %3, %cst_3 [0] : vector<4x1xf32> to vector<1xf32>
    %5 = vector.shape_cast %4 : vector<1xf32> to vector<1x1xf32>
    %cst_4 = arith.constant 1.000000e-30 : f32
    %6 = vector.broadcast %cst_4 : f32 to vector<1x1xf32>
    %7 = arith.maximumf %5, %6 : vector<1x1xf32>
    %8 = vector.broadcast %7 : vector<1x1xf32> to vector<4x4xf32>
    %9 = arith.divf %0, %8 : vector<4x4xf32>
    %cst_5 = arith.constant dense<0xFF800000> : vector<4xf32>
    %10 = vector.multi_reduction <maximumf>, %1, %cst_5 [1] : vector<4x4xf32> to vector<4xf32>
    %11 = vector.shape_cast %10 : vector<4xf32> to vector<4x1xf32>
    %cst_6 = arith.constant dense<0xFF800000> : vector<1xf32>
    %12 = vector.multi_reduction <maximumf>, %11, %cst_6 [0] : vector<4x1xf32> to vector<1xf32>
    %13 = vector.shape_cast %12 : vector<1xf32> to vector<1x1xf32>
    %cst_7 = arith.constant 1.000000e-30 : f32
    %14 = vector.broadcast %cst_7 : f32 to vector<1x1xf32>
    %15 = arith.maximumf %13, %14 : vector<1x1xf32>
    %16 = vector.broadcast %15 : vector<1x1xf32> to vector<4x4xf32>
    %17 = arith.divf %1, %16 : vector<4x4xf32>
    %18 = arith.mulf %9, %9 : vector<4x4xf32>
    %cst_8 = arith.constant dense<0.000000e+00> : vector<4xf32>
    %19 = vector.multi_reduction <add>, %18, %cst_8 [1] : vector<4x4xf32> to vector<4xf32>
    %20 = vector.shape_cast %19 : vector<4xf32> to vector<4x1xf32>
    %cst_9 = arith.constant 2.500000e-01 : f32
    %21 = vector.broadcast %cst_9 : f32 to vector<4x1xf32>
    %22 = arith.mulf %21, %20 : vector<4x1xf32>
    %23 = arith.mulf %17, %17 : vector<4x4xf32>
    %cst_10 = arith.constant dense<0.000000e+00> : vector<4xf32>
    %24 = vector.multi_reduction <add>, %23, %cst_10 [0] : vector<4x4xf32> to vector<4xf32>
    %25 = vector.shape_cast %24 : vector<4xf32> to vector<1x4xf32>
    %cst_11 = arith.constant 2.500000e-01 : f32
    %26 = vector.broadcast %cst_11 : f32 to vector<1x4xf32>
    %27 = arith.mulf %26, %25 : vector<1x4xf32>
    %28 = vector.broadcast %22 : vector<4x1xf32> to vector<4x4xf32>
    %29 = vector.broadcast %27 : vector<1x4xf32> to vector<4x4xf32>
    %30 = arith.addf %28, %29 : vector<4x4xf32>
    %cst_12 = arith.constant 2.000000e+00 : f32
    %31 = vector.broadcast %cst_12 : f32 to vector<4x4xf32>
    %32 = arith.mulf %31, %17 : vector<4x4xf32>
    %cst_13 = arith.constant 6.250000e-02 : f32
    %33 = vector.broadcast %cst_13 : f32 to vector<4x4xf32>
    %c0_i32 = arith.constant 0 : i32
    %c20_i32 = arith.constant 20 : i32
    %34 = arith.addi %c0_i32, %c20_i32 : i32
    %c1_i32 = arith.constant 1 : i32
    %35 = scf.for %arg6 = %c0_i32 to %34 step %c1_i32 iter_args(%arg7 = %33) -> (vector<4x4xf32>)  : i32 {
      %cst_34 = arith.constant dense<0.000000e+00> : vector<4x4xf32>
      %87 = tpu.matmul %9, %arg7, %cst_34 {dimension_numbers = #tpu.dot_dimension_numbers<[1], [0], [0], [1], [0, 0, 1, 1], [], []>} : vector<4x4xf32>, vector<4x4xf32>, vector<4x4xf32> -> vector<4x4xf32>
      %cst_35 = arith.constant dense<0.000000e+00> : vector<4x4xf32>
      %88 = tpu.matmul %87, %32, %cst_35 {dimension_numbers = #tpu.dot_dimension_numbers<[1], [0], [0], [1], [0, 0, 1, 1], [], []>} : vector<4x4xf32>, vector<4x4xf32>, vector<4x4xf32> -> vector<4x4xf32>
      %89 = arith.subf %30, %88 : vector<4x4xf32>
      %cst_36 = arith.constant 5.000000e+01 : f32
      %90 = vector.broadcast %cst_36 : f32 to vector<4x4xf32>
      %91 = arith.mulf %89, %90 : vector<4x4xf32>
      %cst_37 = arith.constant 0.000000e+00 : f32
      %92 = vector.broadcast %cst_37 : f32 to vector<4x1xf32>
      %cst_38 = arith.constant 0.000000e+00 : f32
      %93 = vector.broadcast %cst_38 : f32 to vector<1x4xf32>
      %c0_i32_39 = arith.constant 0 : i32
      %c50_i32 = arith.constant 50 : i32
      %94 = arith.addi %c0_i32_39, %c50_i32 : i32
      %c1_i32_40 = arith.constant 1 : i32
      %95:2 = scf.for %arg8 = %c0_i32_39 to %94 step %c1_i32_40 iter_args(%arg9 = %92, %arg10 = %93) -> (vector<4x1xf32>, vector<1x4xf32>)  : i32 {
        %101 = vector.broadcast %arg10 : vector<1x4xf32> to vector<4x4xf32>
        %102 = arith.subf %101, %91 : vector<4x4xf32>
        %cst_41 = arith.constant dense<0xFF800000> : vector<4xf32>
        %103 = vector.multi_reduction <maximumf>, %102, %cst_41 [1] : vector<4x4xf32> to vector<4xf32>
        %104 = vector.shape_cast %103 : vector<4xf32> to vector<4x1xf32>
        %105 = vector.broadcast %104 : vector<4x1xf32> to vector<4x4xf32>
        %106 = arith.subf %102, %105 : vector<4x4xf32>
        %107 = math.exp %106 : vector<4x4xf32>
        %cst_42 = arith.constant dense<0.000000e+00> : vector<4xf32>
        %108 = vector.multi_reduction <add>, %107, %cst_42 [1] : vector<4x4xf32> to vector<4xf32>
        %109 = vector.shape_cast %108 : vector<4xf32> to vector<4x1xf32>
        %110 = math.log %109 : vector<4x1xf32>
        %111 = arith.addf %104, %110 : vector<4x1xf32>
        %cst_43 = arith.constant -1.38629436 : f32
        %112 = vector.broadcast %cst_43 : f32 to vector<4x1xf32>
        %113 = arith.subf %112, %111 : vector<4x1xf32>
        %114 = vector.broadcast %113 : vector<4x1xf32> to vector<4x4xf32>
        %115 = arith.subf %114, %91 : vector<4x4xf32>
        %cst_44 = arith.constant dense<0xFF800000> : vector<4xf32>
        %116 = vector.multi_reduction <maximumf>, %115, %cst_44 [0] : vector<4x4xf32> to vector<4xf32>
        %117 = vector.shape_cast %116 : vector<4xf32> to vector<1x4xf32>
        %118 = vector.broadcast %117 : vector<1x4xf32> to vector<4x4xf32>
        %119 = arith.subf %115, %118 : vector<4x4xf32>
        %120 = math.exp %119 : vector<4x4xf32>
        %cst_45 = arith.constant dense<0.000000e+00> : vector<4xf32>
        %121 = vector.multi_reduction <add>, %120, %cst_45 [0] : vector<4x4xf32> to vector<4xf32>
        %122 = vector.shape_cast %121 : vector<4xf32> to vector<1x4xf32>
        %123 = math.log %122 : vector<1x4xf32>
        %124 = arith.addf %117, %123 : vector<1x4xf32>
        %cst_46 = arith.constant -1.38629436 : f32
        %125 = vector.broadcast %cst_46 : f32 to vector<1x4xf32>
        %126 = arith.subf %125, %124 : vector<1x4xf32>
        scf.yield %113, %126 : vector<4x1xf32>, vector<1x4xf32>
      }
      %96 = vector.broadcast %95#0 : vector<4x1xf32> to vector<4x4xf32>
      %97 = vector.broadcast %95#1 : vector<1x4xf32> to vector<4x4xf32>
      %98 = arith.addf %96, %97 : vector<4x4xf32>
      %99 = arith.subf %98, %91 : vector<4x4xf32>
      %100 = math.exp %99 : vector<4x4xf32>
      scf.yield %100 : vector<4x4xf32>
    }
    %cst_14 = arith.constant dense<0.000000e+00> : vector<4x4xf32>
    %36 = tpu.matmul %9, %35, %cst_14 {dimension_numbers = #tpu.dot_dimension_numbers<[1], [0], [0], [1], [0, 0, 1, 1], [], []>} : vector<4x4xf32>, vector<4x4xf32>, vector<4x4xf32> -> vector<4x4xf32>
    %cst_15 = arith.constant dense<0.000000e+00> : vector<4x4xf32>
    %37 = tpu.matmul %36, %32, %cst_15 {dimension_numbers = #tpu.dot_dimension_numbers<[1], [0], [0], [1], [0, 0, 1, 1], [], []>} : vector<4x4xf32>, vector<4x4xf32>, vector<4x4xf32> -> vector<4x4xf32>
    %38 = arith.subf %30, %37 : vector<4x4xf32>
    %39 = arith.mulf %38, %35 : vector<4x4xf32>
    %cst_16 = arith.constant dense<0.000000e+00> : vector<4xf32>
    %40 = vector.multi_reduction <add>, %39, %cst_16 [1] : vector<4x4xf32> to vector<4xf32>
    %41 = vector.shape_cast %40 : vector<4xf32> to vector<4x1xf32>
    %cst_17 = arith.constant dense<0.000000e+00> : vector<1xf32>
    %42 = vector.multi_reduction <add>, %41, %cst_17 [0] : vector<4x1xf32> to vector<1xf32>
    %43 = vector.shape_cast %42 : vector<1xf32> to vector<1x1xf32>
    %c0_18 = arith.constant 0 : index
    %c0_19 = arith.constant 0 : index
    %44 = vector.load %arg3[%c0_18, %c0_19] : memref<1x1xf32, #tpu.memory_space<vmem>>, vector<1x1xf32>
    %c0_20 = arith.constant 0 : index
    %c0_21 = arith.constant 0 : index
    %45 = vector.load %arg4[%c0_20, %c0_21] : memref<4x1xf32, #tpu.memory_space<vmem>>, vector<4x1xf32>
    %cst_22 = arith.constant 0.000000e+00 : f32
    %46 = vector.broadcast %cst_22 : f32 to vector<4x1xf32>
    %47 = arith.subf %46, %45 : vector<4x1xf32>
    %cst_23 = arith.constant 0.000000e+00 : f32
    %48 = vector.broadcast %cst_23 : f32 to vector<4x1xf32>
    %49 = arith.maximumf %47, %48 : vector<4x1xf32>
    %50 = math.absf %45 : vector<4x1xf32>
    %cst_24 = arith.constant 0.000000e+00 : f32
    %51 = vector.broadcast %cst_24 : f32 to vector<4x1xf32>
    %52 = arith.subf %51, %50 : vector<4x1xf32>
    %53 = math.exp %52 : vector<4x1xf32>
    %cst_25 = arith.constant 1.000000e+00 : f32
    %54 = vector.broadcast %cst_25 : f32 to vector<4x1xf32>
    %55 = arith.addf %54, %53 : vector<4x1xf32>
    %56 = math.log %55 : vector<4x1xf32>
    %57 = arith.addf %49, %56 : vector<4x1xf32>
    %cst_26 = arith.constant dense<0.000000e+00> : vector<4xf32>
    %58 = vector.multi_reduction <add>, %57, %cst_26 [1] : vector<4x1xf32> to vector<4xf32>
    %59 = vector.shape_cast %58 : vector<4xf32> to vector<4x1xf32>
    %cst_27 = arith.constant dense<0.000000e+00> : vector<1xf32>
    %60 = vector.multi_reduction <add>, %59, %cst_27 [0] : vector<4x1xf32> to vector<1xf32>
    %61 = vector.shape_cast %60 : vector<1xf32> to vector<1x1xf32>
    %cst_28 = arith.constant 2.500000e-01 : f32
    %62 = vector.broadcast %cst_28 : f32 to vector<1x1xf32>
    %63 = arith.mulf %61, %62 : vector<1x1xf32>
    %cst_29 = arith.constant 1.000000e+01 : f32
    %64 = vector.broadcast %cst_29 : f32 to vector<1x1xf32>
    %65 = arith.mulf %43, %64 : vector<1x1xf32>
    %cst_30 = arith.constant 1.000000e+01 : f32
    %66 = vector.broadcast %cst_30 : f32 to vector<1x1xf32>
    %67 = arith.mulf %44, %66 : vector<1x1xf32>
    %cst_31 = arith.constant 1.000000e+01 : f32
    %68 = vector.broadcast %cst_31 : f32 to vector<1x1xf32>
    %69 = arith.mulf %63, %68 : vector<1x1xf32>
    %70 = arith.maximumf %65, %67 : vector<1x1xf32>
    %71 = arith.maximumf %70, %69 : vector<1x1xf32>
    %72 = arith.subf %65, %71 : vector<1x1xf32>
    %73 = math.exp %72 : vector<1x1xf32>
    %74 = arith.subf %67, %71 : vector<1x1xf32>
    %75 = math.exp %74 : vector<1x1xf32>
    %76 = arith.subf %69, %71 : vector<1x1xf32>
    %77 = math.exp %76 : vector<1x1xf32>
    %78 = arith.mulf %43, %73 : vector<1x1xf32>
    %79 = arith.mulf %44, %75 : vector<1x1xf32>
    %80 = arith.addf %78, %79 : vector<1x1xf32>
    %81 = arith.mulf %63, %77 : vector<1x1xf32>
    %82 = arith.addf %80, %81 : vector<1x1xf32>
    %83 = arith.addf %73, %75 : vector<1x1xf32>
    %84 = arith.addf %83, %77 : vector<1x1xf32>
    %85 = arith.divf %82, %84 : vector<1x1xf32>
    %c0_32 = arith.constant 0 : index
    %c0_33 = arith.constant 0 : index
    %86 = vector.load %arg5[%c0_32, %c0_33] : memref<1x1xf32, #tpu.memory_space<vmem>>, vector<1x1xf32>
    tpu.vector_store %arg5[%c0_32, %c0_33], %85 {strides = array<i32>} : memref<1x1xf32, #tpu.memory_space<vmem>>, vector<1x1xf32>,
    return
  }
  func.func @transform_0(%arg0: i32) -> (i32, i32) {
    %c0_i32 = arith.constant 0 : i32
    %c0_i32_0 = arith.constant 0 : i32
    %c0_i32_1 = arith.constant 0 : i32
    return %c0_i32, %c0_i32_0 : i32, i32
  }
  func.func @transform_1(%arg0: i32) -> (i32, i32) {
    %c0_i32 = arith.constant 0 : i32
    %c0_i32_0 = arith.constant 0 : i32
    %c0_i32_1 = arith.constant 0 : i32
    return %c0_i32, %c0_i32_0 : i32, i32
  }
  func.func @transform_2(%arg0: i32) -> (i32, i32) {
    %c0_i32 = arith.constant 0 : i32
    %c0_i32_0 = arith.constant 0 : i32
    %c0_i32_1 = arith.constant 0 : i32
    return %c0_i32, %c0_i32_0 : i32, i32
  }
  func.func @transform_3(%arg0: i32) -> (i32, i32) {
    %c0_i32 = arith.constant 0 : i32
    %c0_i32_0 = arith.constant 0 : i32
    %c0_i32_1 = arith.constant 0 : i32
    return %c0_i32, %c0_i32_0 : i32, i32
  }
  func.func @transform_4(%arg0: i32) -> (i32, i32) {
    %c0_i32 = arith.constant 0 : i32
    %c0_i32_0 = arith.constant 0 : i32
    %c0_i32_1 = arith.constant 0 : i32
    return %c0_i32, %c0_i32_0 : i32, i32
  }
}

</mosaic_0001>

<llo_original>
// kernel: dwloss_forward.3
$region0: #{dwloss_forward.3}
  #allocation0 [shape = 'u32[]', space=smem, size = 0x4, offset = 0x4, fixed_abs, tag = 'smem constant byte address 0x4 - core index']
  #allocation1 [shape = 'u32[144,128]{1,0:T(1,128)}', space=vmem, size = 0x12000, scoped, tag = 'internal scratch']
  #allocation2 [shape = 'f32[4,4]{1,0:T(4,128)}', space=vmem, size = 0x800, scoped, tag = 'scratch operand']
  %s0 = inlined_call_operand.vmem [shape: f32[4,768], index: 0, kind: input, shape index: {}]
  %s1 = inlined_call_operand.vmem [shape: f32[4,4], index: 1, kind: output, shape index: {}]
  %s2 = sld [smem:[#allocation0]]
  $region22: #{dwloss_forward.3} parent=0
    _
  %s4 = ssub.s32 1, %s2
  %s5 = scalar_select 0, %s4, %s2
  // Predicated region
  $region2: #{dwloss_forward.3} parent=0 // pred_check
    _
  $region3: #{dwloss_forward.3} parent=0 // pred_check_branch
    %7 = sbr.rel (0) target = $region5
  $region4: #{dwloss_forward.3} parent=0 // pred_region
    _
  $region5: #{dwloss_forward.3} parent=0 // pred_fallthru
    _
  %p8 = scmp.eq.s32.totalorder 0, 0
  // Predicated region
  $region6: #{dwloss_forward.3} parent=0 // pred_check
    %p9 = pneg %p8
  $region7: #{dwloss_forward.3} parent=0 // pred_check_branch
    %11 = sbr.rel (%p9) target = $region9
  $region8: #{dwloss_forward.3} parent=0 // pred_region
    %vm12 = vcmask 27648
    %13 = vst.msk [vmem:[#allocation2] sm:$0xf] %vm12, 0.0
  $region9: #{dwloss_forward.3} parent=0 // pred_fallthru
    _
  %v14 = vld [vmem:[%s0] sm:$0xff]
  %v15 = vld [vmem:[%s0 + $0x8] sm:$0xff]
  %v16 = vld [vmem:[%s0 + $0x10] sm:$0xff]
  %v17 = vld [vmem:[#allocation2] sm:$0xf]
  %v21 = vcombine.high %v14, %v14
  %v22 = vcombine.high %v15, %v15
  %v23 = vcombine.high %v16, %v16
  %27 = vmatprep.subr.mxu0 0.0
  %28 = vmatpush1.xpose.msra.mxu0 0.0
  %29 = vmatprep.subr.mxu0 0.0
  %30 = vmatpush1.xpose.msra.mxu0 0.0
  %31 = vmatprep.subr.mxu0 0.0
  %32 = vmatpush1.xpose.msra.mxu0 0.0
  %33 = vmatprep.subr.mxu0 0.0
  %34 = vmatpush1.xpose.msra.mxu0 0.0
  %35 = vmatprep.subr.mxu0 0.0
  %36 = vmatpush1.xpose.msra.mxu0 0.0
  %37 = vmatprep.subr.mxu0 0.0
  %38 = vmatpush1.xpose.msra.mxu0 0.0
  %39 = vmatprep.subr.mxu0 0.0
  %40 = vmatpush1.xpose.msra.mxu0 0.0
  %41 = vmatprep.subr.mxu0 0.0
  %42 = vmatpush1.xpose.msra.mxu0 0.0
  %43 = vmatprep.subr.mxu0 0.0
  %44 = vmatpush1.xpose.msra.mxu0 0.0
  %45 = vmatprep.subr.mxu0 0.0
  %46 = vmatpush1.xpose.msra.mxu0 0.0
  %47 = vmatprep.subr.mxu0 0.0
  %48 = vmatpush1.xpose.msra.mxu0 0.0
  %49 = vmatprep.subr.mxu0 0.0
  %50 = vmatpush1.xpose.msra.mxu0 0.0
  %51 = vmatprep.subr.mxu0 0.0
  %52 = vmatpush1.xpose.msra.mxu0 0.0
  %53 = vmatprep.subr.mxu0 0.0
  %54 = vmatpush1.xpose.msra.mxu0 0.0
  %55 = vmatprep.subr.mxu0 0.0
  %56 = vmatpush1.xpose.msra.mxu0 0.0
  %57 = vmatprep.subr.mxu0 %v21
  %58 = vmatpush1.xpose.msra.mxu0 %v14
  %59 = vmatprep.subr.mxu0 0.0
  %60 = vmatpush2.xpose.msra.mxu0 0.0
  %61 = vmatprep.subr.mxu0 0.0
  %62 = vmatpush2.xpose.msra.mxu0 0.0
  %63 = vmatprep.subr.mxu0 0.0
  %64 = vmatpush2.xpose.msra.mxu0 0.0
  %65 = vmatprep.subr.mxu0 0.0
  %66 = vmatpush2.xpose.msra.mxu0 0.0
  %67 = vmatprep.subr.mxu0 0.0
  %68 = vmatpush2.xpose.msra.mxu0 0.0
  %69 = vmatprep.subr.mxu0 0.0
  %70 = vmatpush2.xpose.msra.mxu0 0.0
  %71 = vmatprep.subr.mxu0 0.0
  %72 = vmatpush2.xpose.msra.mxu0 0.0
  %73 = vmatprep.subr.mxu0 0.0
  %74 = vmatpush2.xpose.msra.mxu0 0.0
  %75 = vmatprep.subr.mxu0 0.0
  %76 = vmatpush2.xpose.msra.mxu0 0.0
  %77 = vmatprep.subr.mxu0 0.0
  %78 = vmatpush2.xpose.msra.mxu0 0.0
  %79 = vmatprep.subr.mxu0 0.0
  %80 = vmatpush2.xpose.msra.mxu0 0.0
  %81 = vmatprep.subr.mxu0 0.0
  %82 = vmatpush2.xpose.msra.mxu0 0.0
  %83 = vmatprep.subr.mxu0 0.0
  %84 = vmatpush2.xpose.msra.mxu0 0.0
  %85 = vmatprep.subr.mxu0 0.0
  %86 = vmatpush2.xpose.msra.mxu0 0.0
  %87 = vmatprep.subr.mxu0 0.0
  %88 = vmatpush2.xpose.msra.mxu0 0.0
  %89 = vmatprep.subr.mxu0 0.0
  %90 = vmatpush2.xpose.msra.mxu0 0.0
  %91 = vmatprep.mubr.f32.mxu0 %v21
  %92 = vmatmul.mubr.f32.gmra.mxu0 %v14
  %v93 = vpop.f32.mrf.mxu0
  %v94 = vadd.f32 0.0, %v93
  %v95 = vpop.f32.mrf.mxu0
  %96 = vdwg.mxu0
  %97 = vmatprep.subr.mxu0 0.0
  %98 = vmatpush1.xpose.msra.mxu0 0.0
  %99 = vmatprep.subr.mxu0 0.0
  %100 = vmatpush1.xpose.msra.mxu0 0.0
  %101 = vmatprep.subr.mxu0 0.0
  %102 = vmatpush1.xpose.msra.mxu0 0.0
  %103 = vmatprep.subr.mxu0 0.0
  %104 = vmatpush1.xpose.msra.mxu0 0.0
  %105 = vmatprep.subr.mxu0 0.0
  %106 = vmatpush1.xpose.msra.mxu0 0.0
  %107 = vmatprep.subr.mxu0 0.0
  %108 = vmatpush1.xpose.msra.mxu0 0.0
  %109 = vmatprep.subr.mxu0 0.0
  %110 = vmatpush1.xpose.msra.mxu0 0.0
  %111 = vmatprep.subr.mxu0 0.0
  %112 = vmatpush1.xpose.msra.mxu0 0.0
  %113 = vmatprep.subr.mxu0 0.0
  %114 = vmatpush1.xpose.msra.mxu0 0.0
  %115 = vmatprep.subr.mxu0 0.0
  %116 = vmatpush1.xpose.msra.mxu0 0.0
  %117 = vmatprep.subr.mxu0 0.0
  %118 = vmatpush1.xpose.msra.mxu0 0.0
  %119 = vmatprep.subr.mxu0 0.0
  %120 = vmatpush1.xpose.msra.mxu0 0.0
  %121 = vmatprep.subr.mxu0 0.0
  %122 = vmatpush1.xpose.msra.mxu0 0.0
  %123 = vmatprep.subr.mxu0 0.0
  %124 = vmatpush1.xpose.msra.mxu0 0.0
  %125 = vmatprep.subr.mxu0 0.0
  %126 = vmatpush1.xpose.msra.mxu0 0.0
  %127 = vmatprep.subr.mxu0 %v22
  %128 = vmatpush1.xpose.msra.mxu0 %v15
  %129 = vmatprep.subr.mxu0 0.0
  %130 = vmatpush2.xpose.msra.mxu0 0.0
  %131 = vmatprep.subr.mxu0 0.0
  %132 = vmatpush2.xpose.msra.mxu0 0.0
  %133 = vmatprep.subr.mxu0 0.0
  %134 = vmatpush2.xpose.msra.mxu0 0.0
  %135 = vmatprep.subr.mxu0 0.0
  %136 = vmatpush2.xpose.msra.mxu0 0.0
  %137 = vmatprep.subr.mxu0 0.0
  %138 = vmatpush2.xpose.msra.mxu0 0.0
  %139 = vmatprep.subr.mxu0 0.0
  %140 = vmatpush2.xpose.msra.mxu0 0.0
  %141 = vmatprep.subr.mxu0 0.0
  %142 = vmatpush2.xpose.msra.mxu0 0.0
  %143 = vmatprep.subr.mxu0 0.0
  %144 = vmatpush2.xpose.msra.mxu0 0.0
  %145 = vmatprep.subr.mxu0 0.0
  %146 = vmatpush2.xpose.msra.mxu0 0.0
  %147 = vmatprep.subr.mxu0 0.0
  %148 = vmatpush2.xpose.msra.mxu0 0.0
  %149 = vmatprep.subr.mxu0 0.0
  %150 = vmatpush2.xpose.msra.mxu0 0.0
  %151 = vmatprep.subr.mxu0 0.0
  %152 = vmatpush2.xpose.msra.mxu0 0.0
  %153 = vmatprep.subr.mxu0 0.0
  %154 = vmatpush2.xpose.msra.mxu0 0.0
  %155 = vmatprep.subr.mxu0 0.0
  %156 = vmatpush2.xpose.msra.mxu0 0.0
  %157 = vmatprep.subr.mxu0 0.0
  %158 = vmatpush2.xpose.msra.mxu0 0.0
  %159 = vmatprep.subr.mxu0 0.0
  %160 = vmatpush2.xpose.msra.mxu0 0.0
  %161 = vmatprep.mubr.f32.mxu0 %v22
  %162 = vmatmul.mubr.f32.gmra.mxu0 %v15
  %v163 = vpop.f32.mrf.mxu0
  %v164 = vadd.f32 %v94, %v163
  %v165 = vpop.f32.mrf.mxu0
  %166 = vdwg.mxu0
  %167 = vmatprep.subr.mxu0 0.0
  %168 = vmatpush1.xpose.msra.mxu0 0.0
  %169 = vmatprep.subr.mxu0 0.0
  %170 = vmatpush1.xpose.msra.mxu0 0.0
  %171 = vmatprep.subr.mxu0 0.0
  %172 = vmatpush1.xpose.msra.mxu0 0.0
  %173 = vmatprep.subr.mxu0 0.0
  %174 = vmatpush1.xpose.msra.mxu0 0.0
  %175 = vmatprep.subr.mxu0 0.0
  %176 = vmatpush1.xpose.msra.mxu0 0.0
  %177 = vmatprep.subr.mxu0 0.0
  %178 = vmatpush1.xpose.msra.mxu0 0.0
  %179 = vmatprep.subr.mxu0 0.0
  %180 = vmatpush1.xpose.msra.mxu0 0.0
  %181 = vmatprep.subr.mxu0 0.0
  %182 = vmatpush1.xpose.msra.mxu0 0.0
  %183 = vmatprep.subr.mxu0 0.0
  %184 = vmatpush1.xpose.msra.mxu0 0.0
  %185 = vmatprep.subr.mxu0 0.0
  %186 = vmatpush1.xpose.msra.mxu0 0.0
  %187 = vmatprep.subr.mxu0 0.0
  %188 = vmatpush1.xpose.msra.mxu0 0.0
  %189 = vmatprep.subr.mxu0 0.0
  %190 = vmatpush1.xpose.msra.mxu0 0.0
  %191 = vmatprep.subr.mxu0 0.0
  %192 = vmatpush1.xpose.msra.mxu0 0.0
  %193 = vmatprep.subr.mxu0 0.0
  %194 = vmatpush1.xpose.msra.mxu0 0.0
  %195 = vmatprep.subr.mxu0 0.0
  %196 = vmatpush1.xpose.msra.mxu0 0.0
  %197 = vmatprep.subr.mxu0 %v23
  %198 = vmatpush1.xpose.msra.mxu0 %v16
  %199 = vmatprep.subr.mxu0 0.0
  %200 = vmatpush2.xpose.msra.mxu0 0.0
  %201 = vmatprep.subr.mxu0 0.0
  %202 = vmatpush2.xpose.msra.mxu0 0.0
  %203 = vmatprep.subr.mxu0 0.0
  %204 = vmatpush2.xpose.msra.mxu0 0.0
  %205 = vmatprep.subr.mxu0 0.0
  %206 = vmatpush2.xpose.msra.mxu0 0.0
  %207 = vmatprep.subr.mxu0 0.0
  %208 = vmatpush2.xpose.msra.mxu0 0.0
  %209 = vmatprep.subr.mxu0 0.0
  %210 = vmatpush2.xpose.msra.mxu0 0.0
  %211 = vmatprep.subr.mxu0 0.0
  %212 = vmatpush2.xpose.msra.mxu0 0.0
  %213 = vmatprep.subr.mxu0 0.0
  %214 = vmatpush2.xpose.msra.mxu0 0.0
  %215 = vmatprep.subr.mxu0 0.0
  %216 = vmatpush2.xpose.msra.mxu0 0.0
  %217 = vmatprep.subr.mxu0 0.0
  %218 = vmatpush2.xpose.msra.mxu0 0.0
  %219 = vmatprep.subr.mxu0 0.0
  %220 = vmatpush2.xpose.msra.mxu0 0.0
  %221 = vmatprep.subr.mxu0 0.0
  %222 = vmatpush2.xpose.msra.mxu0 0.0
  %223 = vmatprep.subr.mxu0 0.0
  %224 = vmatpush2.xpose.msra.mxu0 0.0
  %225 = vmatprep.subr.mxu0 0.0
  %226 = vmatpush2.xpose.msra.mxu0 0.0
  %227 = vmatprep.subr.mxu0 0.0
  %228 = vmatpush2.xpose.msra.mxu0 0.0
  %229 = vmatprep.subr.mxu0 0.0
  %230 = vmatpush2.xpose.msra.mxu0 0.0
  %231 = vmatprep.mubr.f32.mxu0 %v23
  %232 = vmatmul.mubr.f32.gmra.mxu0 %v16
  %v233 = vpop.f32.mrf.mxu0
  %v234 = vadd.f32 %v164, %v233
  %v235 = vpop.f32.mrf.mxu0
  %236 = vdwg.mxu0
  %v237 = vadd.f32 %v17, %v234
  %vm238 = vcmask 27648
  %239 = vst.msk [vmem:[#allocation2] sm:$0xf] %vm238, %v237
  // Predicated region
  $region10: #{dwloss_forward.3} parent=0 // pred_check
    %p240 = pneg %p8
  $region11: #{dwloss_forward.3} parent=0 // pred_check_branch
    %242 = sbr.rel (%p240) target = $region13
  $region12: #{dwloss_forward.3} parent=0 // pred_region
    %v243 = vld [vmem:[#allocation2] sm:$0xf]
    %v244 = vlaneseq
    %v245 = vshrl.u32 %v244, 7
    %v246 = vlaneseq
    %v247 = vand.u32 %v246, 127
    %vm248 = vcmp.eq.s32.totalorder %v245, %v247
    %v249 = vsel %vm248, %v243, 0.0
    %v250 = vsel %vm238, %v249, 0.0
    %251 = vadd.xlane.f32.xlu0 %v250
    %v252 = vpop.xlane.xlu0 %251
    %v253 = vrot.slane %v250, 4
    %v254 = vadd.f32 %v250, %v253
    %v255 = vrot.slane %v254, 2
    %v256 = vadd.f32 %v254, %v255
    %v257 = vrot.slane %v256, 1
    %v258 = vadd.f32 %v256, %v257
    %v259 = vadd.f32 %v252, %v258
    %v260 = vmul.f32 %v243, 2.0
    %v261 = vsub.f32 %v259, %v260
    %v262 = vmax.f32 %v261, 0.0
    %v263 = vrsqrt.pop %v262
    %v264 = vmul.f32 %v262, %v263
    %vm265 = vcmp.eq.f32.partialorder %v262, inf
    %v266 = vsel %vm265, %v262, %v264
    %vm267 = vcmp.eq.f32.partialorder %v262, 0.0
    %v268 = vand.u32 %v262, 2147483648
    %v269 = vsel %vm267, %v268, %v266
    %v270 = vsel %vm248, 0.0, %v269
    %271 = vst.msk [vmem:[%s1] sm:$0xf] %vm238, %v270
  $region13: #{dwloss_forward.3} parent=0 // pred_fallthru
    _
  // Predicated region
  $region14: #{dwloss_forward.3} parent=0 // pred_check
    _
  $region15: #{dwloss_forward.3} parent=0 // pred_check_branch
    %273 = sbr.rel (0) target = $region17
  $region16: #{dwloss_forward.3} parent=0 // pred_region
    _
  $region17: #{dwloss_forward.3} parent=0 // pred_fallthru
    _
  // Predicated region
  $region18: #{dwloss_forward.3} parent=0 // pred_check
    _
  $region19: #{dwloss_forward.3} parent=0 // pred_check_branch
    %275 = sbr.rel (0) target = $region21
  $region20: #{dwloss_forward.3} parent=0 // pred_region
    _
  $region21: #{dwloss_forward.3} parent=0 // pred_fallthru
    _

// kernel: dwloss_forward.5
$region0: #{dwloss_forward.5}
  #allocation0 [shape = 'u32[]', space=smem, size = 0x4, offset = 0x4, fixed_abs, tag = 'smem constant byte address 0x4 - core index']
  #allocation1 [shape = 'u32[144,128]{1,0:T(1,128)}', space=vmem, size = 0x12000, scoped, tag = 'internal scratch']
  #allocation2 [shape = 'f32[1,1]{1,0:T(1,128)S(1)}', space=vmem, size = 0x200, scoped, tag = 'scoped memory for dwloss_forward.5']
  %s0 = inlined_call_operand.vmem [shape: f32[4,4], index: 0, kind: input, shape index: {}]
  %s1 = inlined_call_operand.vmem [shape: f32[4,4], index: 1, kind: input, shape index: {}]
  %s2 = inlined_call_operand.<no memory space> [shape: f32[1,1], index: 2, kind: input, shape index: {}]
  %s3 = inlined_call_operand.vmem [shape: f32[4,1], index: 3, kind: input, shape index: {}]
  %s4 = inlined_call_operand.hbm [shape: f32[1,1], index: 4, kind: output, shape index: {}]
  %s5 = sld [smem:[#allocation0]]
  $region40: #{dwloss_forward.5} parent=0
    _
  %s7 = ssub.s32 1, %s5
  %s8 = scalar_select 0, %s7, %s5
  %v9 = vstv %s2
  %10 = vst [vmem:[#allocation2] sm:$0x1] %v9
  $region1: #{dwloss_forward.5} parent=0
    #allocation3 [shape = 'u8[512]{0}', space=vmem, size = 0x400, scoped, tag = 'output window, operand 0, single buffered']
    #allocation4 [shape = 's32[1]{0}', space=sflag, size = 0x4, scoped, tag = 'scoped memory for dwloss_forward.5']
    %11 = vsyncpa [#allocation4], 0
    // Predicated region
    $region2: #{dwloss_forward.5} parent=1 // pred_check
      _
    $region3: #{dwloss_forward.5} parent=1 // pred_check_branch
      %13 = sbr.rel (0) target = $region5
    $region4: #{dwloss_forward.5} parent=1 // pred_region
      _
    $region5: #{dwloss_forward.5} parent=1 // pred_fallthru
      _
    // Predicated region
    $region6: #{dwloss_forward.5} parent=1 // pred_check
      _
    $region7: #{dwloss_forward.5} parent=1 // pred_check_branch
      %15 = sbr.rel (0) target = $region9
    $region8: #{dwloss_forward.5} parent=1 // pred_region
      _
    $region9: #{dwloss_forward.5} parent=1 // pred_fallthru
      _
    // Predicated region
    $region10: #{dwloss_forward.5} parent=1 // pred_check
      _
    $region11: #{dwloss_forward.5} parent=1 // pred_check_branch
      %17 = sbr.rel (0) target = $region13
    $region12: #{dwloss_forward.5} parent=1 // pred_region
      _
    $region13: #{dwloss_forward.5} parent=1 // pred_fallthru
      _
    // Predicated region
    $region14: #{dwloss_forward.5} parent=1 // pred_check
      _
    $region15: #{dwloss_forward.5} parent=1 // pred_check_branch
      %19 = sbr.rel (0) target = $region17
    $region16: #{dwloss_forward.5} parent=1 // pred_region
      _
    $region17: #{dwloss_forward.5} parent=1 // pred_fallthru
      _
    %v20 = vld [vmem:[%s0] sm:$0xf]
    %v21 = vld [vmem:[%s1] sm:$0xf]
    %vm22 = vcmask 27648
    %v23 = vsel %vm22, %v20, -inf
    %24 = vmax.xlane.f32.xlu0 %v23
    %v25 = vpop.xlane.xlu0 %24
    %vm26 = vcmask 1043456
    %v27 = vsel %vm26, %v25, -inf
    %v28 = vrot.slane %v27, 4
    %v29 = vmax.f32 %v27, %v28
    %v30 = vrot.slane %v29, 2
    %v31 = vmax.f32 %v29, %v30
    %v32 = vrot.slane %v31, 1
    %v33 = vmax.f32 %v31, %v32
    %v34 = vmax.f32 %v33, 1e-30
    %v35 = vrcp.pop %v34
    %v36 = vmul.f32 %v20, %v35
    %v37 = vsel %vm22, %v21, -inf
    %38 = vmax.xlane.f32.xlu0 %v37
    %v39 = vpop.xlane.xlu0 %38
    %v40 = vsel %vm26, %v39, -inf
    %v41 = vrot.slane %v40, 4
    %v42 = vmax.f32 %v40, %v41
    %v43 = vrot.slane %v42, 2
    %v44 = vmax.f32 %v42, %v43
    %v45 = vrot.slane %v44, 1
    %v46 = vmax.f32 %v44, %v45
    %v47 = vmax.f32 %v46, 1e-30
    %v48 = vrcp.pop %v47
    %v49 = vmul.f32 %v21, %v48
    %v50 = vmul.f32 %v36, %v36
    %v51 = vsel %vm22, %v50, 0.0
    %52 = vadd.xlane.f32.xlu0 %v51
    %v53 = vpop.xlane.xlu0 %52
    %v54 = vmul.f32 %v53, 0.25
    %v55 = vmul.f32 %v49, %v49
    %v56 = vsel %vm22, %v55, 0.0
    %v57 = vrot.slane %v56, 4
    %v58 = vadd.f32 %v56, %v57
    %v59 = vrot.slane %v58, 2
    %v60 = vadd.f32 %v58, %v59
    %v61 = vrot.slane %v60, 1
    %v62 = vadd.f32 %v60, %v61
    %v63 = vmul.f32 %v62, 0.25
    %v64 = vadd.f32 %v54, %v63
    %v65 = vmul.f32 %v49, 2.0
    loop: start=0, step=1, limit=20
    $region18: #{dwloss_forward.5} parent=1 // loop_pre_header
      _
    $region19: #{dwloss_forward.5} parent=1 // loop_header
      %s67 = sphi 0, %s71
      %p68 = scmp.ge.s32.totalorder %s67, 20
      %v72 = vphi 0.0625, %v275
    $region20: #{dwloss_forward.5} parent=1 // loop_header_branch
      %70 = sbr.rel (%p68) target = $region24
    $region21: #{dwloss_forward.5} parent=1 // loop_body
      %vm73 = vcmask 31744
      %v75 = vsel %vm73, %v36, 0
      %v78 = vsel %vm26, %v72, 0
      %80 = vmatprep.subr.mxu0 0.0
      %81 = vmatpush1.msra.mxu0 0.0
      %82 = vmatprep.subr.mxu0 0.0
      %83 = vmatpush1.msra.mxu0 0.0
      %84 = vmatprep.subr.mxu0 0.0
      %85 = vmatpush1.msra.mxu0 0.0
      %86 = vmatprep.subr.mxu0 0.0
      %87 = vmatpush1.msra.mxu0 0.0
      %88 = vmatprep.subr.mxu0 0.0
      %89 = vmatpush1.msra.mxu0 0.0
      %90 = vmatprep.subr.mxu0 0.0
      %91 = vmatpush1.msra.mxu0 0.0
      %92 = vmatprep.subr.mxu0 0.0
      %93 = vmatpush1.msra.mxu0 0.0
      %94 = vmatprep.subr.mxu0 0.0
      %95 = vmatpush1.msra.mxu0 0.0
      %96 = vmatprep.subr.mxu0 0.0
      %97 = vmatpush1.msra.mxu0 0.0
      %98 = vmatprep.subr.mxu0 0.0
      %99 = vmatpush1.msra.mxu0 0.0
      %100 = vmatprep.subr.mxu0 0.0
      %101 = vmatpush1.msra.mxu0 0.0
      %102 = vmatprep.subr.mxu0 0.0
      %103 = vmatpush1.msra.mxu0 0.0
      %104 = vmatprep.subr.mxu0 0.0
      %105 = vmatpush1.msra.mxu0 0.0
      %106 = vmatprep.subr.mxu0 0.0
      %107 = vmatpush1.msra.mxu0 0.0
      %108 = vmatprep.subr.mxu0 0.0
      %109 = vmatpush1.msra.mxu0 0.0
      %110 = vmatprep.subr.mxu0 0.0
      %111 = vmatpush1.msra.mxu0 %v78
      %112 = vmatprep.subr.mxu0 0.0
      %113 = vmatpush2.msra.mxu0 0.0
      %114 = vmatprep.subr.mxu0 0.0
      %115 = vmatpush2.msra.mxu0 0.0
      %116 = vmatprep.subr.mxu0 0.0
      %117 = vmatpush2.msra.mxu0 0.0
      %118 = vmatprep.subr.mxu0 0.0
      %119 = vmatpush2.msra.mxu0 0.0
      %120 = vmatprep.subr.mxu0 0.0
      %121 = vmatpush2.msra.mxu0 0.0
      %122 = vmatprep.subr.mxu0 0.0
      %123 = vmatpush2.msra.mxu0 0.0
      %124 = vmatprep.subr.mxu0 0.0
      %125 = vmatpush2.msra.mxu0 0.0
      %126 = vmatprep.subr.mxu0 0.0
      %127 = vmatpush2.msra.mxu0 0.0
      %128 = vmatprep.subr.mxu0 0.0
      %129 = vmatpush2.msra.mxu0 0.0
      %130 = vmatprep.subr.mxu0 0.0
      %131 = vmatpush2.msra.mxu0 0.0
      %132 = vmatprep.subr.mxu0 0.0
      %133 = vmatpush2.msra.mxu0 0.0
      %134 = vmatprep.subr.mxu0 0.0
      %135 = vmatpush2.msra.mxu0 0.0
      %136 = vmatprep.subr.mxu0 0.0
      %137 = vmatpush2.msra.mxu0 0.0
      %138 = vmatprep.subr.mxu0 0.0
      %139 = vmatpush2.msra.mxu0 0.0
      %140 = vmatprep.subr.mxu0 0.0
      %141 = vmatpush2.msra.mxu0 0.0
      %142 = vmatprep.subr.mxu0 0.0
      %143 = vmatpush2.msra.mxu0 0.0
      %144 = vmatprep.mubr.f32.mxu0 0.0
      %145 = vmatmul.mubr.f32.gmra.mxu0 %v75
      %v146 = vpop.f32.mrf.mxu0
      %v147 = vadd.f32 0.0, %v146
      %v148 = vpop.f32.mrf.mxu0
      %149 = vdwg.mxu0
      %v151 = vsel %vm73, %v147, 0
      %v154 = vsel %vm26, %v65, 0
      %156 = vmatprep.subr.mxu0 0.0
      %157 = vmatpush1.msra.mxu0 0.0
      %158 = vmatprep.subr.mxu0 0.0
      %159 = vmatpush1.msra.mxu0 0.0
      %160 = vmatprep.subr.mxu0 0.0
      %161 = vmatpush1.msra.mxu0 0.0
      %162 = vmatprep.subr.mxu0 0.0
      %163 = vmatpush1.msra.mxu0 0.0
      %164 = vmatprep.subr.mxu0 0.0
      %165 = vmatpush1.msra.mxu0 0.0
      %166 = vmatprep.subr.mxu0 0.0
      %167 = vmatpush1.msra.mxu0 0.0
      %168 = vmatprep.subr.mxu0 0.0
      %169 = vmatpush1.msra.mxu0 0.0
      %170 = vmatprep.subr.mxu0 0.0
      %171 = vmatpush1.msra.mxu0 0.0
      %172 = vmatprep.subr.mxu0 0.0
      %173 = vmatpush1.msra.mxu0 0.0
      %174 = vmatprep.subr.mxu0 0.0
      %175 = vmatpush1.msra.mxu0 0.0
      %176 = vmatprep.subr.mxu0 0.0
      %177 = vmatpush1.msra.mxu0 0.0
      %178 = vmatprep.subr.mxu0 0.0
      %179 = vmatpush1.msra.mxu0 0.0
      %180 = vmatprep.subr.mxu0 0.0
      %181 = vmatpush1.msra.mxu0 0.0
      %182 = vmatprep.subr.mxu0 0.0
      %183 = vmatpush1.msra.mxu0 0.0
      %184 = vmatprep.subr.mxu0 0.0
      %185 = vmatpush1.msra.mxu0 0.0
      %186 = vmatprep.subr.mxu0 0.0
      %187 = vmatpush1.msra.mxu0 %v154
      %188 = vmatprep.subr.mxu0 0.0
      %189 = vmatpush2.msra.mxu0 0.0
      %190 = vmatprep.subr.mxu0 0.0
      %191 = vmatpush2.msra.mxu0 0.0
      %192 = vmatprep.subr.mxu0 0.0
      %193 = vmatpush2.msra.mxu0 0.0
      %194 = vmatprep.subr.mxu0 0.0
      %195 = vmatpush2.msra.mxu0 0.0
      %196 = vmatprep.subr.mxu0 0.0
      %197 = vmatpush2.msra.mxu0 0.0
      %198 = vmatprep.subr.mxu0 0.0
      %199 = vmatpush2.msra.mxu0 0.0
      %200 = vmatprep.subr.mxu0 0.0
      %201 = vmatpush2.msra.mxu0 0.0
      %202 = vmatprep.subr.mxu0 0.0
      %203 = vmatpush2.msra.mxu0 0.0
      %204 = vmatprep.subr.mxu0 0.0
      %205 = vmatpush2.msra.mxu0 0.0
      %206 = vmatprep.subr.mxu0 0.0
      %207 = vmatpush2.msra.mxu0 0.0
      %208 = vmatprep.subr.mxu0 0.0
      %209 = vmatpush2.msra.mxu0 0.0
      %210 = vmatprep.subr.mxu0 0.0
      %211 = vmatpush2.msra.mxu0 0.0
      %212 = vmatprep.subr.mxu0 0.0
      %213 = vmatpush2.msra.mxu0 0.0
      %214 = vmatprep.subr.mxu0 0.0
      %215 = vmatpush2.msra.mxu0 0.0
      %216 = vmatprep.subr.mxu0 0.0
      %217 = vmatpush2.msra.mxu0 0.0
      %218 = vmatprep.subr.mxu0 0.0
      %219 = vmatpush2.msra.mxu0 0.0
      %220 = vmatprep.mubr.f32.mxu0 0.0
      %221 = vmatmul.mubr.f32.gmra.mxu0 %v151
      %v222 = vpop.f32.mrf.mxu0
      %v223 = vadd.f32 0.0, %v222
      %v224 = vpop.f32.mrf.mxu0
      %225 = vdwg.mxu0
      %v226 = vsub.f32 %v64, %v223
      %v227 = vmul.f32 %v226, 50.0
      loop: start=0, step=1, limit=50
      $region25: #{dwloss_forward.5} parent=21 // loop_pre_header
        _
      $region26: #{dwloss_forward.5} parent=21 // loop_header
        %s229 = sphi 0, %s233
        %p230 = scmp.ge.s32.totalorder %s229, 50
        %v234 = vphi 0.0, %v249
        %v235 = vphi 0.0, %v271
      $region27: #{dwloss_forward.5} parent=21 // loop_header_branch
        %232 = sbr.rel (%p230) target = $region31
      $region28: #{dwloss_forward.5} parent=21 // loop_body
        %v236 = vsub.f32 %v235, %v227
        %v237 = vsel %vm22, %v236, -inf
        %238 = vmax.xlane.f32.xlu0 %v237
        %v239 = vpop.xlane.xlu0 %238
        %v240 = vsub.f32 %v236, %v239
        %v241 = vmul.f32 %v240, 1.442695
        %v242 = vpow.pop %v241
        %v243 = vsel %vm22, %v242, 0.0
        %244 = vadd.xlane.f32.xlu0 %v243
        %v245 = vpop.xlane.xlu0 %244
        %v246 = vlog2.pop %v245
        %v247 = vmul.f32 %v246, 0.6931472
        %v248 = vadd.f32 %v239, %v247
        %v249 = vsub.f32 -1.3862944, %v248
        %v250 = vsub.f32 %v249, %v227
        %v251 = vsel %vm22, %v250, -inf
        %v252 = vrot.slane %v251, 4
        %v253 = vmax.f32 %v251, %v252
        %v254 = vrot.slane %v253, 2
        %v255 = vmax.f32 %v253, %v254
        %v256 = vrot.slane %v255, 1
        %v257 = vmax.f32 %v255, %v256
        %v258 = vsub.f32 %v250, %v257
        %v259 = vmul.f32 %v258, 1.442695
        %v260 = vpow.pop %v259
        %v261 = vsel %vm22, %v260, 0.0
        %v262 = vrot.slane %v261, 4
        %v263 = vadd.f32 %v261, %v262
        %v264 = vrot.slane %v263, 2
        %v265 = vadd.f32 %v263, %v264
        %v266 = vrot.slane %v265, 1
        %v267 = vadd.f32 %v265, %v266
        %v268 = vlog2.pop %v267
        %v269 = vmul.f32 %v268, 0.6931472
        %v270 = vadd.f32 %v257, %v269
        %v271 = vsub.f32 -1.3862944, %v270
      $region29: #{dwloss_forward.5} parent=21 // loop_footer
        %s233 = sadd.s32 1, %s229
      $region30: #{dwloss_forward.5} parent=21 // loop_footer_branch
        %228 = sbr.rel target = $region26
      $region31: #{dwloss_forward.5} parent=21 // loop_exit
        _
      %v272 = vadd.f32 %v234, %v235
      %v273 = vsub.f32 %v272, %v227
      %v274 = vmul.f32 %v273, 1.442695
      %v275 = vpow.pop %v274
    $region22: #{dwloss_forward.5} parent=1 // loop_footer
      %s71 = sadd.s32 1, %s67
    $region23: #{dwloss_forward.5} parent=1 // loop_footer_branch
      %66 = sbr.rel target = $region19
    $region24: #{dwloss_forward.5} parent=1 // loop_exit
      _
    %vm276 = vcmask 31744
    %v278 = vsel %vm276, %v36, 0
    %v281 = vsel %vm26, %v72, 0
    %283 = vmatprep.subr.mxu0 0.0
    %284 = vmatpush1.msra.mxu0 0.0
    %285 = vmatprep.subr.mxu0 0.0
    %286 = vmatpush1.msra.mxu0 0.0
    %287 = vmatprep.subr.mxu0 0.0
    %288 = vmatpush1.msra.mxu0 0.0
    %289 = vmatprep.subr.mxu0 0.0
    %290 = vmatpush1.msra.mxu0 0.0
    %291 = vmatprep.subr.mxu0 0.0
    %292 = vmatpush1.msra.mxu0 0.0
    %293 = vmatprep.subr.mxu0 0.0
    %294 = vmatpush1.msra.mxu0 0.0
    %295 = vmatprep.subr.mxu0 0.0
    %296 = vmatpush1.msra.mxu0 0.0
    %297 = vmatprep.subr.mxu0 0.0
    %298 = vmatpush1.msra.mxu0 0.0
    %299 = vmatprep.subr.mxu0 0.0
    %300 = vmatpush1.msra.mxu0 0.0
    %301 = vmatprep.subr.mxu0 0.0
    %302 = vmatpush1.msra.mxu0 0.0
    %303 = vmatprep.subr.mxu0 0.0
    %304 = vmatpush1.msra.mxu0 0.0
    %305 = vmatprep.subr.mxu0 0.0
    %306 = vmatpush1.msra.mxu0 0.0
    %307 = vmatprep.subr.mxu0 0.0
    %308 = vmatpush1.msra.mxu0 0.0
    %309 = vmatprep.subr.mxu0 0.0
    %310 = vmatpush1.msra.mxu0 0.0
    %311 = vmatprep.subr.mxu0 0.0
    %312 = vmatpush1.msra.mxu0 0.0
    %313 = vmatprep.subr.mxu0 0.0
    %314 = vmatpush1.msra.mxu0 %v281
    %315 = vmatprep.subr.mxu0 0.0
    %316 = vmatpush2.msra.mxu0 0.0
    %317 = vmatprep.subr.mxu0 0.0
    %318 = vmatpush2.msra.mxu0 0.0
    %319 = vmatprep.subr.mxu0 0.0
    %320 = vmatpush2.msra.mxu0 0.0
    %321 = vmatprep.subr.mxu0 0.0
    %322 = vmatpush2.msra.mxu0 0.0
    %323 = vmatprep.subr.mxu0 0.0
    %324 = vmatpush2.msra.mxu0 0.0
    %325 = vmatprep.subr.mxu0 0.0
    %326 = vmatpush2.msra.mxu0 0.0
    %327 = vmatprep.subr.mxu0 0.0
    %328 = vmatpush2.msra.mxu0 0.0
    %329 = vmatprep.subr.mxu0 0.0
    %330 = vmatpush2.msra.mxu0 0.0
    %331 = vmatprep.subr.mxu0 0.0
    %332 = vmatpush2.msra.mxu0 0.0
    %333 = vmatprep.subr.mxu0 0.0
    %334 = vmatpush2.msra.mxu0 0.0
    %335 = vmatprep.subr.mxu0 0.0
    %336 = vmatpush2.msra.mxu0 0.0
    %337 = vmatprep.subr.mxu0 0.0
    %338 = vmatpush2.msra.mxu0 0.0
    %339 = vmatprep.subr.mxu0 0.0
    %340 = vmatpush2.msra.mxu0 0.0
    %341 = vmatprep.subr.mxu0 0.0
    %342 = vmatpush2.msra.mxu0 0.0
    %343 = vmatprep.subr.mxu0 0.0
    %344 = vmatpush2.msra.mxu0 0.0
    %345 = vmatprep.subr.mxu0 0.0
    %346 = vmatpush2.msra.mxu0 0.0
    %347 = vmatprep.mubr.f32.mxu0 0.0
    %348 = vmatmul.mubr.f32.gmra.mxu0 %v278
    %v349 = vpop.f32.mrf.mxu0
    %v350 = vadd.f32 0.0, %v349
    %v351 = vpop.f32.mrf.mxu0
    %352 = vdwg.mxu0
    %v354 = vsel %vm276, %v350, 0
    %v357 = vsel %vm26, %v65, 0
    %359 = vmatprep.subr.mxu0 0.0
    %360 = vmatpush1.msra.mxu0 0.0
    %361 = vmatprep.subr.mxu0 0.0
    %362 = vmatpush1.msra.mxu0 0.0
    %363 = vmatprep.subr.mxu0 0.0
    %364 = vmatpush1.msra.mxu0 0.0
    %365 = vmatprep.subr.mxu0 0.0
    %366 = vmatpush1.msra.mxu0 0.0
    %367 = vmatprep.subr.mxu0 0.0
    %368 = vmatpush1.msra.mxu0 0.0
    %369 = vmatprep.subr.mxu0 0.0
    %370 = vmatpush1.msra.mxu0 0.0
    %371 = vmatprep.subr.mxu0 0.0
    %372 = vmatpush1.msra.mxu0 0.0
    %373 = vmatprep.subr.mxu0 0.0
    %374 = vmatpush1.msra.mxu0 0.0
    %375 = vmatprep.subr.mxu0 0.0
    %376 = vmatpush1.msra.mxu0 0.0
    %377 = vmatprep.subr.mxu0 0.0
    %378 = vmatpush1.msra.mxu0 0.0
    %379 = vmatprep.subr.mxu0 0.0
    %380 = vmatpush1.msra.mxu0 0.0
    %381 = vmatprep.subr.mxu0 0.0
    %382 = vmatpush1.msra.mxu0 0.0
    %383 = vmatprep.subr.mxu0 0.0
    %384 = vmatpush1.msra.mxu0 0.0
    %385 = vmatprep.subr.mxu0 0.0
    %386 = vmatpush1.msra.mxu0 0.0
    %387 = vmatprep.subr.mxu0 0.0
    %388 = vmatpush1.msra.mxu0 0.0
    %389 = vmatprep.subr.mxu0 0.0
    %390 = vmatpush1.msra.mxu0 %v357
    %391 = vmatprep.subr.mxu0 0.0
    %392 = vmatpush2.msra.mxu0 0.0
    %393 = vmatprep.subr.mxu0 0.0
    %394 = vmatpush2.msra.mxu0 0.0
    %395 = vmatprep.subr.mxu0 0.0
    %396 = vmatpush2.msra.mxu0 0.0
    %397 = vmatprep.subr.mxu0 0.0
    %398 = vmatpush2.msra.mxu0 0.0
    %399 = vmatprep.subr.mxu0 0.0
    %400 = vmatpush2.msra.mxu0 0.0
    %401 = vmatprep.subr.mxu0 0.0
    %402 = vmatpush2.msra.mxu0 0.0
    %403 = vmatprep.subr.mxu0 0.0
    %404 = vmatpush2.msra.mxu0 0.0
    %405 = vmatprep.subr.mxu0 0.0
    %406 = vmatpush2.msra.mxu0 0.0
    %407 = vmatprep.subr.mxu0 0.0
    %408 = vmatpush2.msra.mxu0 0.0
    %409 = vmatprep.subr.mxu0 0.0
    %410 = vmatpush2.msra.mxu0 0.0
    %411 = vmatprep.subr.mxu0 0.0
    %412 = vmatpush2.msra.mxu0 0.0
    %413 = vmatprep.subr.mxu0 0.0
    %414 = vmatpush2.msra.mxu0 0.0
    %415 = vmatprep.subr.mxu0 0.0
    %416 = vmatpush2.msra.mxu0 0.0
    %417 = vmatprep.subr.mxu0 0.0
    %418 = vmatpush2.msra.mxu0 0.0
    %419 = vmatprep.subr.mxu0 0.0
    %420 = vmatpush2.msra.mxu0 0.0
    %421 = vmatprep.subr.mxu0 0.0
    %422 = vmatpush2.msra.mxu0 0.0
    %423 = vmatprep.mubr.f32.mxu0 0.0
    %424 = vmatmul.mubr.f32.gmra.mxu0 %v354
    %v425 = vpop.f32.mrf.mxu0
    %v426 = vadd.f32 0.0, %v425
    %v427 = vpop.f32.mrf.mxu0
    %428 = vdwg.mxu0
    %v429 = vsub.f32 %v64, %v426
    %v430 = vmul.f32 %v429, %v72
    %v431 = vsel %vm22, %v430, 0.0
    %432 = vadd.xlane.f32.xlu0 %v431
    %v433 = vpop.xlane.xlu0 %432
    %v434 = vsel %vm26, %v433, 0.0
    %v435 = vrot.slane %v434, 4
    %v436 = vadd.f32 %v434, %v435
    %v437 = vrot.slane %v436, 2
    %v438 = vadd.f32 %v436, %v437
    %v439 = vrot.slane %v438, 1
    %v440 = vadd.f32 %v438, %v439
    %v441 = vld [vmem:[#allocation2] sm:$0x1]
    %v442 = vld [vmem:[%s3] sm:$0xf]
    %v443 = vsub.f32 0.0, %v442
    %v444 = vmax.f32 %v443, 0.0
    %v445 = vand.u32 2147483647, %v442
    %v446 = vsub.f32 0.0, %v445
    %v447 = vmul.f32 %v446, 1.442695
    %v448 = vpow.pop %v447
    %v449 = vadd.f32 %v448, 1.0
    %v450 = vlog2.pop %v449
    %v451 = vmul.f32 %v450, 0.6931472
    %v452 = vadd.f32 %v444, %v451
    %v453 = vadd.f32 %v452, 0.0
    %vm454 = vcmask 3072
    %v455 = vsel %vm454, %v453, 0.0
    %v456 = vrot.slane %v455, 4
    %v457 = vadd.f32 %v455, %v456
    %v458 = vrot.slane %v457, 2
    %v459 = vadd.f32 %v457, %v458
    %v460 = vrot.slane %v459, 1
    %v461 = vadd.f32 %v459, %v460
    %v462 = vmul.f32 %v461, 0.25
    %v463 = vmul.f32 %v440, 10.0
    %v464 = vmul.f32 %v441, 10.0
    %v465 = vmul.f32 %v462, 10.0
    %v466 = vmax.f32 %v463, %v464
    %v467 = vmax.f32 %v466, %v465
    %v468 = vsub.f32 %v463, %v467
    %v469 = vmul.f32 %v468, 1.442695
    %v470 = vpow.pop %v469
    %v471 = vsub.f32 %v464, %v467
    %v472 = vmul.f32 %v471, 1.442695
    %v473 = vpow.pop %v472
    %v474 = vsub.f32 %v465, %v467
    %v475 = vmul.f32 %v474, 1.442695
    %v476 = vpow.pop %v475
    %v477 = vmul.f32 %v440, %v470
    %v478 = vmul.f32 %v441, %v473
    %v479 = vadd.f32 %v477, %v478
    %v480 = vmul.f32 %v462, %v476
    %v481 = vadd.f32 %v479, %v480
    %v482 = vadd.f32 %v470, %v473
    %v483 = vadd.f32 %v482, %v476
    %v484 = vrcp.pop %v483
    %v485 = vmul.f32 %v481, %v484
    %vm486 = vcmask 0
    %487 = vst.msk [vmem:[#allocation3] sm:$0x1] %vm486, %v485
    // Predicated region
    $region32: #{dwloss_forward.5} parent=1 // pred_check
      _
    $region33: #{dwloss_forward.5} parent=1 // pred_check_branch
      %489 = sbr.rel (0) target = $region35
    $region34: #{dwloss_forward.5} parent=1 // pred_region
      %s491 = ssub.s32 16, 16
      %492 = vsyncadd [#allocation4], %s491
      %s494 = sshll.u32 [#allocation3], 4
      %s495 = int_to_ptr.vmem [resolvable:$true] %s494
      %497 = dma.vmem_to_hbm [thread:$0]  %s495, 16, %s4, [#allocation4]
    $region35: #{dwloss_forward.5} parent=1 // pred_fallthru
      _
    // Predicated region
    $region36: #{dwloss_forward.5} parent=1 // pred_check
      _
    $region37: #{dwloss_forward.5} parent=1 // pred_check_branch
      %499 = sbr.rel (0) target = $region39
    $region38: #{dwloss_forward.5} parent=1 // pred_region
      %500 = dma.done [#allocation4], 16
    $region39: #{dwloss_forward.5} parent=1 // pred_fallthru
      _
    %501 = vsyncpa [#allocation4], 1

// kernel: dwloss_forward.4
$region0: #{dwloss_forward.4}
  #allocation0 [shape = 'u32[]', space=smem, size = 0x4, offset = 0x4, fixed_abs, tag = 'smem constant byte address 0x4 - core index']
  #allocation1 [shape = 'u32[144,128]{1,0:T(1,128)}', space=vmem, size = 0x12000, scoped, tag = 'internal scratch']
  #allocation2 [shape = 'f32[4,4]{1,0:T(4,128)}', space=vmem, size = 0x800, scoped, tag = 'scratch operand']
  #allocation3 [shape = 'f32[1,1]{1,0:T(1,128)}', space=vmem, size = 0x200, scoped, tag = 'scratch operand']
  %s0 = inlined_call_operand.vmem [shape: f32[4,3072], index: 0, kind: input, shape index: {}]
  %s1 = inlined_call_operand.vmem [shape: f32[4,3072], index: 1, kind: input, shape index: {}]
  %s2 = inlined_call_operand.vmem [shape: f32[4,4], index: 2, kind: output, shape index: {0}]
  %s3 = inlined_call_operand.hbm [shape: f32[1,1], index: 3, kind: output, shape index: {1}]
  %4 = xla_tuple %s2, %s3
  %s5 = sld [smem:[#allocation0]]
  $region34: #{dwloss_forward.4} parent=0
    _
  %s7 = ssub.s32 1, %s5
  %s8 = scalar_select 0, %s7, %s5
  $region1: #{dwloss_forward.4} parent=0
    #allocation4 [shape = 'u8[512]{0}', space=vmem, size = 0x400, scoped, tag = 'output window, operand 1, single buffered']
    #allocation5 [shape = 's32[1]{0}', space=sflag, size = 0x4, scoped, tag = 'scoped memory for dwloss_forward.4']
    %9 = vsyncpa [#allocation5], 0
    // Predicated region
    $region2: #{dwloss_forward.4} parent=1 // pred_check
      _
    $region3: #{dwloss_forward.4} parent=1 // pred_check_branch
      %11 = sbr.rel (0) target = $region5
    $region4: #{dwloss_forward.4} parent=1 // pred_region
      _
    $region5: #{dwloss_forward.4} parent=1 // pred_fallthru
      _
    // Predicated region
    $region6: #{dwloss_forward.4} parent=1 // pred_check
      _
    $region7: #{dwloss_forward.4} parent=1 // pred_check_branch
      %13 = sbr.rel (0) target = $region9
    $region8: #{dwloss_forward.4} parent=1 // pred_region
      _
    $region9: #{dwloss_forward.4} parent=1 // pred_fallthru
      _
    %p14 = scmp.eq.s32.totalorder 0, 0
    // Predicated region
    $region10: #{dwloss_forward.4} parent=1 // pred_check
      %p15 = pneg %p14
    $region11: #{dwloss_forward.4} parent=1 // pred_check_branch
      %17 = sbr.rel (%p15) target = $region13
    $region12: #{dwloss_forward.4} parent=1 // pred_region
      %vm18 = vcmask 27648
      %19 = vst.msk [vmem:[#allocation2] sm:$0xf] %vm18, 0.0
      %vm20 = vcmask 0
      %21 = vst.msk [vmem:[#allocation3] sm:$0x1] %vm20, 0.0
    $region13: #{dwloss_forward.4} parent=1 // pred_fallthru
      _
    %v22 = vld [vmem:[%s0] sm:$0xff]
    %v23 = vld [vmem:[%s0 + $0x8] sm:$0xff]
    %v24 = vld [vmem:[%s0 + $0x10] sm:$0xff]
    %v25 = vld [vmem:[%s0 + $0x18] sm:$0xff]
    %v26 = vld [vmem:[%s0 + $0x20] sm:$0xff]
    %v27 = vld [vmem:[%s0 + $0x28] sm:$0xff]
    %v28 = vld [vmem:[%s0 + $0x30] sm:$0xff]
    %v29 = vld [vmem:[%s0 + $0x38] sm:$0xff]
    %v30 = vld [vmem:[%s0 + $0x40] sm:$0xff]
    %v31 = vld [vmem:[%s0 + $0x48] sm:$0xff]
    %v32 = vld [vmem:[%s0 + $0x50] sm:$0xff]
    %v33 = vld [vmem:[%s0 + $0x58] sm:$0xff]
    %v34 = vld [vmem:[%s1] sm:$0xff]
    %v35 = vld [vmem:[%s1 + $0x8] sm:$0xff]
    %v36 = vld [vmem:[%s1 + $0x10] sm:$0xff]
    %v37 = vld [vmem:[%s1 + $0x18] sm:$0xff]
    %v38 = vld [vmem:[%s1 + $0x20] sm:$0xff]
    %v39 = vld [vmem:[%s1 + $0x28] sm:$0xff]
    %v40 = vld [vmem:[%s1 + $0x30] sm:$0xff]
    %v41 = vld [vmem:[%s1 + $0x38] sm:$0xff]
    %v42 = vld [vmem:[%s1 + $0x40] sm:$0xff]
    %v43 = vld [vmem:[%s1 + $0x48] sm:$0xff]
    %v44 = vld [vmem:[%s1 + $0x50] sm:$0xff]
    %v45 = vld [vmem:[%s1 + $0x58] sm:$0xff]
    %v46 = vld [vmem:[#allocation2] sm:$0xf]
    %v59 = vcombine.high %v22, %v22
    %v60 = vcombine.high %v23, %v23
    %v61 = vcombine.high %v24, %v24
    %v62 = vcombine.high %v25, %v25
    %v63 = vcombine.high %v26, %v26
    %v64 = vcombine.high %v27, %v27
    %v65 = vcombine.high %v28, %v28
    %v66 = vcombine.high %v29, %v29
    %v67 = vcombine.high %v30, %v30
    %v68 = vcombine.high %v31, %v31
    %v69 = vcombine.high %v32, %v32
    %v70 = vcombine.high %v33, %v33
    %83 = vmatprep.subr.mxu0 0.0
    %84 = vmatpush1.xpose.msra.mxu0 0.0
    %85 = vmatprep.subr.mxu0 0.0
    %86 = vmatpush1.xpose.msra.mxu0 0.0
    %87 = vmatprep.subr.mxu0 0.0
    %88 = vmatpush1.xpose.msra.mxu0 0.0
    %89 = vmatprep.subr.mxu0 0.0
    %90 = vmatpush1.xpose.msra.mxu0 0.0
    %91 = vmatprep.subr.mxu0 0.0
    %92 = vmatpush1.xpose.msra.mxu0 0.0
    %93 = vmatprep.subr.mxu0 0.0
    %94 = vmatpush1.xpose.msra.mxu0 0.0
    %95 = vmatprep.subr.mxu0 0.0
    %96 = vmatpush1.xpose.msra.mxu0 0.0
    %97 = vmatprep.subr.mxu0 0.0
    %98 = vmatpush1.xpose.msra.mxu0 0.0
    %99 = vmatprep.subr.mxu0 0.0
    %100 = vmatpush1.xpose.msra.mxu0 0.0
    %101 = vmatprep.subr.mxu0 0.0
    %102 = vmatpush1.xpose.msra.mxu0 0.0
    %103 = vmatprep.subr.mxu0 0.0
    %104 = vmatpush1.xpose.msra.mxu0 0.0
    %105 = vmatprep.subr.mxu0 0.0
    %106 = vmatpush1.xpose.msra.mxu0 0.0
    %107 = vmatprep.subr.mxu0 0.0
    %108 = vmatpush1.xpose.msra.mxu0 0.0
    %109 = vmatprep.subr.mxu0 0.0
    %110 = vmatpush1.xpose.msra.mxu0 0.0
    %111 = vmatprep.subr.mxu0 0.0
    %112 = vmatpush1.xpose.msra.mxu0 0.0
    %113 = vmatprep.subr.mxu0 %v59
    %114 = vmatpush1.xpose.msra.mxu0 %v22
    %115 = vmatprep.subr.mxu0 0.0
    %116 = vmatpush2.xpose.msra.mxu0 0.0
    %117 = vmatprep.subr.mxu0 0.0
    %118 = vmatpush2.xpose.msra.mxu0 0.0
    %119 = vmatprep.subr.mxu0 0.0
    %120 = vmatpush2.xpose.msra.mxu0 0.0
    %121 = vmatprep.subr.mxu0 0.0
    %122 = vmatpush2.xpose.msra.mxu0 0.0
    %123 = vmatprep.subr.mxu0 0.0
    %124 = vmatpush2.xpose.msra.mxu0 0.0
    %125 = vmatprep.subr.mxu0 0.0
    %126 = vmatpush2.xpose.msra.mxu0 0.0
    %127 = vmatprep.subr.mxu0 0.0
    %128 = vmatpush2.xpose.msra.mxu0 0.0
    %129 = vmatprep.subr.mxu0 0.0
    %130 = vmatpush2.xpose.msra.mxu0 0.0
    %131 = vmatprep.subr.mxu0 0.0
    %132 = vmatpush2.xpose.msra.mxu0 0.0
    %133 = vmatprep.subr.mxu0 0.0
    %134 = vmatpush2.xpose.msra.mxu0 0.0
    %135 = vmatprep.subr.mxu0 0.0
    %136 = vmatpush2.xpose.msra.mxu0 0.0
    %137 = vmatprep.subr.mxu0 0.0
    %138 = vmatpush2.xpose.msra.mxu0 0.0
    %139 = vmatprep.subr.mxu0 0.0
    %140 = vmatpush2.xpose.msra.mxu0 0.0
    %141 = vmatprep.subr.mxu0 0.0
    %142 = vmatpush2.xpose.msra.mxu0 0.0
    %143 = vmatprep.subr.mxu0 0.0
    %144 = vmatpush2.xpose.msra.mxu0 0.0
    %145 = vmatprep.subr.mxu0 0.0
    %146 = vmatpush2.xpose.msra.mxu0 0.0
    %147 = vmatprep.mubr.f32.mxu0 %v59
    %148 = vmatmul.mubr.f32.gmra.mxu0 %v22
    %v149 = vpop.f32.mrf.mxu0
    %v150 = vadd.f32 0.0, %v149
    %v151 = vpop.f32.mrf.mxu0
    %152 = vdwg.mxu0
    %153 = vmatprep.subr.mxu0 0.0
    %154 = vmatpush1.xpose.msra.mxu0 0.0
    %155 = vmatprep.subr.mxu0 0.0
    %156 = vmatpush1.xpose.msra.mxu0 0.0
    %157 = vmatprep.subr.mxu0 0.0
    %158 = vmatpush1.xpose.msra.mxu0 0.0
    %159 = vmatprep.subr.mxu0 0.0
    %160 = vmatpush1.xpose.msra.mxu0 0.0
    %161 = vmatprep.subr.mxu0 0.0
    %162 = vmatpush1.xpose.msra.mxu0 0.0
    %163 = vmatprep.subr.mxu0 0.0
    %164 = vmatpush1.xpose.msra.mxu0 0.0
    %165 = vmatprep.subr.mxu0 0.0
    %166 = vmatpush1.xpose.msra.mxu0 0.0
    %167 = vmatprep.subr.mxu0 0.0
    %168 = vmatpush1.xpose.msra.mxu0 0.0
    %169 = vmatprep.subr.mxu0 0.0
    %170 = vmatpush1.xpose.msra.mxu0 0.0
    %171 = vmatprep.subr.mxu0 0.0
    %172 = vmatpush1.xpose.msra.mxu0 0.0
    %173 = vmatprep.subr.mxu0 0.0
    %174 = vmatpush1.xpose.msra.mxu0 0.0
    %175 = vmatprep.subr.mxu0 0.0
    %176 = vmatpush1.xpose.msra.mxu0 0.0
    %177 = vmatprep.subr.mxu0 0.0
    %178 = vmatpush1.xpose.msra.mxu0 0.0
    %179 = vmatprep.subr.mxu0 0.0
    %180 = vmatpush1.xpose.msra.mxu0 0.0
    %181 = vmatprep.subr.mxu0 0.0
    %182 = vmatpush1.xpose.msra.mxu0 0.0
    %183 = vmatprep.subr.mxu0 %v60
    %184 = vmatpush1.xpose.msra.mxu0 %v23
    %185 = vmatprep.subr.mxu0 0.0
    %186 = vmatpush2.xpose.msra.mxu0 0.0
    %187 = vmatprep.subr.mxu0 0.0
    %188 = vmatpush2.xpose.msra.mxu0 0.0
    %189 = vmatprep.subr.mxu0 0.0
    %190 = vmatpush2.xpose.msra.mxu0 0.0
    %191 = vmatprep.subr.mxu0 0.0
    %192 = vmatpush2.xpose.msra.mxu0 0.0
    %193 = vmatprep.subr.mxu0 0.0
    %194 = vmatpush2.xpose.msra.mxu0 0.0
    %195 = vmatprep.subr.mxu0 0.0
    %196 = vmatpush2.xpose.msra.mxu0 0.0
    %197 = vmatprep.subr.mxu0 0.0
    %198 = vmatpush2.xpose.msra.mxu0 0.0
    %199 = vmatprep.subr.mxu0 0.0
    %200 = vmatpush2.xpose.msra.mxu0 0.0
    %201 = vmatprep.subr.mxu0 0.0
    %202 = vmatpush2.xpose.msra.mxu0 0.0
    %203 = vmatprep.subr.mxu0 0.0
    %204 = vmatpush2.xpose.msra.mxu0 0.0
    %205 = vmatprep.subr.mxu0 0.0
    %206 = vmatpush2.xpose.msra.mxu0 0.0
    %207 = vmatprep.subr.mxu0 0.0
    %208 = vmatpush2.xpose.msra.mxu0 0.0
    %209 = vmatprep.subr.mxu0 0.0
    %210 = vmatpush2.xpose.msra.mxu0 0.0
    %211 = vmatprep.subr.mxu0 0.0
    %212 = vmatpush2.xpose.msra.mxu0 0.0
    %213 = vmatprep.subr.mxu0 0.0
    %214 = vmatpush2.xpose.msra.mxu0 0.0
    %215 = vmatprep.subr.mxu0 0.0
    %216 = vmatpush2.xpose.msra.mxu0 0.0
    %217 = vmatprep.mubr.f32.mxu0 %v60
    %218 = vmatmul.mubr.f32.gmra.mxu0 %v23
    %v219 = vpop.f32.mrf.mxu0
    %v220 = vadd.f32 %v150, %v219
    %v221 = vpop.f32.mrf.mxu0
    %222 = vdwg.mxu0
    %223 = vmatprep.subr.mxu0 0.0
    %224 = vmatpush1.xpose.msra.mxu0 0.0
    %225 = vmatprep.subr.mxu0 0.0
    %226 = vmatpush1.xpose.msra.mxu0 0.0
    %227 = vmatprep.subr.mxu0 0.0
    %228 = vmatpush1.xpose.msra.mxu0 0.0
    %229 = vmatprep.subr.mxu0 0.0
    %230 = vmatpush1.xpose.msra.mxu0 0.0
    %231 = vmatprep.subr.mxu0 0.0
    %232 = vmatpush1.xpose.msra.mxu0 0.0
    %233 = vmatprep.subr.mxu0 0.0
    %234 = vmatpush1.xpose.msra.mxu0 0.0
    %235 = vmatprep.subr.mxu0 0.0
    %236 = vmatpush1.xpose.msra.mxu0 0.0
    %237 = vmatprep.subr.mxu0 0.0
    %238 = vmatpush1.xpose.msra.mxu0 0.0
    %239 = vmatprep.subr.mxu0 0.0
    %240 = vmatpush1.xpose.msra.mxu0 0.0
    %241 = vmatprep.subr.mxu0 0.0
    %242 = vmatpush1.xpose.msra.mxu0 0.0
    %243 = vmatprep.subr.mxu0 0.0
    %244 = vmatpush1.xpose.msra.mxu0 0.0
    %245 = vmatprep.subr.mxu0 0.0
    %246 = vmatpush1.xpose.msra.mxu0 0.0
    %247 = vmatprep.subr.mxu0 0.0
    %248 = vmatpush1.xpose.msra.mxu0 0.0
    %249 = vmatprep.subr.mxu0 0.0
    %250 = vmatpush1.xpose.msra.mxu0 0.0
    %251 = vmatprep.subr.mxu0 0.0
    %252 = vmatpush1.xpose.msra.mxu0 0.0
    %253 = vmatprep.subr.mxu0 %v61
    %254 = vmatpush1.xpose.msra.mxu0 %v24
    %255 = vmatprep.subr.mxu0 0.0
    %256 = vmatpush2.xpose.msra.mxu0 0.0
    %257 = vmatprep.subr.mxu0 0.0
    %258 = vmatpush2.xpose.msra.mxu0 0.0
    %259 = vmatprep.subr.mxu0 0.0
    %260 = vmatpush2.xpose.msra.mxu0 0.0
    %261 = vmatprep.subr.mxu0 0.0
    %262 = vmatpush2.xpose.msra.mxu0 0.0
    %263 = vmatprep.subr.mxu0 0.0
    %264 = vmatpush2.xpose.msra.mxu0 0.0
    %265 = vmatprep.subr.mxu0 0.0
    %266 = vmatpush2.xpose.msra.mxu0 0.0
    %267 = vmatprep.subr.mxu0 0.0
    %268 = vmatpush2.xpose.msra.mxu0 0.0
    %269 = vmatprep.subr.mxu0 0.0
    %270 = vmatpush2.xpose.msra.mxu0 0.0
    %271 = vmatprep.subr.mxu0 0.0
    %272 = vmatpush2.xpose.msra.mxu0 0.0
    %273 = vmatprep.subr.mxu0 0.0
    %274 = vmatpush2.xpose.msra.mxu0 0.0
    %275 = vmatprep.subr.mxu0 0.0
    %276 = vmatpush2.xpose.msra.mxu0 0.0
    %277 = vmatprep.subr.mxu0 0.0
    %278 = vmatpush2.xpose.msra.mxu0 0.0
    %279 = vmatprep.subr.mxu0 0.0
    %280 = vmatpush2.xpose.msra.mxu0 0.0
    %281 = vmatprep.subr.mxu0 0.0
    %282 = vmatpush2.xpose.msra.mxu0 0.0
    %283 = vmatprep.subr.mxu0 0.0
    %284 = vmatpush2.xpose.msra.mxu0 0.0
    %285 = vmatprep.subr.mxu0 0.0
    %286 = vmatpush2.xpose.msra.mxu0 0.0
    %287 = vmatprep.mubr.f32.mxu0 %v61
    %288 = vmatmul.mubr.f32.gmra.mxu0 %v24
    %v289 = vpop.f32.mrf.mxu0
    %v290 = vadd.f32 %v220, %v289
    %v291 = vpop.f32.mrf.mxu0
    %292 = vdwg.mxu0
    %293 = vmatprep.subr.mxu0 0.0
    %294 = vmatpush1.xpose.msra.mxu0 0.0
    %295 = vmatprep.subr.mxu0 0.0
    %296 = vmatpush1.xpose.msra.mxu0 0.0
    %297 = vmatprep.subr.mxu0 0.0
    %298 = vmatpush1.xpose.msra.mxu0 0.0
    %299 = vmatprep.subr.mxu0 0.0
    %300 = vmatpush1.xpose.msra.mxu0 0.0
    %301 = vmatprep.subr.mxu0 0.0
    %302 = vmatpush1.xpose.msra.mxu0 0.0
    %303 = vmatprep.subr.mxu0 0.0
    %304 = vmatpush1.xpose.msra.mxu0 0.0
    %305 = vmatprep.subr.mxu0 0.0
    %306 = vmatpush1.xpose.msra.mxu0 0.0
    %307 = vmatprep.subr.mxu0 0.0
    %308 = vmatpush1.xpose.msra.mxu0 0.0
    %309 = vmatprep.subr.mxu0 0.0
    %310 = vmatpush1.xpose.msra.mxu0 0.0
    %311 = vmatprep.subr.mxu0 0.0
    %312 = vmatpush1.xpose.msra.mxu0 0.0
    %313 = vmatprep.subr.mxu0 0.0
    %314 = vmatpush1.xpose.msra.mxu0 0.0
    %315 = vmatprep.subr.mxu0 0.0
    %316 = vmatpush1.xpose.msra.mxu0 0.0
    %317 = vmatprep.subr.mxu0 0.0
    %318 = vmatpush1.xpose.msra.mxu0 0.0
    %319 = vmatprep.subr.mxu0 0.0
    %320 = vmatpush1.xpose.msra.mxu0 0.0
    %321 = vmatprep.subr.mxu0 0.0
    %322 = vmatpush1.xpose.msra.mxu0 0.0
    %323 = vmatprep.subr.mxu0 %v62
    %324 = vmatpush1.xpose.msra.mxu0 %v25
    %325 = vmatprep.subr.mxu0 0.0
    %326 = vmatpush2.xpose.msra.mxu0 0.0
    %327 = vmatprep.subr.mxu0 0.0
    %328 = vmatpush2.xpose.msra.mxu0 0.0
    %329 = vmatprep.subr.mxu0 0.0
    %330 = vmatpush2.xpose.msra.mxu0 0.0
    %331 = vmatprep.subr.mxu0 0.0
    %332 = vmatpush2.xpose.msra.mxu0 0.0
    %333 = vmatprep.subr.mxu0 0.0
    %334 = vmatpush2.xpose.msra.mxu0 0.0
    %335 = vmatprep.subr.mxu0 0.0
    %336 = vmatpush2.xpose.msra.mxu0 0.0
    %337 = vmatprep.subr.mxu0 0.0
    %338 = vmatpush2.xpose.msra.mxu0 0.0
    %339 = vmatprep.subr.mxu0 0.0
    %340 = vmatpush2.xpose.msra.mxu0 0.0
    %341 = vmatprep.subr.mxu0 0.0
    %342 = vmatpush2.xpose.msra.mxu0 0.0
    %343 = vmatprep.subr.mxu0 0.0
    %344 = vmatpush2.xpose.msra.mxu0 0.0
    %345 = vmatprep.subr.mxu0 0.0
    %346 = vmatpush2.xpose.msra.mxu0 0.0
    %347 = vmatprep.subr.mxu0 0.0
    %348 = vmatpush2.xpose.msra.mxu0 0.0
    %349 = vmatprep.subr.mxu0 0.0
    %350 = vmatpush2.xpose.msra.mxu0 0.0
    %351 = vmatprep.subr.mxu0 0.0
    %352 = vmatpush2.xpose.msra.mxu0 0.0
    %353 = vmatprep.subr.mxu0 0.0
    %354 = vmatpush2.xpose.msra.mxu0 0.0
    %355 = vmatprep.subr.mxu0 0.0
    %356 = vmatpush2.xpose.msra.mxu0 0.0
    %357 = vmatprep.mubr.f32.mxu0 %v62
    %358 = vmatmul.mubr.f32.gmra.mxu0 %v25
    %v359 = vpop.f32.mrf.mxu0
    %v360 = vadd.f32 %v290, %v359
    %v361 = vpop.f32.mrf.mxu0
    %362 = vdwg.mxu0
    %363 = vmatprep.subr.mxu0 0.0
    %364 = vmatpush1.xpose.msra.mxu0 0.0
    %365 = vmatprep.subr.mxu0 0.0
    %366 = vmatpush1.xpose.msra.mxu0 0.0
    %367 = vmatprep.subr.mxu0 0.0
    %368 = vmatpush1.xpose.msra.mxu0 0.0
    %369 = vmatprep.subr.mxu0 0.0
    %370 = vmatpush1.xpose.msra.mxu0 0.0
    %371 = vmatprep.subr.mxu0 0.0
    %372 = vmatpush1.xpose.msra.mxu0 0.0
    %373 = vmatprep.subr.mxu0 0.0
    %374 = vmatpush1.xpose.msra.mxu0 0.0
    %375 = vmatprep.subr.mxu0 0.0
    %376 = vmatpush1.xpose.msra.mxu0 0.0
    %377 = vmatprep.subr.mxu0 0.0
    %378 = vmatpush1.xpose.msra.mxu0 0.0
    %379 = vmatprep.subr.mxu0 0.0
    %380 = vmatpush1.xpose.msra.mxu0 0.0
    %381 = vmatprep.subr.mxu0 0.0
    %382 = vmatpush1.xpose.msra.mxu0 0.0
    %383 = vmatprep.subr.mxu0 0.0
    %384 = vmatpush1.xpose.msra.mxu0 0.0
    %385 = vmatprep.subr.mxu0 0.0
    %386 = vmatpush1.xpose.msra.mxu0 0.0
    %387 = vmatprep.subr.mxu0 0.0
    %388 = vmatpush1.xpose.msra.mxu0 0.0
    %389 = vmatprep.subr.mxu0 0.0
    %390 = vmatpush1.xpose.msra.mxu0 0.0
    %391 = vmatprep.subr.mxu0 0.0
    %392 = vmatpush1.xpose.msra.mxu0 0.0
    %393 = vmatprep.subr.mxu0 %v63
    %394 = vmatpush1.xpose.msra.mxu0 %v26
    %395 = vmatprep.subr.mxu0 0.0
    %396 = vmatpush2.xpose.msra.mxu0 0.0
    %397 = vmatprep.subr.mxu0 0.0
    %398 = vmatpush2.xpose.msra.mxu0 0.0
    %399 = vmatprep.subr.mxu0 0.0
    %400 = vmatpush2.xpose.msra.mxu0 0.0
    %401 = vmatprep.subr.mxu0 0.0
    %402 = vmatpush2.xpose.msra.mxu0 0.0
    %403 = vmatprep.subr.mxu0 0.0
    %404 = vmatpush2.xpose.msra.mxu0 0.0
    %405 = vmatprep.subr.mxu0 0.0
    %406 = vmatpush2.xpose.msra.mxu0 0.0
    %407 = vmatprep.subr.mxu0 0.0
    %408 = vmatpush2.xpose.msra.mxu0 0.0
    %409 = vmatprep.subr.mxu0 0.0
    %410 = vmatpush2.xpose.msra.mxu0 0.0
    %411 = vmatprep.subr.mxu0 0.0
    %412 = vmatpush2.xpose.msra.mxu0 0.0
    %413 = vmatprep.subr.mxu0 0.0
    %414 = vmatpush2.xpose.msra.mxu0 0.0
    %415 = vmatprep.subr.mxu0 0.0
    %416 = vmatpush2.xpose.msra.mxu0 0.0
    %417 = vmatprep.subr.mxu0 0.0
    %418 = vmatpush2.xpose.msra.mxu0 0.0
    %419 = vmatprep.subr.mxu0 0.0
    %420 = vmatpush2.xpose.msra.mxu0 0.0
    %421 = vmatprep.subr.mxu0 0.0
    %422 = vmatpush2.xpose.msra.mxu0 0.0
    %423 = vmatprep.subr.mxu0 0.0
    %424 = vmatpush2.xpose.msra.mxu0 0.0
    %425 = vmatprep.subr.mxu0 0.0
    %426 = vmatpush2.xpose.msra.mxu0 0.0
    %427 = vmatprep.mubr.f32.mxu0 %v63
    %428 = vmatmul.mubr.f32.gmra.mxu0 %v26
    %v429 = vpop.f32.mrf.mxu0
    %v430 = vadd.f32 %v360, %v429
    %v431 = vpop.f32.mrf.mxu0
    %432 = vdwg.mxu0
    %433 = vmatprep.subr.mxu0 0.0
    %434 = vmatpush1.xpose.msra.mxu0 0.0
    %435 = vmatprep.subr.mxu0 0.0
    %436 = vmatpush1.xpose.msra.mxu0 0.0
    %437 = vmatprep.subr.mxu0 0.0
    %438 = vmatpush1.xpose.msra.mxu0 0.0
    %439 = vmatprep.subr.mxu0 0.0
    %440 = vmatpush1.xpose.msra.mxu0 0.0
    %441 = vmatprep.subr.mxu0 0.0
    %442 = vmatpush1.xpose.msra.mxu0 0.0
    %443 = vmatprep.subr.mxu0 0.0
    %444 = vmatpush1.xpose.msra.mxu0 0.0
    %445 = vmatprep.subr.mxu0 0.0
    %446 = vmatpush1.xpose.msra.mxu0 0.0
    %447 = vmatprep.subr.mxu0 0.0
    %448 = vmatpush1.xpose.msra.mxu0 0.0
    %449 = vmatprep.subr.mxu0 0.0
    %450 = vmatpush1.xpose.msra.mxu0 0.0
    %451 = vmatprep.subr.mxu0 0.0
    %452 = vmatpush1.xpose.msra.mxu0 0.0
    %453 = vmatprep.subr.mxu0 0.0
    %454 = vmatpush1.xpose.msra.mxu0 0.0
    %455 = vmatprep.subr.mxu0 0.0
    %456 = vmatpush1.xpose.msra.mxu0 0.0
    %457 = vmatprep.subr.mxu0 0.0
    %458 = vmatpush1.xpose.msra.mxu0 0.0
    %459 = vmatprep.subr.mxu0 0.0
    %460 = vmatpush1.xpose.msra.mxu0 0.0
    %461 = vmatprep.subr.mxu0 0.0
    %462 = vmatpush1.xpose.msra.mxu0 0.0
    %463 = vmatprep.subr.mxu0 %v64
    %464 = vmatpush1.xpose.msra.mxu0 %v27
    %465 = vmatprep.subr.mxu0 0.0
    %466 = vmatpush2.xpose.msra.mxu0 0.0
    %467 = vmatprep.subr.mxu0 0.0
    %468 = vmatpush2.xpose.msra.mxu0 0.0
    %469 = vmatprep.subr.mxu0 0.0
    %470 = vmatpush2.xpose.msra.mxu0 0.0
    %471 = vmatprep.subr.mxu0 0.0
    %472 = vmatpush2.xpose.msra.mxu0 0.0
    %473 = vmatprep.subr.mxu0 0.0
    %474 = vmatpush2.xpose.msra.mxu0 0.0
    %475 = vmatprep.subr.mxu0 0.0
    %476 = vmatpush2.xpose.msra.mxu0 0.0
    %477 = vmatprep.subr.mxu0 0.0
    %478 = vmatpush2.xpose.msra.mxu0 0.0
    %479 = vmatprep.subr.mxu0 0.0
    %480 = vmatpush2.xpose.msra.mxu0 0.0
    %481 = vmatprep.subr.mxu0 0.0
    %482 = vmatpush2.xpose.msra.mxu0 0.0
    %483 = vmatprep.subr.mxu0 0.0
    %484 = vmatpush2.xpose.msra.mxu0 0.0
    %485 = vmatprep.subr.mxu0 0.0
    %486 = vmatpush2.xpose.msra.mxu0 0.0
    %487 = vmatprep.subr.mxu0 0.0
    %488 = vmatpush2.xpose.msra.mxu0 0.0
    %489 = vmatprep.subr.mxu0 0.0
    %490 = vmatpush2.xpose.msra.mxu0 0.0
    %491 = vmatprep.subr.mxu0 0.0
    %492 = vmatpush2.xpose.msra.mxu0 0.0
    %493 = vmatprep.subr.mxu0 0.0
    %494 = vmatpush2.xpose.msra.mxu0 0.0
    %495 = vmatprep.subr.mxu0 0.0
    %496 = vmatpush2.xpose.msra.mxu0 0.0
    %497 = vmatprep.mubr.f32.mxu0 %v64
    %498 = vmatmul.mubr.f32.gmra.mxu0 %v27
    %v499 = vpop.f32.mrf.mxu0
    %v500 = vadd.f32 %v430, %v499
    %v501 = vpop.f32.mrf.mxu0
    %502 = vdwg.mxu0
    %503 = vmatprep.subr.mxu0 0.0
    %504 = vmatpush1.xpose.msra.mxu0 0.0
    %505 = vmatprep.subr.mxu0 0.0
    %506 = vmatpush1.xpose.msra.mxu0 0.0
    %507 = vmatprep.subr.mxu0 0.0
    %508 = vmatpush1.xpose.msra.mxu0 0.0
    %509 = vmatprep.subr.mxu0 0.0
    %510 = vmatpush1.xpose.msra.mxu0 0.0
    %511 = vmatprep.subr.mxu0 0.0
    %512 = vmatpush1.xpose.msra.mxu0 0.0
    %513 = vmatprep.subr.mxu0 0.0
    %514 = vmatpush1.xpose.msra.mxu0 0.0
    %515 = vmatprep.subr.mxu0 0.0
    %516 = vmatpush1.xpose.msra.mxu0 0.0
    %517 = vmatprep.subr.mxu0 0.0
    %518 = vmatpush1.xpose.msra.mxu0 0.0
    %519 = vmatprep.subr.mxu0 0.0
    %520 = vmatpush1.xpose.msra.mxu0 0.0
    %521 = vmatprep.subr.mxu0 0.0
    %522 = vmatpush1.xpose.msra.mxu0 0.0
    %523 = vmatprep.subr.mxu0 0.0
    %524 = vmatpush1.xpose.msra.mxu0 0.0
    %525 = vmatprep.subr.mxu0 0.0
    %526 = vmatpush1.xpose.msra.mxu0 0.0
    %527 = vmatprep.subr.mxu0 0.0
    %528 = vmatpush1.xpose.msra.mxu0 0.0
    %529 = vmatprep.subr.mxu0 0.0
    %530 = vmatpush1.xpose.msra.mxu0 0.0
    %531 = vmatprep.subr.mxu0 0.0
    %532 = vmatpush1.xpose.msra.mxu0 0.0
    %533 = vmatprep.subr.mxu0 %v65
    %534 = vmatpush1.xpose.msra.mxu0 %v28
    %535 = vmatprep.subr.mxu0 0.0
    %536 = vmatpush2.xpose.msra.mxu0 0.0
    %537 = vmatprep.subr.mxu0 0.0
    %538 = vmatpush2.xpose.msra.mxu0 0.0
    %539 = vmatprep.subr.mxu0 0.0
    %540 = vmatpush2.xpose.msra.mxu0 0.0
    %541 = vmatprep.subr.mxu0 0.0
    %542 = vmatpush2.xpose.msra.mxu0 0.0
    %543 = vmatprep.subr.mxu0 0.0
    %544 = vmatpush2.xpose.msra.mxu0 0.0
    %545 = vmatprep.subr.mxu0 0.0
    %546 = vmatpush2.xpose.msra.mxu0 0.0
    %547 = vmatprep.subr.mxu0 0.0
    %548 = vmatpush2.xpose.msra.mxu0 0.0
    %549 = vmatprep.subr.mxu0 0.0
    %550 = vmatpush2.xpose.msra.mxu0 0.0
    %551 = vmatprep.subr.mxu0 0.0
    %552 = vmatpush2.xpose.msra.mxu0 0.0
    %553 = vmatprep.subr.mxu0 0.0
    %554 = vmatpush2.xpose.msra.mxu0 0.0
    %555 = vmatprep.subr.mxu0 0.0
    %556 = vmatpush2.xpose.msra.mxu0 0.0
    %557 = vmatprep.subr.mxu0 0.0
    %558 = vmatpush2.xpose.msra.mxu0 0.0
    %559 = vmatprep.subr.mxu0 0.0
    %560 = vmatpush2.xpose.msra.mxu0 0.0
    %561 = vmatprep.subr.mxu0 0.0
    %562 = vmatpush2.xpose.msra.mxu0 0.0
    %563 = vmatprep.subr.mxu0 0.0
    %564 = vmatpush2.xpose.msra.mxu0 0.0
    %565 = vmatprep.subr.mxu0 0.0
    %566 = vmatpush2.xpose.msra.mxu0 0.0
    %567 = vmatprep.mubr.f32.mxu0 %v65
    %568 = vmatmul.mubr.f32.gmra.mxu0 %v28
    %v569 = vpop.f32.mrf.mxu0
    %v570 = vadd.f32 %v500, %v569
    %v571 = vpop.f32.mrf.mxu0
    %572 = vdwg.mxu0
    %573 = vmatprep.subr.mxu0 0.0
    %574 = vmatpush1.xpose.msra.mxu0 0.0
    %575 = vmatprep.subr.mxu0 0.0
    %576 = vmatpush1.xpose.msra.mxu0 0.0
    %577 = vmatprep.subr.mxu0 0.0
    %578 = vmatpush1.xpose.msra.mxu0 0.0
    %579 = vmatprep.subr.mxu0 0.0
    %580 = vmatpush1.xpose.msra.mxu0 0.0
    %581 = vmatprep.subr.mxu0 0.0
    %582 = vmatpush1.xpose.msra.mxu0 0.0
    %583 = vmatprep.subr.mxu0 0.0
    %584 = vmatpush1.xpose.msra.mxu0 0.0
    %585 = vmatprep.subr.mxu0 0.0
    %586 = vmatpush1.xpose.msra.mxu0 0.0
    %587 = vmatprep.subr.mxu0 0.0
    %588 = vmatpush1.xpose.msra.mxu0 0.0
    %589 = vmatprep.subr.mxu0 0.0
    %590 = vmatpush1.xpose.msra.mxu0 0.0
    %591 = vmatprep.subr.mxu0 0.0
    %592 = vmatpush1.xpose.msra.mxu0 0.0
    %593 = vmatprep.subr.mxu0 0.0
    %594 = vmatpush1.xpose.msra.mxu0 0.0
    %595 = vmatprep.subr.mxu0 0.0
    %596 = vmatpush1.xpose.msra.mxu0 0.0
    %597 = vmatprep.subr.mxu0 0.0
    %598 = vmatpush1.xpose.msra.mxu0 0.0
    %599 = vmatprep.subr.mxu0 0.0
    %600 = vmatpush1.xpose.msra.mxu0 0.0
    %601 = vmatprep.subr.mxu0 0.0
    %602 = vmatpush1.xpose.msra.mxu0 0.0
    %603 = vmatprep.subr.mxu0 %v66
    %604 = vmatpush1.xpose.msra.mxu0 %v29
    %605 = vmatprep.subr.mxu0 0.0
    %606 = vmatpush2.xpose.msra.mxu0 0.0
    %607 = vmatprep.subr.mxu0 0.0
    %608 = vmatpush2.xpose.msra.mxu0 0.0
    %609 = vmatprep.subr.mxu0 0.0
    %610 = vmatpush2.xpose.msra.mxu0 0.0
    %611 = vmatprep.subr.mxu0 0.0
    %612 = vmatpush2.xpose.msra.mxu0 0.0
    %613 = vmatprep.subr.mxu0 0.0
    %614 = vmatpush2.xpose.msra.mxu0 0.0
    %615 = vmatprep.subr.mxu0 0.0
    %616 = vmatpush2.xpose.msra.mxu0 0.0
    %617 = vmatprep.subr.mxu0 0.0
    %618 = vmatpush2.xpose.msra.mxu0 0.0
    %619 = vmatprep.subr.mxu0 0.0
    %620 = vmatpush2.xpose.msra.mxu0 0.0
    %621 = vmatprep.subr.mxu0 0.0
    %622 = vmatpush2.xpose.msra.mxu0 0.0
    %623 = vmatprep.subr.mxu0 0.0
    %624 = vmatpush2.xpose.msra.mxu0 0.0
    %625 = vmatprep.subr.mxu0 0.0
    %626 = vmatpush2.xpose.msra.mxu0 0.0
    %627 = vmatprep.subr.mxu0 0.0
    %628 = vmatpush2.xpose.msra.mxu0 0.0
    %629 = vmatprep.subr.mxu0 0.0
    %630 = vmatpush2.xpose.msra.mxu0 0.0
    %631 = vmatprep.subr.mxu0 0.0
    %632 = vmatpush2.xpose.msra.mxu0 0.0
    %633 = vmatprep.subr.mxu0 0.0
    %634 = vmatpush2.xpose.msra.mxu0 0.0
    %635 = vmatprep.subr.mxu0 0.0
    %636 = vmatpush2.xpose.msra.mxu0 0.0
    %637 = vmatprep.mubr.f32.mxu0 %v66
    %638 = vmatmul.mubr.f32.gmra.mxu0 %v29
    %v639 = vpop.f32.mrf.mxu0
    %v640 = vadd.f32 %v570, %v639
    %v641 = vpop.f32.mrf.mxu0
    %642 = vdwg.mxu0
    %643 = vmatprep.subr.mxu0 0.0
    %644 = vmatpush1.xpose.msra.mxu0 0.0
    %645 = vmatprep.subr.mxu0 0.0
    %646 = vmatpush1.xpose.msra.mxu0 0.0
    %647 = vmatprep.subr.mxu0 0.0
    %648 = vmatpush1.xpose.msra.mxu0 0.0
    %649 = vmatprep.subr.mxu0 0.0
    %650 = vmatpush1.xpose.msra.mxu0 0.0
    %651 = vmatprep.subr.mxu0 0.0
    %652 = vmatpush1.xpose.msra.mxu0 0.0
    %653 = vmatprep.subr.mxu0 0.0
    %654 = vmatpush1.xpose.msra.mxu0 0.0
    %655 = vmatprep.subr.mxu0 0.0
    %656 = vmatpush1.xpose.msra.mxu0 0.0
    %657 = vmatprep.subr.mxu0 0.0
    %658 = vmatpush1.xpose.msra.mxu0 0.0
    %659 = vmatprep.subr.mxu0 0.0
    %660 = vmatpush1.xpose.msra.mxu0 0.0
    %661 = vmatprep.subr.mxu0 0.0
    %662 = vmatpush1.xpose.msra.mxu0 0.0
    %663 = vmatprep.subr.mxu0 0.0
    %664 = vmatpush1.xpose.msra.mxu0 0.0
    %665 = vmatprep.subr.mxu0 0.0
    %666 = vmatpush1.xpose.msra.mxu0 0.0
    %667 = vmatprep.subr.mxu0 0.0
    %668 = vmatpush1.xpose.msra.mxu0 0.0
    %669 = vmatprep.subr.mxu0 0.0
    %670 = vmatpush1.xpose.msra.mxu0 0.0
    %671 = vmatprep.subr.mxu0 0.0
    %672 = vmatpush1.xpose.msra.mxu0 0.0
    %673 = vmatprep.subr.mxu0 %v67
    %674 = vmatpush1.xpose.msra.mxu0 %v30
    %675 = vmatprep.subr.mxu0 0.0
    %676 = vmatpush2.xpose.msra.mxu0 0.0
    %677 = vmatprep.subr.mxu0 0.0
    %678 = vmatpush2.xpose.msra.mxu0 0.0
    %679 = vmatprep.subr.mxu0 0.0
    %680 = vmatpush2.xpose.msra.mxu0 0.0
    %681 = vmatprep.subr.mxu0 0.0
    %682 = vmatpush2.xpose.msra.mxu0 0.0
    %683 = vmatprep.subr.mxu0 0.0
    %684 = vmatpush2.xpose.msra.mxu0 0.0
    %685 = vmatprep.subr.mxu0 0.0
    %686 = vmatpush2.xpose.msra.mxu0 0.0
    %687 = vmatprep.subr.mxu0 0.0
    %688 = vmatpush2.xpose.msra.mxu0 0.0
    %689 = vmatprep.subr.mxu0 0.0
    %690 = vmatpush2.xpose.msra.mxu0 0.0
    %691 = vmatprep.subr.mxu0 0.0
    %692 = vmatpush2.xpose.msra.mxu0 0.0
    %693 = vmatprep.subr.mxu0 0.0
    %694 = vmatpush2.xpose.msra.mxu0 0.0
    %695 = vmatprep.subr.mxu0 0.0
    %696 = vmatpush2.xpose.msra.mxu0 0.0
    %697 = vmatprep.subr.mxu0 0.0
    %698 = vmatpush2.xpose.msra.mxu0 0.0
    %699 = vmatprep.subr.mxu0 0.0
    %700 = vmatpush2.xpose.msra.mxu0 0.0
    %701 = vmatprep.subr.mxu0 0.0
    %702 = vmatpush2.xpose.msra.mxu0 0.0
    %703 = vmatprep.subr.mxu0 0.0
    %704 = vmatpush2.xpose.msra.mxu0 0.0
    %705 = vmatprep.subr.mxu0 0.0
    %706 = vmatpush2.xpose.msra.mxu0 0.0
    %707 = vmatprep.mubr.f32.mxu0 %v67
    %708 = vmatmul.mubr.f32.gmra.mxu0 %v30
    %v709 = vpop.f32.mrf.mxu0
    %v710 = vadd.f32 %v640, %v709
    %v711 = vpop.f32.mrf.mxu0
    %712 = vdwg.mxu0
    %713 = vmatprep.subr.mxu0 0.0
    %714 = vmatpush1.xpose.msra.mxu0 0.0
    %715 = vmatprep.subr.mxu0 0.0
    %716 = vmatpush1.xpose.msra.mxu0 0.0
    %717 = vmatprep.subr.mxu0 0.0
    %718 = vmatpush1.xpose.msra.mxu0 0.0
    %719 = vmatprep.subr.mxu0 0.0
    %720 = vmatpush1.xpose.msra.mxu0 0.0
    %721 = vmatprep.subr.mxu0 0.0
    %722 = vmatpush1.xpose.msra.mxu0 0.0
    %723 = vmatprep.subr.mxu0 0.0
    %724 = vmatpush1.xpose.msra.mxu0 0.0
    %725 = vmatprep.subr.mxu0 0.0
    %726 = vmatpush1.xpose.msra.mxu0 0.0
    %727 = vmatprep.subr.mxu0 0.0
    %728 = vmatpush1.xpose.msra.mxu0 0.0
    %729 = vmatprep.subr.mxu0 0.0
    %730 = vmatpush1.xpose.msra.mxu0 0.0
    %731 = vmatprep.subr.mxu0 0.0
    %732 = vmatpush1.xpose.msra.mxu0 0.0
    %733 = vmatprep.subr.mxu0 0.0
    %734 = vmatpush1.xpose.msra.mxu0 0.0
    %735 = vmatprep.subr.mxu0 0.0
    %736 = vmatpush1.xpose.msra.mxu0 0.0
    %737 = vmatprep.subr.mxu0 0.0
    %738 = vmatpush1.xpose.msra.mxu0 0.0
    %739 = vmatprep.subr.mxu0 0.0
    %740 = vmatpush1.xpose.msra.mxu0 0.0
    %741 = vmatprep.subr.mxu0 0.0
    %742 = vmatpush1.xpose.msra.mxu0 0.0
    %743 = vmatprep.subr.mxu0 %v68
    %744 = vmatpush1.xpose.msra.mxu0 %v31
    %745 = vmatprep.subr.mxu0 0.0
    %746 = vmatpush2.xpose.msra.mxu0 0.0
    %747 = vmatprep.subr.mxu0 0.0
    %748 = vmatpush2.xpose.msra.mxu0 0.0
    %749 = vmatprep.subr.mxu0 0.0
    %750 = vmatpush2.xpose.msra.mxu0 0.0
    %751 = vmatprep.subr.mxu0 0.0
    %752 = vmatpush2.xpose.msra.mxu0 0.0
    %753 = vmatprep.subr.mxu0 0.0
    %754 = vmatpush2.xpose.msra.mxu0 0.0
    %755 = vmatprep.subr.mxu0 0.0
    %756 = vmatpush2.xpose.msra.mxu0 0.0
    %757 = vmatprep.subr.mxu0 0.0
    %758 = vmatpush2.xpose.msra.mxu0 0.0
    %759 = vmatprep.subr.mxu0 0.0
    %760 = vmatpush2.xpose.msra.mxu0 0.0
    %761 = vmatprep.subr.mxu0 0.0
    %762 = vmatpush2.xpose.msra.mxu0 0.0
    %763 = vmatprep.subr.mxu0 0.0
    %764 = vmatpush2.xpose.msra.mxu0 0.0
    %765 = vmatprep.subr.mxu0 0.0
    %766 = vmatpush2.xpose.msra.mxu0 0.0
    %767 = vmatprep.subr.mxu0 0.0
    %768 = vmatpush2.xpose.msra.mxu0 0.0
    %769 = vmatprep.subr.mxu0 0.0
    %770 = vmatpush2.xpose.msra.mxu0 0.0
    %771 = vmatprep.subr.mxu0 0.0
    %772 = vmatpush2.xpose.msra.mxu0 0.0
    %773 = vmatprep.subr.mxu0 0.0
    %774 = vmatpush2.xpose.msra.mxu0 0.0
    %775 = vmatprep.subr.mxu0 0.0
    %776 = vmatpush2.xpose.msra.mxu0 0.0
    %777 = vmatprep.mubr.f32.mxu0 %v68
    %778 = vmatmul.mubr.f32.gmra.mxu0 %v31
    %v779 = vpop.f32.mrf.mxu0
    %v780 = vadd.f32 %v710, %v779
    %v781 = vpop.f32.mrf.mxu0
    %782 = vdwg.mxu0
    %783 = vmatprep.subr.mxu0 0.0
    %784 = vmatpush1.xpose.msra.mxu0 0.0
    %785 = vmatprep.subr.mxu0 0.0
    %786 = vmatpush1.xpose.msra.mxu0 0.0
    %787 = vmatprep.subr.mxu0 0.0
    %788 = vmatpush1.xpose.msra.mxu0 0.0
    %789 = vmatprep.subr.mxu0 0.0
    %790 = vmatpush1.xpose.msra.mxu0 0.0
    %791 = vmatprep.subr.mxu0 0.0
    %792 = vmatpush1.xpose.msra.mxu0 0.0
    %793 = vmatprep.subr.mxu0 0.0
    %794 = vmatpush1.xpose.msra.mxu0 0.0
    %795 = vmatprep.subr.mxu0 0.0
    %796 = vmatpush1.xpose.msra.mxu0 0.0
    %797 = vmatprep.subr.mxu0 0.0
    %798 = vmatpush1.xpose.msra.mxu0 0.0
    %799 = vmatprep.subr.mxu0 0.0
    %800 = vmatpush1.xpose.msra.mxu0 0.0
    %801 = vmatprep.subr.mxu0 0.0
    %802 = vmatpush1.xpose.msra.mxu0 0.0
    %803 = vmatprep.subr.mxu0 0.0
    %804 = vmatpush1.xpose.msra.mxu0 0.0
    %805 = vmatprep.subr.mxu0 0.0
    %806 = vmatpush1.xpose.msra.mxu0 0.0
    %807 = vmatprep.subr.mxu0 0.0
    %808 = vmatpush1.xpose.msra.mxu0 0.0
    %809 = vmatprep.subr.mxu0 0.0
    %810 = vmatpush1.xpose.msra.mxu0 0.0
    %811 = vmatprep.subr.mxu0 0.0
    %812 = vmatpush1.xpose.msra.mxu0 0.0
    %813 = vmatprep.subr.mxu0 %v69
    %814 = vmatpush1.xpose.msra.mxu0 %v32
    %815 = vmatprep.subr.mxu0 0.0
    %816 = vmatpush2.xpose.msra.mxu0 0.0
    %817 = vmatprep.subr.mxu0 0.0
    %818 = vmatpush2.xpose.msra.mxu0 0.0
    %819 = vmatprep.subr.mxu0 0.0
    %820 = vmatpush2.xpose.msra.mxu0 0.0
    %821 = vmatprep.subr.mxu0 0.0
    %822 = vmatpush2.xpose.msra.mxu0 0.0
    %823 = vmatprep.subr.mxu0 0.0
    %824 = vmatpush2.xpose.msra.mxu0 0.0
    %825 = vmatprep.subr.mxu0 0.0
    %826 = vmatpush2.xpose.msra.mxu0 0.0
    %827 = vmatprep.subr.mxu0 0.0
    %828 = vmatpush2.xpose.msra.mxu0 0.0
    %829 = vmatprep.subr.mxu0 0.0
    %830 = vmatpush2.xpose.msra.mxu0 0.0
    %831 = vmatprep.subr.mxu0 0.0
    %832 = vmatpush2.xpose.msra.mxu0 0.0
    %833 = vmatprep.subr.mxu0 0.0
    %834 = vmatpush2.xpose.msra.mxu0 0.0
    %835 = vmatprep.subr.mxu0 0.0
    %836 = vmatpush2.xpose.msra.mxu0 0.0
    %837 = vmatprep.subr.mxu0 0.0
    %838 = vmatpush2.xpose.msra.mxu0 0.0
    %839 = vmatprep.subr.mxu0 0.0
    %840 = vmatpush2.xpose.msra.mxu0 0.0
    %841 = vmatprep.subr.mxu0 0.0
    %842 = vmatpush2.xpose.msra.mxu0 0.0
    %843 = vmatprep.subr.mxu0 0.0
    %844 = vmatpush2.xpose.msra.mxu0 0.0
    %845 = vmatprep.subr.mxu0 0.0
    %846 = vmatpush2.xpose.msra.mxu0 0.0
    %847 = vmatprep.mubr.f32.mxu0 %v69
    %848 = vmatmul.mubr.f32.gmra.mxu0 %v32
    %v849 = vpop.f32.mrf.mxu0
    %v850 = vadd.f32 %v780, %v849
    %v851 = vpop.f32.mrf.mxu0
    %852 = vdwg.mxu0
    %853 = vmatprep.subr.mxu0 0.0
    %854 = vmatpush1.xpose.msra.mxu0 0.0
    %855 = vmatprep.subr.mxu0 0.0
    %856 = vmatpush1.xpose.msra.mxu0 0.0
    %857 = vmatprep.subr.mxu0 0.0
    %858 = vmatpush1.xpose.msra.mxu0 0.0
    %859 = vmatprep.subr.mxu0 0.0
    %860 = vmatpush1.xpose.msra.mxu0 0.0
    %861 = vmatprep.subr.mxu0 0.0
    %862 = vmatpush1.xpose.msra.mxu0 0.0
    %863 = vmatprep.subr.mxu0 0.0
    %864 = vmatpush1.xpose.msra.mxu0 0.0
    %865 = vmatprep.subr.mxu0 0.0
    %866 = vmatpush1.xpose.msra.mxu0 0.0
    %867 = vmatprep.subr.mxu0 0.0
    %868 = vmatpush1.xpose.msra.mxu0 0.0
    %869 = vmatprep.subr.mxu0 0.0
    %870 = vmatpush1.xpose.msra.mxu0 0.0
    %871 = vmatprep.subr.mxu0 0.0
    %872 = vmatpush1.xpose.msra.mxu0 0.0
    %873 = vmatprep.subr.mxu0 0.0
    %874 = vmatpush1.xpose.msra.mxu0 0.0
    %875 = vmatprep.subr.mxu0 0.0
    %876 = vmatpush1.xpose.msra.mxu0 0.0
    %877 = vmatprep.subr.mxu0 0.0
    %878 = vmatpush1.xpose.msra.mxu0 0.0
    %879 = vmatprep.subr.mxu0 0.0
    %880 = vmatpush1.xpose.msra.mxu0 0.0
    %881 = vmatprep.subr.mxu0 0.0
    %882 = vmatpush1.xpose.msra.mxu0 0.0
    %883 = vmatprep.subr.mxu0 %v70
    %884 = vmatpush1.xpose.msra.mxu0 %v33
    %885 = vmatprep.subr.mxu0 0.0
    %886 = vmatpush2.xpose.msra.mxu0 0.0
    %887 = vmatprep.subr.mxu0 0.0
    %888 = vmatpush2.xpose.msra.mxu0 0.0
    %889 = vmatprep.subr.mxu0 0.0
    %890 = vmatpush2.xpose.msra.mxu0 0.0
    %891 = vmatprep.subr.mxu0 0.0
    %892 = vmatpush2.xpose.msra.mxu0 0.0
    %893 = vmatprep.subr.mxu0 0.0
    %894 = vmatpush2.xpose.msra.mxu0 0.0
    %895 = vmatprep.subr.mxu0 0.0
    %896 = vmatpush2.xpose.msra.mxu0 0.0
    %897 = vmatprep.subr.mxu0 0.0
    %898 = vmatpush2.xpose.msra.mxu0 0.0
    %899 = vmatprep.subr.mxu0 0.0
    %900 = vmatpush2.xpose.msra.mxu0 0.0
    %901 = vmatprep.subr.mxu0 0.0
    %902 = vmatpush2.xpose.msra.mxu0 0.0
    %903 = vmatprep.subr.mxu0 0.0
    %904 = vmatpush2.xpose.msra.mxu0 0.0
    %905 = vmatprep.subr.mxu0 0.0
    %906 = vmatpush2.xpose.msra.mxu0 0.0
    %907 = vmatprep.subr.mxu0 0.0
    %908 = vmatpush2.xpose.msra.mxu0 0.0
    %909 = vmatprep.subr.mxu0 0.0
    %910 = vmatpush2.xpose.msra.mxu0 0.0
    %911 = vmatprep.subr.mxu0 0.0
    %912 = vmatpush2.xpose.msra.mxu0 0.0
    %913 = vmatprep.subr.mxu0 0.0
    %914 = vmatpush2.xpose.msra.mxu0 0.0
    %915 = vmatprep.subr.mxu0 0.0
    %916 = vmatpush2.xpose.msra.mxu0 0.0
    %917 = vmatprep.mubr.f32.mxu0 %v70
    %918 = vmatmul.mubr.f32.gmra.mxu0 %v33
    %v919 = vpop.f32.mrf.mxu0
    %v920 = vadd.f32 %v850, %v919
    %v921 = vpop.f32.mrf.mxu0
    %922 = vdwg.mxu0
    %v923 = vadd.f32 %v46, %v920
    %vm924 = vcmask 27648
    %925 = vst.msk [vmem:[#allocation2] sm:$0xf] %vm924, %v923
    %vm926 = vcmask 1043456
    %v927 = vsel %vm926, %v22, -inf
    %v928 = vrot.slane %v927, 4
    %v929 = vmax.f32 %v927, %v928
    %v930 = vrot.slane %v929, 2
    %v931 = vmax.f32 %v929, %v930
    %v932 = vrot.slane %v931, 1
    %v933 = vmax.f32 %v931, %v932
    %v934 = vsel %vm926, %v59, -inf
    %v935 = vrot.slane %v934, 4
    %v936 = vmax.f32 %v934, %v935
    %v937 = vrot.slane %v936, 2
    %v938 = vmax.f32 %v936, %v937
    %v939 = vrot.slane %v938, 1
    %v940 = vmax.f32 %v938, %v939
    %v941 = vsel %vm926, %v23, -inf
    %v942 = vrot.slane %v941, 4
    %v943 = vmax.f32 %v941, %v942
    %v944 = vrot.slane %v943, 2
    %v945 = vmax.f32 %v943, %v944
    %v946 = vrot.slane %v945, 1
    %v947 = vmax.f32 %v945, %v946
    %v948 = vsel %vm926, %v60, -inf
    %v949 = vrot.slane %v948, 4
    %v950 = vmax.f32 %v948, %v949
    %v951 = vrot.slane %v950, 2
    %v952 = vmax.f32 %v950, %v951
    %v953 = vrot.slane %v952, 1
    %v954 = vmax.f32 %v952, %v953
    %v955 = vsel %vm926, %v24, -inf
    %v956 = vrot.slane %v955, 4
    %v957 = vmax.f32 %v955, %v956
    %v958 = vrot.slane %v957, 2
    %v959 = vmax.f32 %v957, %v958
    %v960 = vrot.slane %v959, 1
    %v961 = vmax.f32 %v959, %v960
    %v962 = vsel %vm926, %v61, -inf
    %v963 = vrot.slane %v962, 4
    %v964 = vmax.f32 %v962, %v963
    %v965 = vrot.slane %v964, 2
    %v966 = vmax.f32 %v964, %v965
    %v967 = vrot.slane %v966, 1
    %v968 = vmax.f32 %v966, %v967
    %v969 = vsel %vm926, %v25, -inf
    %v970 = vrot.slane %v969, 4
    %v971 = vmax.f32 %v969, %v970
    %v972 = vrot.slane %v971, 2
    %v973 = vmax.f32 %v971, %v972
    %v974 = vrot.slane %v973, 1
    %v975 = vmax.f32 %v973, %v974
    %v976 = vsel %vm926, %v62, -inf
    %v977 = vrot.slane %v976, 4
    %v978 = vmax.f32 %v976, %v977
    %v979 = vrot.slane %v978, 2
    %v980 = vmax.f32 %v978, %v979
    %v981 = vrot.slane %v980, 1
    %v982 = vmax.f32 %v980, %v981
    %v983 = vsel %vm926, %v26, -inf
    %v984 = vrot.slane %v983, 4
    %v985 = vmax.f32 %v983, %v984
    %v986 = vrot.slane %v985, 2
    %v987 = vmax.f32 %v985, %v986
    %v988 = vrot.slane %v987, 1
    %v989 = vmax.f32 %v987, %v988
    %v990 = vsel %vm926, %v63, -inf
    %v991 = vrot.slane %v990, 4
    %v992 = vmax.f32 %v990, %v991
    %v993 = vrot.slane %v992, 2
    %v994 = vmax.f32 %v992, %v993
    %v995 = vrot.slane %v994, 1
    %v996 = vmax.f32 %v994, %v995
    %v997 = vsel %vm926, %v27, -inf
    %v998 = vrot.slane %v997, 4
    %v999 = vmax.f32 %v997, %v998
    %v1000 = vrot.slane %v999, 2
    %v1001 = vmax.f32 %v999, %v1000
    %v1002 = vrot.slane %v1001, 1
    %v1003 = vmax.f32 %v1001, %v1002
    %v1004 = vsel %vm926, %v64, -inf
    %v1005 = vrot.slane %v1004, 4
    %v1006 = vmax.f32 %v1004, %v1005
    %v1007 = vrot.slane %v1006, 2
    %v1008 = vmax.f32 %v1006, %v1007
    %v1009 = vrot.slane %v1008, 1
    %v1010 = vmax.f32 %v1008, %v1009
    %v1011 = vsel %vm926, %v28, -inf
    %v1012 = vrot.slane %v1011, 4
    %v1013 = vmax.f32 %v1011, %v1012
    %v1014 = vrot.slane %v1013, 2
    %v1015 = vmax.f32 %v1013, %v1014
    %v1016 = vrot.slane %v1015, 1
    %v1017 = vmax.f32 %v1015, %v1016
    %v1018 = vsel %vm926, %v65, -inf
    %v1019 = vrot.slane %v1018, 4
    %v1020 = vmax.f32 %v1018, %v1019
    %v1021 = vrot.slane %v1020, 2
    %v1022 = vmax.f32 %v1020, %v1021
    %v1023 = vrot.slane %v1022, 1
    %v1024 = vmax.f32 %v1022, %v1023
    %v1025 = vsel %vm926, %v29, -inf
    %v1026 = vrot.slane %v1025, 4
    %v1027 = vmax.f32 %v1025, %v1026
    %v1028 = vrot.slane %v1027, 2
    %v1029 = vmax.f32 %v1027, %v1028
    %v1030 = vrot.slane %v1029, 1
    %v1031 = vmax.f32 %v1029, %v1030
    %v1032 = vsel %vm926, %v66, -inf
    %v1033 = vrot.slane %v1032, 4
    %v1034 = vmax.f32 %v1032, %v1033
    %v1035 = vrot.slane %v1034, 2
    %v1036 = vmax.f32 %v1034, %v1035
    %v1037 = vrot.slane %v1036, 1
    %v1038 = vmax.f32 %v1036, %v1037
    %v1039 = vsel %vm926, %v30, -inf
    %v1040 = vrot.slane %v1039, 4
    %v1041 = vmax.f32 %v1039, %v1040
    %v1042 = vrot.slane %v1041, 2
    %v1043 = vmax.f32 %v1041, %v1042
    %v1044 = vrot.slane %v1043, 1
    %v1045 = vmax.f32 %v1043, %v1044
    %v1046 = vsel %vm926, %v67, -inf
    %v1047 = vrot.slane %v1046, 4
    %v1048 = vmax.f32 %v1046, %v1047
    %v1049 = vrot.slane %v1048, 2
    %v1050 = vmax.f32 %v1048, %v1049
    %v1051 = vrot.slane %v1050, 1
    %v1052 = vmax.f32 %v1050, %v1051
    %v1053 = vsel %vm926, %v31, -inf
    %v1054 = vrot.slane %v1053, 4
    %v1055 = vmax.f32 %v1053, %v1054
    %v1056 = vrot.slane %v1055, 2
    %v1057 = vmax.f32 %v1055, %v1056
    %v1058 = vrot.slane %v1057, 1
    %v1059 = vmax.f32 %v1057, %v1058
    %v1060 = vsel %vm926, %v68, -inf
    %v1061 = vrot.slane %v1060, 4
    %v1062 = vmax.f32 %v1060, %v1061
    %v1063 = vrot.slane %v1062, 2
    %v1064 = vmax.f32 %v1062, %v1063
    %v1065 = vrot.slane %v1064, 1
    %v1066 = vmax.f32 %v1064, %v1065
    %v1067 = vsel %vm926, %v32, -inf
    %v1068 = vrot.slane %v1067, 4
    %v1069 = vmax.f32 %v1067, %v1068
    %v1070 = vrot.slane %v1069, 2
    %v1071 = vmax.f32 %v1069, %v1070
    %v1072 = vrot.slane %v1071, 1
    %v1073 = vmax.f32 %v1071, %v1072
    %v1074 = vsel %vm926, %v69, -inf
    %v1075 = vrot.slane %v1074, 4
    %v1076 = vmax.f32 %v1074, %v1075
    %v1077 = vrot.slane %v1076, 2
    %v1078 = vmax.f32 %v1076, %v1077
    %v1079 = vrot.slane %v1078, 1
    %v1080 = vmax.f32 %v1078, %v1079
    %v1081 = vsel %vm926, %v33, -inf
    %v1082 = vrot.slane %v1081, 4
    %v1083 = vmax.f32 %v1081, %v1082
    %v1084 = vrot.slane %v1083, 2
    %v1085 = vmax.f32 %v1083, %v1084
    %v1086 = vrot.slane %v1085, 1
    %v1087 = vmax.f32 %v1085, %v1086
    %v1088 = vsel %vm926, %v70, -inf
    %v1089 = vrot.slane %v1088, 4
    %v1090 = vmax.f32 %v1088, %v1089
    %v1091 = vrot.slane %v1090, 2
    %v1092 = vmax.f32 %v1090, %v1091
    %v1093 = vrot.slane %v1092, 1
    %v1094 = vmax.f32 %v1092, %v1093
    %v1119 = vcombine.low %v933, %v940
    %v1120 = vcombine.low %v947, %v954
    %v1121 = vcombine.low %v961, %v968
    %v1122 = vcombine.low %v975, %v982
    %v1123 = vcombine.low %v989, %v996
    %v1124 = vcombine.low %v1003, %v1010
    %v1125 = vcombine.low %v1017, %v1024
    %v1126 = vcombine.low %v1031, %v1038
    %v1127 = vcombine.low %v1045, %v1052
    %v1128 = vcombine.low %v1059, %v1066
    %v1129 = vcombine.low %v1073, %v1080
    %v1130 = vcombine.low %v1087, %v1094
    %v1143 = vsub.f32 %v22, %v1119
    %v1144 = vsub.f32 %v23, %v1120
    %v1145 = vsub.f32 %v24, %v1121
    %v1146 = vsub.f32 %v25, %v1122
    %v1147 = vsub.f32 %v26, %v1123
    %v1148 = vsub.f32 %v27, %v1124
    %v1149 = vsub.f32 %v28, %v1125
    %v1150 = vsub.f32 %v29, %v1126
    %v1151 = vsub.f32 %v30, %v1127
    %v1152 = vsub.f32 %v31, %v1128
    %v1153 = vsub.f32 %v32, %v1129
    %v1154 = vsub.f32 %v33, %v1130
    %v1155 = vmul.f32 %v1143, 1.442695
    %v1156 = vpow.pop %v1155
    %v1157 = vmul.f32 %v1144, 1.442695
    %v1158 = vpow.pop %v1157
    %v1159 = vmul.f32 %v1145, 1.442695
    %v1160 = vpow.pop %v1159
    %v1161 = vmul.f32 %v1146, 1.442695
    %v1162 = vpow.pop %v1161
    %v1163 = vmul.f32 %v1147, 1.442695
    %v1164 = vpow.pop %v1163
    %v1165 = vmul.f32 %v1148, 1.442695
    %v1166 = vpow.pop %v1165
    %v1167 = vmul.f32 %v1149, 1.442695
    %v1168 = vpow.pop %v1167
    %v1169 = vmul.f32 %v1150, 1.442695
    %v1170 = vpow.pop %v1169
    %v1171 = vmul.f32 %v1151, 1.442695
    %v1172 = vpow.pop %v1171
    %v1173 = vmul.f32 %v1152, 1.442695
    %v1174 = vpow.pop %v1173
    %v1175 = vmul.f32 %v1153, 1.442695
    %v1176 = vpow.pop %v1175
    %v1177 = vmul.f32 %v1154, 1.442695
    %v1178 = vpow.pop %v1177
    %v1191 = vcombine.high %v1156, %v1156
    %v1192 = vcombine.high %v1158, %v1158
    %v1193 = vcombine.high %v1160, %v1160
    %v1194 = vcombine.high %v1162, %v1162
    %v1195 = vcombine.high %v1164, %v1164
    %v1196 = vcombine.high %v1166, %v1166
    %v1197 = vcombine.high %v1168, %v1168
    %v1198 = vcombine.high %v1170, %v1170
    %v1199 = vcombine.high %v1172, %v1172
    %v1200 = vcombine.high %v1174, %v1174
    %v1201 = vcombine.high %v1176, %v1176
    %v1202 = vcombine.high %v1178, %v1178
    %v1215 = vsel %vm926, %v1156, 0.0
    %v1216 = vrot.slane %v1215, 4
    %v1217 = vadd.f32 %v1215, %v1216
    %v1218 = vrot.slane %v1217, 2
    %v1219 = vadd.f32 %v1217, %v1218
    %v1220 = vrot.slane %v1219, 1
    %v1221 = vadd.f32 %v1219, %v1220
    %v1222 = vsel %vm926, %v1191, 0.0
    %v1223 = vrot.slane %v1222, 4
    %v1224 = vadd.f32 %v1222, %v1223
    %v1225 = vrot.slane %v1224, 2
    %v1226 = vadd.f32 %v1224, %v1225
    %v1227 = vrot.slane %v1226, 1
    %v1228 = vadd.f32 %v1226, %v1227
    %v1229 = vsel %vm926, %v1158, 0.0
    %v1230 = vrot.slane %v1229, 4
    %v1231 = vadd.f32 %v1229, %v1230
    %v1232 = vrot.slane %v1231, 2
    %v1233 = vadd.f32 %v1231, %v1232
    %v1234 = vrot.slane %v1233, 1
    %v1235 = vadd.f32 %v1233, %v1234
    %v1236 = vsel %vm926, %v1192, 0.0
    %v1237 = vrot.slane %v1236, 4
    %v1238 = vadd.f32 %v1236, %v1237
    %v1239 = vrot.slane %v1238, 2
    %v1240 = vadd.f32 %v1238, %v1239
    %v1241 = vrot.slane %v1240, 1
    %v1242 = vadd.f32 %v1240, %v1241
    %v1243 = vsel %vm926, %v1160, 0.0
    %v1244 = vrot.slane %v1243, 4
    %v1245 = vadd.f32 %v1243, %v1244
    %v1246 = vrot.slane %v1245, 2
    %v1247 = vadd.f32 %v1245, %v1246
    %v1248 = vrot.slane %v1247, 1
    %v1249 = vadd.f32 %v1247, %v1248
    %v1250 = vsel %vm926, %v1193, 0.0
    %v1251 = vrot.slane %v1250, 4
    %v1252 = vadd.f32 %v1250, %v1251
    %v1253 = vrot.slane %v1252, 2
    %v1254 = vadd.f32 %v1252, %v1253
    %v1255 = vrot.slane %v1254, 1
    %v1256 = vadd.f32 %v1254, %v1255
    %v1257 = vsel %vm926, %v1162, 0.0
    %v1258 = vrot.slane %v1257, 4
    %v1259 = vadd.f32 %v1257, %v1258
    %v1260 = vrot.slane %v1259, 2
    %v1261 = vadd.f32 %v1259, %v1260
    %v1262 = vrot.slane %v1261, 1
    %v1263 = vadd.f32 %v1261, %v1262
    %v1264 = vsel %vm926, %v1194, 0.0
    %v1265 = vrot.slane %v1264, 4
    %v1266 = vadd.f32 %v1264, %v1265
    %v1267 = vrot.slane %v1266, 2
    %v1268 = vadd.f32 %v1266, %v1267
    %v1269 = vrot.slane %v1268, 1
    %v1270 = vadd.f32 %v1268, %v1269
    %v1271 = vsel %vm926, %v1164, 0.0
    %v1272 = vrot.slane %v1271, 4
    %v1273 = vadd.f32 %v1271, %v1272
    %v1274 = vrot.slane %v1273, 2
    %v1275 = vadd.f32 %v1273, %v1274
    %v1276 = vrot.slane %v1275, 1
    %v1277 = vadd.f32 %v1275, %v1276
    %v1278 = vsel %vm926, %v1195, 0.0
    %v1279 = vrot.slane %v1278, 4
    %v1280 = vadd.f32 %v1278, %v1279
    %v1281 = vrot.slane %v1280, 2
    %v1282 = vadd.f32 %v1280, %v1281
    %v1283 = vrot.slane %v1282, 1
    %v1284 = vadd.f32 %v1282, %v1283
    %v1285 = vsel %vm926, %v1166, 0.0
    %v1286 = vrot.slane %v1285, 4
    %v1287 = vadd.f32 %v1285, %v1286
    %v1288 = vrot.slane %v1287, 2
    %v1289 = vadd.f32 %v1287, %v1288
    %v1290 = vrot.slane %v1289, 1
    %v1291 = vadd.f32 %v1289, %v1290
    %v1292 = vsel %vm926, %v1196, 0.0
    %v1293 = vrot.slane %v1292, 4
    %v1294 = vadd.f32 %v1292, %v1293
    %v1295 = vrot.slane %v1294, 2
    %v1296 = vadd.f32 %v1294, %v1295
    %v1297 = vrot.slane %v1296, 1
    %v1298 = vadd.f32 %v1296, %v1297
    %v1299 = vsel %vm926, %v1168, 0.0
    %v1300 = vrot.slane %v1299, 4
    %v1301 = vadd.f32 %v1299, %v1300
    %v1302 = vrot.slane %v1301, 2
    %v1303 = vadd.f32 %v1301, %v1302
    %v1304 = vrot.slane %v1303, 1
    %v1305 = vadd.f32 %v1303, %v1304
    %v1306 = vsel %vm926, %v1197, 0.0
    %v1307 = vrot.slane %v1306, 4
    %v1308 = vadd.f32 %v1306, %v1307
    %v1309 = vrot.slane %v1308, 2
    %v1310 = vadd.f32 %v1308, %v1309
    %v1311 = vrot.slane %v1310, 1
    %v1312 = vadd.f32 %v1310, %v1311
    %v1313 = vsel %vm926, %v1170, 0.0
    %v1314 = vrot.slane %v1313, 4
    %v1315 = vadd.f32 %v1313, %v1314
    %v1316 = vrot.slane %v1315, 2
    %v1317 = vadd.f32 %v1315, %v1316
    %v1318 = vrot.slane %v1317, 1
    %v1319 = vadd.f32 %v1317, %v1318
    %v1320 = vsel %vm926, %v1198, 0.0
    %v1321 = vrot.slane %v1320, 4
    %v1322 = vadd.f32 %v1320, %v1321
    %v1323 = vrot.slane %v1322, 2
    %v1324 = vadd.f32 %v1322, %v1323
    %v1325 = vrot.slane %v1324, 1
    %v1326 = vadd.f32 %v1324, %v1325
    %v1327 = vsel %vm926, %v1172, 0.0
    %v1328 = vrot.slane %v1327, 4
    %v1329 = vadd.f32 %v1327, %v1328
    %v1330 = vrot.slane %v1329, 2
    %v1331 = vadd.f32 %v1329, %v1330
    %v1332 = vrot.slane %v1331, 1
    %v1333 = vadd.f32 %v1331, %v1332
    %v1334 = vsel %vm926, %v1199, 0.0
    %v1335 = vrot.slane %v1334, 4
    %v1336 = vadd.f32 %v1334, %v1335
    %v1337 = vrot.slane %v1336, 2
    %v1338 = vadd.f32 %v1336, %v1337
    %v1339 = vrot.slane %v1338, 1
    %v1340 = vadd.f32 %v1338, %v1339
    %v1341 = vsel %vm926, %v1174, 0.0
    %v1342 = vrot.slane %v1341, 4
    %v1343 = vadd.f32 %v1341, %v1342
    %v1344 = vrot.slane %v1343, 2
    %v1345 = vadd.f32 %v1343, %v1344
    %v1346 = vrot.slane %v1345, 1
    %v1347 = vadd.f32 %v1345, %v1346
    %v1348 = vsel %vm926, %v1200, 0.0
    %v1349 = vrot.slane %v1348, 4
    %v1350 = vadd.f32 %v1348, %v1349
    %v1351 = vrot.slane %v1350, 2
    %v1352 = vadd.f32 %v1350, %v1351
    %v1353 = vrot.slane %v1352, 1
    %v1354 = vadd.f32 %v1352, %v1353
    %v1355 = vsel %vm926, %v1176, 0.0
    %v1356 = vrot.slane %v1355, 4
    %v1357 = vadd.f32 %v1355, %v1356
    %v1358 = vrot.slane %v1357, 2
    %v1359 = vadd.f32 %v1357, %v1358
    %v1360 = vrot.slane %v1359, 1
    %v1361 = vadd.f32 %v1359, %v1360
    %v1362 = vsel %vm926, %v1201, 0.0
    %v1363 = vrot.slane %v1362, 4
    %v1364 = vadd.f32 %v1362, %v1363
    %v1365 = vrot.slane %v1364, 2
    %v1366 = vadd.f32 %v1364, %v1365
    %v1367 = vrot.slane %v1366, 1
    %v1368 = vadd.f32 %v1366, %v1367
    %v1369 = vsel %vm926, %v1178, 0.0
    %v1370 = vrot.slane %v1369, 4
    %v1371 = vadd.f32 %v1369, %v1370
    %v1372 = vrot.slane %v1371, 2
    %v1373 = vadd.f32 %v1371, %v1372
    %v1374 = vrot.slane %v1373, 1
    %v1375 = vadd.f32 %v1373, %v1374
    %v1376 = vsel %vm926, %v1202, 0.0
    %v1377 = vrot.slane %v1376, 4
    %v1378 = vadd.f32 %v1376, %v1377
    %v1379 = vrot.slane %v1378, 2
    %v1380 = vadd.f32 %v1378, %v1379
    %v1381 = vrot.slane %v1380, 1
    %v1382 = vadd.f32 %v1380, %v1381
    %v1383 = vlog2.pop %v1221
    %v1384 = vmul.f32 %v1383, 0.6931472
    %v1385 = vlog2.pop %v1228
    %v1386 = vmul.f32 %v1385, 0.6931472
    %v1387 = vlog2.pop %v1235
    %v1388 = vmul.f32 %v1387, 0.6931472
    %v1389 = vlog2.pop %v1242
    %v1390 = vmul.f32 %v1389, 0.6931472
    %v1391 = vlog2.pop %v1249
    %v1392 = vmul.f32 %v1391, 0.6931472
    %v1393 = vlog2.pop %v1256
    %v1394 = vmul.f32 %v1393, 0.6931472
    %v1395 = vlog2.pop %v1263
    %v1396 = vmul.f32 %v1395, 0.6931472
    %v1397 = vlog2.pop %v1270
    %v1398 = vmul.f32 %v1397, 0.6931472
    %v1399 = vlog2.pop %v1277
    %v1400 = vmul.f32 %v1399, 0.6931472
    %v1401 = vlog2.pop %v1284
    %v1402 = vmul.f32 %v1401, 0.6931472
    %v1403 = vlog2.pop %v1291
    %v1404 = vmul.f32 %v1403, 0.6931472
    %v1405 = vlog2.pop %v1298
    %v1406 = vmul.f32 %v1405, 0.6931472
    %v1407 = vlog2.pop %v1305
    %v1408 = vmul.f32 %v1407, 0.6931472
    %v1409 = vlog2.pop %v1312
    %v1410 = vmul.f32 %v1409, 0.6931472
    %v1411 = vlog2.pop %v1319
    %v1412 = vmul.f32 %v1411, 0.6931472
    %v1413 = vlog2.pop %v1326
    %v1414 = vmul.f32 %v1413, 0.6931472
    %v1415 = vlog2.pop %v1333
    %v1416 = vmul.f32 %v1415, 0.6931472
    %v1417 = vlog2.pop %v1340
    %v1418 = vmul.f32 %v1417, 0.6931472
    %v1419 = vlog2.pop %v1347
    %v1420 = vmul.f32 %v1419, 0.6931472
    %v1421 = vlog2.pop %v1354
    %v1422 = vmul.f32 %v1421, 0.6931472
    %v1423 = vlog2.pop %v1361
    %v1424 = vmul.f32 %v1423, 0.6931472
    %v1425 = vlog2.pop %v1368
    %v1426 = vmul.f32 %v1425, 0.6931472
    %v1427 = vlog2.pop %v1375
    %v1428 = vmul.f32 %v1427, 0.6931472
    %v1429 = vlog2.pop %v1382
    %v1430 = vmul.f32 %v1429, 0.6931472
    %v1455 = vcombine.low %v1384, %v1386
    %v1456 = vcombine.low %v1388, %v1390
    %v1457 = vcombine.low %v1392, %v1394
    %v1458 = vcombine.low %v1396, %v1398
    %v1459 = vcombine.low %v1400, %v1402
    %v1460 = vcombine.low %v1404, %v1406
    %v1461 = vcombine.low %v1408, %v1410
    %v1462 = vcombine.low %v1412, %v1414
    %v1463 = vcombine.low %v1416, %v1418
    %v1464 = vcombine.low %v1420, %v1422
    %v1465 = vcombine.low %v1424, %v1426
    %v1466 = vcombine.low %v1428, %v1430
    %v1479 = vsub.f32 %v1143, %v1455
    %v1480 = vsub.f32 %v1144, %v1456
    %v1481 = vsub.f32 %v1145, %v1457
    %v1482 = vsub.f32 %v1146, %v1458
    %v1483 = vsub.f32 %v1147, %v1459
    %v1484 = vsub.f32 %v1148, %v1460
    %v1485 = vsub.f32 %v1149, %v1461
    %v1486 = vsub.f32 %v1150, %v1462
    %v1487 = vsub.f32 %v1151, %v1463
    %v1488 = vsub.f32 %v1152, %v1464
    %v1489 = vsub.f32 %v1153, %v1465
    %v1490 = vsub.f32 %v1154, %v1466
    %v1515 = vcombine.low %v1221, %v1228
    %v1516 = vcombine.low %v1235, %v1242
    %v1517 = vcombine.low %v1249, %v1256
    %v1518 = vcombine.low %v1263, %v1270
    %v1519 = vcombine.low %v1277, %v1284
    %v1520 = vcombine.low %v1291, %v1298
    %v1521 = vcombine.low %v1305, %v1312
    %v1522 = vcombine.low %v1319, %v1326
    %v1523 = vcombine.low %v1333, %v1340
    %v1524 = vcombine.low %v1347, %v1354
    %v1525 = vcombine.low %v1361, %v1368
    %v1526 = vcombine.low %v1375, %v1382
    %v1539 = vrcp.pop %v1515
    %v1540 = vmul.f32 %v1156, %v1539
    %v1541 = vrcp.pop %v1516
    %v1542 = vmul.f32 %v1158, %v1541
    %v1543 = vrcp.pop %v1517
    %v1544 = vmul.f32 %v1160, %v1543
    %v1545 = vrcp.pop %v1518
    %v1546 = vmul.f32 %v1162, %v1545
    %v1547 = vrcp.pop %v1519
    %v1548 = vmul.f32 %v1164, %v1547
    %v1549 = vrcp.pop %v1520
    %v1550 = vmul.f32 %v1166, %v1549
    %v1551 = vrcp.pop %v1521
    %v1552 = vmul.f32 %v1168, %v1551
    %v1553 = vrcp.pop %v1522
    %v1554 = vmul.f32 %v1170, %v1553
    %v1555 = vrcp.pop %v1523
    %v1556 = vmul.f32 %v1172, %v1555
    %v1557 = vrcp.pop %v1524
    %v1558 = vmul.f32 %v1174, %v1557
    %v1559 = vrcp.pop %v1525
    %v1560 = vmul.f32 %v1176, %v1559
    %v1561 = vrcp.pop %v1526
    %v1562 = vmul.f32 %v1178, %v1561
    %v1575 = vcombine.high %v34, %v34
    %v1576 = vcombine.high %v35, %v35
    %v1577 = vcombine.high %v36, %v36
    %v1578 = vcombine.high %v37, %v37
    %v1579 = vcombine.high %v38, %v38
    %v1580 = vcombine.high %v39, %v39
    %v1581 = vcombine.high %v40, %v40
    %v1582 = vcombine.high %v41, %v41
    %v1583 = vcombine.high %v42, %v42
    %v1584 = vcombine.high %v43, %v43
    %v1585 = vcombine.high %v44, %v44
    %v1586 = vcombine.high %v45, %v45
    %v1599 = vsel %vm926, %v34, -inf
    %v1600 = vrot.slane %v1599, 4
    %v1601 = vmax.f32 %v1599, %v1600
    %v1602 = vrot.slane %v1601, 2
    %v1603 = vmax.f32 %v1601, %v1602
    %v1604 = vrot.slane %v1603, 1
    %v1605 = vmax.f32 %v1603, %v1604
    %v1606 = vsel %vm926, %v1575, -inf
    %v1607 = vrot.slane %v1606, 4
    %v1608 = vmax.f32 %v1606, %v1607
    %v1609 = vrot.slane %v1608, 2
    %v1610 = vmax.f32 %v1608, %v1609
    %v1611 = vrot.slane %v1610, 1
    %v1612 = vmax.f32 %v1610, %v1611
    %v1613 = vsel %vm926, %v35, -inf
    %v1614 = vrot.slane %v1613, 4
    %v1615 = vmax.f32 %v1613, %v1614
    %v1616 = vrot.slane %v1615, 2
    %v1617 = vmax.f32 %v1615, %v1616
    %v1618 = vrot.slane %v1617, 1
    %v1619 = vmax.f32 %v1617, %v1618
    %v1620 = vsel %vm926, %v1576, -inf
    %v1621 = vrot.slane %v1620, 4
    %v1622 = vmax.f32 %v1620, %v1621
    %v1623 = vrot.slane %v1622, 2
    %v1624 = vmax.f32 %v1622, %v1623
    %v1625 = vrot.slane %v1624, 1
    %v1626 = vmax.f32 %v1624, %v1625
    %v1627 = vsel %vm926, %v36, -inf
    %v1628 = vrot.slane %v1627, 4
    %v1629 = vmax.f32 %v1627, %v1628
    %v1630 = vrot.slane %v1629, 2
    %v1631 = vmax.f32 %v1629, %v1630
    %v1632 = vrot.slane %v1631, 1
    %v1633 = vmax.f32 %v1631, %v1632
    %v1634 = vsel %vm926, %v1577, -inf
    %v1635 = vrot.slane %v1634, 4
    %v1636 = vmax.f32 %v1634, %v1635
    %v1637 = vrot.slane %v1636, 2
    %v1638 = vmax.f32 %v1636, %v1637
    %v1639 = vrot.slane %v1638, 1
    %v1640 = vmax.f32 %v1638, %v1639
    %v1641 = vsel %vm926, %v37, -inf
    %v1642 = vrot.slane %v1641, 4
    %v1643 = vmax.f32 %v1641, %v1642
    %v1644 = vrot.slane %v1643, 2
    %v1645 = vmax.f32 %v1643, %v1644
    %v1646 = vrot.slane %v1645, 1
    %v1647 = vmax.f32 %v1645, %v1646
    %v1648 = vsel %vm926, %v1578, -inf
    %v1649 = vrot.slane %v1648, 4
    %v1650 = vmax.f32 %v1648, %v1649
    %v1651 = vrot.slane %v1650, 2
    %v1652 = vmax.f32 %v1650, %v1651
    %v1653 = vrot.slane %v1652, 1
    %v1654 = vmax.f32 %v1652, %v1653
    %v1655 = vsel %vm926, %v38, -inf
    %v1656 = vrot.slane %v1655, 4
    %v1657 = vmax.f32 %v1655, %v1656
    %v1658 = vrot.slane %v1657, 2
    %v1659 = vmax.f32 %v1657, %v1658
    %v1660 = vrot.slane %v1659, 1
    %v1661 = vmax.f32 %v1659, %v1660
    %v1662 = vsel %vm926, %v1579, -inf
    %v1663 = vrot.slane %v1662, 4
    %v1664 = vmax.f32 %v1662, %v1663
    %v1665 = vrot.slane %v1664, 2
    %v1666 = vmax.f32 %v1664, %v1665
    %v1667 = vrot.slane %v1666, 1
    %v1668 = vmax.f32 %v1666, %v1667
    %v1669 = vsel %vm926, %v39, -inf
    %v1670 = vrot.slane %v1669, 4
    %v1671 = vmax.f32 %v1669, %v1670
    %v1672 = vrot.slane %v1671, 2
    %v1673 = vmax.f32 %v1671, %v1672
    %v1674 = vrot.slane %v1673, 1
    %v1675 = vmax.f32 %v1673, %v1674
    %v1676 = vsel %vm926, %v1580, -inf
    %v1677 = vrot.slane %v1676, 4
    %v1678 = vmax.f32 %v1676, %v1677
    %v1679 = vrot.slane %v1678, 2
    %v1680 = vmax.f32 %v1678, %v1679
    %v1681 = vrot.slane %v1680, 1
    %v1682 = vmax.f32 %v1680, %v1681
    %v1683 = vsel %vm926, %v40, -inf
    %v1684 = vrot.slane %v1683, 4
    %v1685 = vmax.f32 %v1683, %v1684
    %v1686 = vrot.slane %v1685, 2
    %v1687 = vmax.f32 %v1685, %v1686
    %v1688 = vrot.slane %v1687, 1
    %v1689 = vmax.f32 %v1687, %v1688
    %v1690 = vsel %vm926, %v1581, -inf
    %v1691 = vrot.slane %v1690, 4
    %v1692 = vmax.f32 %v1690, %v1691
    %v1693 = vrot.slane %v1692, 2
    %v1694 = vmax.f32 %v1692, %v1693
    %v1695 = vrot.slane %v1694, 1
    %v1696 = vmax.f32 %v1694, %v1695
    %v1697 = vsel %vm926, %v41, -inf
    %v1698 = vrot.slane %v1697, 4
    %v1699 = vmax.f32 %v1697, %v1698
    %v1700 = vrot.slane %v1699, 2
    %v1701 = vmax.f32 %v1699, %v1700
    %v1702 = vrot.slane %v1701, 1
    %v1703 = vmax.f32 %v1701, %v1702
    %v1704 = vsel %vm926, %v1582, -inf
    %v1705 = vrot.slane %v1704, 4
    %v1706 = vmax.f32 %v1704, %v1705
    %v1707 = vrot.slane %v1706, 2
    %v1708 = vmax.f32 %v1706, %v1707
    %v1709 = vrot.slane %v1708, 1
    %v1710 = vmax.f32 %v1708, %v1709
    %v1711 = vsel %vm926, %v42, -inf
    %v1712 = vrot.slane %v1711, 4
    %v1713 = vmax.f32 %v1711, %v1712
    %v1714 = vrot.slane %v1713, 2
    %v1715 = vmax.f32 %v1713, %v1714
    %v1716 = vrot.slane %v1715, 1
    %v1717 = vmax.f32 %v1715, %v1716
    %v1718 = vsel %vm926, %v1583, -inf
    %v1719 = vrot.slane %v1718, 4
    %v1720 = vmax.f32 %v1718, %v1719
    %v1721 = vrot.slane %v1720, 2
    %v1722 = vmax.f32 %v1720, %v1721
    %v1723 = vrot.slane %v1722, 1
    %v1724 = vmax.f32 %v1722, %v1723
    %v1725 = vsel %vm926, %v43, -inf
    %v1726 = vrot.slane %v1725, 4
    %v1727 = vmax.f32 %v1725, %v1726
    %v1728 = vrot.slane %v1727, 2
    %v1729 = vmax.f32 %v1727, %v1728
    %v1730 = vrot.slane %v1729, 1
    %v1731 = vmax.f32 %v1729, %v1730
    %v1732 = vsel %vm926, %v1584, -inf
    %v1733 = vrot.slane %v1732, 4
    %v1734 = vmax.f32 %v1732, %v1733
    %v1735 = vrot.slane %v1734, 2
    %v1736 = vmax.f32 %v1734, %v1735
    %v1737 = vrot.slane %v1736, 1
    %v1738 = vmax.f32 %v1736, %v1737
    %v1739 = vsel %vm926, %v44, -inf
    %v1740 = vrot.slane %v1739, 4
    %v1741 = vmax.f32 %v1739, %v1740
    %v1742 = vrot.slane %v1741, 2
    %v1743 = vmax.f32 %v1741, %v1742
    %v1744 = vrot.slane %v1743, 1
    %v1745 = vmax.f32 %v1743, %v1744
    %v1746 = vsel %vm926, %v1585, -inf
    %v1747 = vrot.slane %v1746, 4
    %v1748 = vmax.f32 %v1746, %v1747
    %v1749 = vrot.slane %v1748, 2
    %v1750 = vmax.f32 %v1748, %v1749
    %v1751 = vrot.slane %v1750, 1
    %v1752 = vmax.f32 %v1750, %v1751
    %v1753 = vsel %vm926, %v45, -inf
    %v1754 = vrot.slane %v1753, 4
    %v1755 = vmax.f32 %v1753, %v1754
    %v1756 = vrot.slane %v1755, 2
    %v1757 = vmax.f32 %v1755, %v1756
    %v1758 = vrot.slane %v1757, 1
    %v1759 = vmax.f32 %v1757, %v1758
    %v1760 = vsel %vm926, %v1586, -inf
    %v1761 = vrot.slane %v1760, 4
    %v1762 = vmax.f32 %v1760, %v1761
    %v1763 = vrot.slane %v1762, 2
    %v1764 = vmax.f32 %v1762, %v1763
    %v1765 = vrot.slane %v1764, 1
    %v1766 = vmax.f32 %v1764, %v1765
    %v1791 = vcombine.low %v1605, %v1612
    %v1792 = vcombine.low %v1619, %v1626
    %v1793 = vcombine.low %v1633, %v1640
    %v1794 = vcombine.low %v1647, %v1654
    %v1795 = vcombine.low %v1661, %v1668
    %v1796 = vcombine.low %v1675, %v1682
    %v1797 = vcombine.low %v1689, %v1696
    %v1798 = vcombine.low %v1703, %v1710
    %v1799 = vcombine.low %v1717, %v1724
    %v1800 = vcombine.low %v1731, %v1738
    %v1801 = vcombine.low %v1745, %v1752
    %v1802 = vcombine.low %v1759, %v1766
    %v1815 = vsub.f32 %v34, %v1791
    %v1816 = vsub.f32 %v35, %v1792
    %v1817 = vsub.f32 %v36, %v1793
    %v1818 = vsub.f32 %v37, %v1794
    %v1819 = vsub.f32 %v38, %v1795
    %v1820 = vsub.f32 %v39, %v1796
    %v1821 = vsub.f32 %v40, %v1797
    %v1822 = vsub.f32 %v41, %v1798
    %v1823 = vsub.f32 %v42, %v1799
    %v1824 = vsub.f32 %v43, %v1800
    %v1825 = vsub.f32 %v44, %v1801
    %v1826 = vsub.f32 %v45, %v1802
    %v1827 = vmul.f32 %v1815, 1.442695
    %v1828 = vpow.pop %v1827
    %v1829 = vmul.f32 %v1816, 1.442695
    %v1830 = vpow.pop %v1829
    %v1831 = vmul.f32 %v1817, 1.442695
    %v1832 = vpow.pop %v1831
    %v1833 = vmul.f32 %v1818, 1.442695
    %v1834 = vpow.pop %v1833
    %v1835 = vmul.f32 %v1819, 1.442695
    %v1836 = vpow.pop %v1835
    %v1837 = vmul.f32 %v1820, 1.442695
    %v1838 = vpow.pop %v1837
    %v1839 = vmul.f32 %v1821, 1.442695
    %v1840 = vpow.pop %v1839
    %v1841 = vmul.f32 %v1822, 1.442695
    %v1842 = vpow.pop %v1841
    %v1843 = vmul.f32 %v1823, 1.442695
    %v1844 = vpow.pop %v1843
    %v1845 = vmul.f32 %v1824, 1.442695
    %v1846 = vpow.pop %v1845
    %v1847 = vmul.f32 %v1825, 1.442695
    %v1848 = vpow.pop %v1847
    %v1849 = vmul.f32 %v1826, 1.442695
    %v1850 = vpow.pop %v1849
    %v1863 = vcombine.high %v1828, %v1828
    %v1864 = vcombine.high %v1830, %v1830
    %v1865 = vcombine.high %v1832, %v1832
    %v1866 = vcombine.high %v1834, %v1834
    %v1867 = vcombine.high %v1836, %v1836
    %v1868 = vcombine.high %v1838, %v1838
    %v1869 = vcombine.high %v1840, %v1840
    %v1870 = vcombine.high %v1842, %v1842
    %v1871 = vcombine.high %v1844, %v1844
    %v1872 = vcombine.high %v1846, %v1846
    %v1873 = vcombine.high %v1848, %v1848
    %v1874 = vcombine.high %v1850, %v1850
    %v1887 = vsel %vm926, %v1828, 0.0
    %v1888 = vrot.slane %v1887, 4
    %v1889 = vadd.f32 %v1887, %v1888
    %v1890 = vrot.slane %v1889, 2
    %v1891 = vadd.f32 %v1889, %v1890
    %v1892 = vrot.slane %v1891, 1
    %v1893 = vadd.f32 %v1891, %v1892
    %v1894 = vsel %vm926, %v1863, 0.0
    %v1895 = vrot.slane %v1894, 4
    %v1896 = vadd.f32 %v1894, %v1895
    %v1897 = vrot.slane %v1896, 2
    %v1898 = vadd.f32 %v1896, %v1897
    %v1899 = vrot.slane %v1898, 1
    %v1900 = vadd.f32 %v1898, %v1899
    %v1901 = vsel %vm926, %v1830, 0.0
    %v1902 = vrot.slane %v1901, 4
    %v1903 = vadd.f32 %v1901, %v1902
    %v1904 = vrot.slane %v1903, 2
    %v1905 = vadd.f32 %v1903, %v1904
    %v1906 = vrot.slane %v1905, 1
    %v1907 = vadd.f32 %v1905, %v1906
    %v1908 = vsel %vm926, %v1864, 0.0
    %v1909 = vrot.slane %v1908, 4
    %v1910 = vadd.f32 %v1908, %v1909
    %v1911 = vrot.slane %v1910, 2
    %v1912 = vadd.f32 %v1910, %v1911
    %v1913 = vrot.slane %v1912, 1
    %v1914 = vadd.f32 %v1912, %v1913
    %v1915 = vsel %vm926, %v1832, 0.0
    %v1916 = vrot.slane %v1915, 4
    %v1917 = vadd.f32 %v1915, %v1916
    %v1918 = vrot.slane %v1917, 2
    %v1919 = vadd.f32 %v1917, %v1918
    %v1920 = vrot.slane %v1919, 1
    %v1921 = vadd.f32 %v1919, %v1920
    %v1922 = vsel %vm926, %v1865, 0.0
    %v1923 = vrot.slane %v1922, 4
    %v1924 = vadd.f32 %v1922, %v1923
    %v1925 = vrot.slane %v1924, 2
    %v1926 = vadd.f32 %v1924, %v1925
    %v1927 = vrot.slane %v1926, 1
    %v1928 = vadd.f32 %v1926, %v1927
    %v1929 = vsel %vm926, %v1834, 0.0
    %v1930 = vrot.slane %v1929, 4
    %v1931 = vadd.f32 %v1929, %v1930
    %v1932 = vrot.slane %v1931, 2
    %v1933 = vadd.f32 %v1931, %v1932
    %v1934 = vrot.slane %v1933, 1
    %v1935 = vadd.f32 %v1933, %v1934
    %v1936 = vsel %vm926, %v1866, 0.0
    %v1937 = vrot.slane %v1936, 4
    %v1938 = vadd.f32 %v1936, %v1937
    %v1939 = vrot.slane %v1938, 2
    %v1940 = vadd.f32 %v1938, %v1939
    %v1941 = vrot.slane %v1940, 1
    %v1942 = vadd.f32 %v1940, %v1941
    %v1943 = vsel %vm926, %v1836, 0.0
    %v1944 = vrot.slane %v1943, 4
    %v1945 = vadd.f32 %v1943, %v1944
    %v1946 = vrot.slane %v1945, 2
    %v1947 = vadd.f32 %v1945, %v1946
    %v1948 = vrot.slane %v1947, 1
    %v1949 = vadd.f32 %v1947, %v1948
    %v1950 = vsel %vm926, %v1867, 0.0
    %v1951 = vrot.slane %v1950, 4
    %v1952 = vadd.f32 %v1950, %v1951
    %v1953 = vrot.slane %v1952, 2
    %v1954 = vadd.f32 %v1952, %v1953
    %v1955 = vrot.slane %v1954, 1
    %v1956 = vadd.f32 %v1954, %v1955
    %v1957 = vsel %vm926, %v1838, 0.0
    %v1958 = vrot.slane %v1957, 4
    %v1959 = vadd.f32 %v1957, %v1958
    %v1960 = vrot.slane %v1959, 2
    %v1961 = vadd.f32 %v1959, %v1960
    %v1962 = vrot.slane %v1961, 1
    %v1963 = vadd.f32 %v1961, %v1962
    %v1964 = vsel %vm926, %v1868, 0.0
    %v1965 = vrot.slane %v1964, 4
    %v1966 = vadd.f32 %v1964, %v1965
    %v1967 = vrot.slane %v1966, 2
    %v1968 = vadd.f32 %v1966, %v1967
    %v1969 = vrot.slane %v1968, 1
    %v1970 = vadd.f32 %v1968, %v1969
    %v1971 = vsel %vm926, %v1840, 0.0
    %v1972 = vrot.slane %v1971, 4
    %v1973 = vadd.f32 %v1971, %v1972
    %v1974 = vrot.slane %v1973, 2
    %v1975 = vadd.f32 %v1973, %v1974
    %v1976 = vrot.slane %v1975, 1
    %v1977 = vadd.f32 %v1975, %v1976
    %v1978 = vsel %vm926, %v1869, 0.0
    %v1979 = vrot.slane %v1978, 4
    %v1980 = vadd.f32 %v1978, %v1979
    %v1981 = vrot.slane %v1980, 2
    %v1982 = vadd.f32 %v1980, %v1981
    %v1983 = vrot.slane %v1982, 1
    %v1984 = vadd.f32 %v1982, %v1983
    %v1985 = vsel %vm926, %v1842, 0.0
    %v1986 = vrot.slane %v1985, 4
    %v1987 = vadd.f32 %v1985, %v1986
    %v1988 = vrot.slane %v1987, 2
    %v1989 = vadd.f32 %v1987, %v1988
    %v1990 = vrot.slane %v1989, 1
    %v1991 = vadd.f32 %v1989, %v1990
    %v1992 = vsel %vm926, %v1870, 0.0
    %v1993 = vrot.slane %v1992, 4
    %v1994 = vadd.f32 %v1992, %v1993
    %v1995 = vrot.slane %v1994, 2
    %v1996 = vadd.f32 %v1994, %v1995
    %v1997 = vrot.slane %v1996, 1
    %v1998 = vadd.f32 %v1996, %v1997
    %v1999 = vsel %vm926, %v1844, 0.0
    %v2000 = vrot.slane %v1999, 4
    %v2001 = vadd.f32 %v1999, %v2000
    %v2002 = vrot.slane %v2001, 2
    %v2003 = vadd.f32 %v2001, %v2002
    %v2004 = vrot.slane %v2003, 1
    %v2005 = vadd.f32 %v2003, %v2004
    %v2006 = vsel %vm926, %v1871, 0.0
    %v2007 = vrot.slane %v2006, 4
    %v2008 = vadd.f32 %v2006, %v2007
    %v2009 = vrot.slane %v2008, 2
    %v2010 = vadd.f32 %v2008, %v2009
    %v2011 = vrot.slane %v2010, 1
    %v2012 = vadd.f32 %v2010, %v2011
    %v2013 = vsel %vm926, %v1846, 0.0
    %v2014 = vrot.slane %v2013, 4
    %v2015 = vadd.f32 %v2013, %v2014
    %v2016 = vrot.slane %v2015, 2
    %v2017 = vadd.f32 %v2015, %v2016
    %v2018 = vrot.slane %v2017, 1
    %v2019 = vadd.f32 %v2017, %v2018
    %v2020 = vsel %vm926, %v1872, 0.0
    %v2021 = vrot.slane %v2020, 4
    %v2022 = vadd.f32 %v2020, %v2021
    %v2023 = vrot.slane %v2022, 2
    %v2024 = vadd.f32 %v2022, %v2023
    %v2025 = vrot.slane %v2024, 1
    %v2026 = vadd.f32 %v2024, %v2025
    %v2027 = vsel %vm926, %v1848, 0.0
    %v2028 = vrot.slane %v2027, 4
    %v2029 = vadd.f32 %v2027, %v2028
    %v2030 = vrot.slane %v2029, 2
    %v2031 = vadd.f32 %v2029, %v2030
    %v2032 = vrot.slane %v2031, 1
    %v2033 = vadd.f32 %v2031, %v2032
    %v2034 = vsel %vm926, %v1873, 0.0
    %v2035 = vrot.slane %v2034, 4
    %v2036 = vadd.f32 %v2034, %v2035
    %v2037 = vrot.slane %v2036, 2
    %v2038 = vadd.f32 %v2036, %v2037
    %v2039 = vrot.slane %v2038, 1
    %v2040 = vadd.f32 %v2038, %v2039
    %v2041 = vsel %vm926, %v1850, 0.0
    %v2042 = vrot.slane %v2041, 4
    %v2043 = vadd.f32 %v2041, %v2042
    %v2044 = vrot.slane %v2043, 2
    %v2045 = vadd.f32 %v2043, %v2044
    %v2046 = vrot.slane %v2045, 1
    %v2047 = vadd.f32 %v2045, %v2046
    %v2048 = vsel %vm926, %v1874, 0.0
    %v2049 = vrot.slane %v2048, 4
    %v2050 = vadd.f32 %v2048, %v2049
    %v2051 = vrot.slane %v2050, 2
    %v2052 = vadd.f32 %v2050, %v2051
    %v2053 = vrot.slane %v2052, 1
    %v2054 = vadd.f32 %v2052, %v2053
    %v2055 = vlog2.pop %v1893
    %v2056 = vmul.f32 %v2055, 0.6931472
    %v2057 = vlog2.pop %v1900
    %v2058 = vmul.f32 %v2057, 0.6931472
    %v2059 = vlog2.pop %v1907
    %v2060 = vmul.f32 %v2059, 0.6931472
    %v2061 = vlog2.pop %v1914
    %v2062 = vmul.f32 %v2061, 0.6931472
    %v2063 = vlog2.pop %v1921
    %v2064 = vmul.f32 %v2063, 0.6931472
    %v2065 = vlog2.pop %v1928
    %v2066 = vmul.f32 %v2065, 0.6931472
    %v2067 = vlog2.pop %v1935
    %v2068 = vmul.f32 %v2067, 0.6931472
    %v2069 = vlog2.pop %v1942
    %v2070 = vmul.f32 %v2069, 0.6931472
    %v2071 = vlog2.pop %v1949
    %v2072 = vmul.f32 %v2071, 0.6931472
    %v2073 = vlog2.pop %v1956
    %v2074 = vmul.f32 %v2073, 0.6931472
    %v2075 = vlog2.pop %v1963
    %v2076 = vmul.f32 %v2075, 0.6931472
    %v2077 = vlog2.pop %v1970
    %v2078 = vmul.f32 %v2077, 0.6931472
    %v2079 = vlog2.pop %v1977
    %v2080 = vmul.f32 %v2079, 0.6931472
    %v2081 = vlog2.pop %v1984
    %v2082 = vmul.f32 %v2081, 0.6931472
    %v2083 = vlog2.pop %v1991
    %v2084 = vmul.f32 %v2083, 0.6931472
    %v2085 = vlog2.pop %v1998
    %v2086 = vmul.f32 %v2085, 0.6931472
    %v2087 = vlog2.pop %v2005
    %v2088 = vmul.f32 %v2087, 0.6931472
    %v2089 = vlog2.pop %v2012
    %v2090 = vmul.f32 %v2089, 0.6931472
    %v2091 = vlog2.pop %v2019
    %v2092 = vmul.f32 %v2091, 0.6931472
    %v2093 = vlog2.pop %v2026
    %v2094 = vmul.f32 %v2093, 0.6931472
    %v2095 = vlog2.pop %v2033
    %v2096 = vmul.f32 %v2095, 0.6931472
    %v2097 = vlog2.pop %v2040
    %v2098 = vmul.f32 %v2097, 0.6931472
    %v2099 = vlog2.pop %v2047
    %v2100 = vmul.f32 %v2099, 0.6931472
    %v2101 = vlog2.pop %v2054
    %v2102 = vmul.f32 %v2101, 0.6931472
    %v2127 = vcombine.low %v2056, %v2058
    %v2128 = vcombine.low %v2060, %v2062
    %v2129 = vcombine.low %v2064, %v2066
    %v2130 = vcombine.low %v2068, %v2070
    %v2131 = vcombine.low %v2072, %v2074
    %v2132 = vcombine.low %v2076, %v2078
    %v2133 = vcombine.low %v2080, %v2082
    %v2134 = vcombine.low %v2084, %v2086
    %v2135 = vcombine.low %v2088, %v2090
    %v2136 = vcombine.low %v2092, %v2094
    %v2137 = vcombine.low %v2096, %v2098
    %v2138 = vcombine.low %v2100, %v2102
    %v2151 = vsub.f32 %v1815, %v2127
    %v2152 = vsub.f32 %v1816, %v2128
    %v2153 = vsub.f32 %v1817, %v2129
    %v2154 = vsub.f32 %v1818, %v2130
    %v2155 = vsub.f32 %v1819, %v2131
    %v2156 = vsub.f32 %v1820, %v2132
    %v2157 = vsub.f32 %v1821, %v2133
    %v2158 = vsub.f32 %v1822, %v2134
    %v2159 = vsub.f32 %v1823, %v2135
    %v2160 = vsub.f32 %v1824, %v2136
    %v2161 = vsub.f32 %v1825, %v2137
    %v2162 = vsub.f32 %v1826, %v2138
    %v2187 = vcombine.low %v1893, %v1900
    %v2188 = vcombine.low %v1907, %v1914
    %v2189 = vcombine.low %v1921, %v1928
    %v2190 = vcombine.low %v1935, %v1942
    %v2191 = vcombine.low %v1949, %v1956
    %v2192 = vcombine.low %v1963, %v1970
    %v2193 = vcombine.low %v1977, %v1984
    %v2194 = vcombine.low %v1991, %v1998
    %v2195 = vcombine.low %v2005, %v2012
    %v2196 = vcombine.low %v2019, %v2026
    %v2197 = vcombine.low %v2033, %v2040
    %v2198 = vcombine.low %v2047, %v2054
    %v2211 = vrcp.pop %v2187
    %v2212 = vmul.f32 %v1828, %v2211
    %v2213 = vrcp.pop %v2188
    %v2214 = vmul.f32 %v1830, %v2213
    %v2215 = vrcp.pop %v2189
    %v2216 = vmul.f32 %v1832, %v2215
    %v2217 = vrcp.pop %v2190
    %v2218 = vmul.f32 %v1834, %v2217
    %v2219 = vrcp.pop %v2191
    %v2220 = vmul.f32 %v1836, %v2219
    %v2221 = vrcp.pop %v2192
    %v2222 = vmul.f32 %v1838, %v2221
    %v2223 = vrcp.pop %v2193
    %v2224 = vmul.f32 %v1840, %v2223
    %v2225 = vrcp.pop %v2194
    %v2226 = vmul.f32 %v1842, %v2225
    %v2227 = vrcp.pop %v2195
    %v2228 = vmul.f32 %v1844, %v2227
    %v2229 = vrcp.pop %v2196
    %v2230 = vmul.f32 %v1846, %v2229
    %v2231 = vrcp.pop %v2197
    %v2232 = vmul.f32 %v1848, %v2231
    %v2233 = vrcp.pop %v2198
    %v2234 = vmul.f32 %v1850, %v2233
    %v2235 = vadd.f32 %v1540, %v2212
    %v2236 = vadd.f32 %v1542, %v2214
    %v2237 = vadd.f32 %v1544, %v2216
    %v2238 = vadd.f32 %v1546, %v2218
    %v2239 = vadd.f32 %v1548, %v2220
    %v2240 = vadd.f32 %v1550, %v2222
    %v2241 = vadd.f32 %v1552, %v2224
    %v2242 = vadd.f32 %v1554, %v2226
    %v2243 = vadd.f32 %v1556, %v2228
    %v2244 = vadd.f32 %v1558, %v2230
    %v2245 = vadd.f32 %v1560, %v2232
    %v2246 = vadd.f32 %v1562, %v2234
    %v2247 = vmul.f32 %v2235, 0.5
    %v2248 = vmul.f32 %v2236, 0.5
    %v2249 = vmul.f32 %v2237, 0.5
    %v2250 = vmul.f32 %v2238, 0.5
    %v2251 = vmul.f32 %v2239, 0.5
    %v2252 = vmul.f32 %v2240, 0.5
    %v2253 = vmul.f32 %v2241, 0.5
    %v2254 = vmul.f32 %v2242, 0.5
    %v2255 = vmul.f32 %v2243, 0.5
    %v2256 = vmul.f32 %v2244, 0.5
    %v2257 = vmul.f32 %v2245, 0.5
    %v2258 = vmul.f32 %v2246, 0.5
    %v2259 = vlog2.pop %v2247
    %v2260 = vmul.f32 %v2259, 0.6931472
    %v2261 = vlog2.pop %v2248
    %v2262 = vmul.f32 %v2261, 0.6931472
    %v2263 = vlog2.pop %v2249
    %v2264 = vmul.f32 %v2263, 0.6931472
    %v2265 = vlog2.pop %v2250
    %v2266 = vmul.f32 %v2265, 0.6931472
    %v2267 = vlog2.pop %v2251
    %v2268 = vmul.f32 %v2267, 0.6931472
    %v2269 = vlog2.pop %v2252
    %v2270 = vmul.f32 %v2269, 0.6931472
    %v2271 = vlog2.pop %v2253
    %v2272 = vmul.f32 %v2271, 0.6931472
    %v2273 = vlog2.pop %v2254
    %v2274 = vmul.f32 %v2273, 0.6931472
    %v2275 = vlog2.pop %v2255
    %v2276 = vmul.f32 %v2275, 0.6931472
    %v2277 = vlog2.pop %v2256
    %v2278 = vmul.f32 %v2277, 0.6931472
    %v2279 = vlog2.pop %v2257
    %v2280 = vmul.f32 %v2279, 0.6931472
    %v2281 = vlog2.pop %v2258
    %v2282 = vmul.f32 %v2281, 0.6931472
    %v2283 = vmul.f32 %v2260, 2.0
    %v2284 = vmul.f32 %v2262, 2.0
    %v2285 = vmul.f32 %v2264, 2.0
    %v2286 = vmul.f32 %v2266, 2.0
    %v2287 = vmul.f32 %v2268, 2.0
    %v2288 = vmul.f32 %v2270, 2.0
    %v2289 = vmul.f32 %v2272, 2.0
    %v2290 = vmul.f32 %v2274, 2.0
    %v2291 = vmul.f32 %v2276, 2.0
    %v2292 = vmul.f32 %v2278, 2.0
    %v2293 = vmul.f32 %v2280, 2.0
    %v2294 = vmul.f32 %v2282, 2.0
    %v2295 = vsub.f32 %v2283, %v1479
    %v2296 = vsub.f32 %v2284, %v1480
    %v2297 = vsub.f32 %v2285, %v1481
    %v2298 = vsub.f32 %v2286, %v1482
    %v2299 = vsub.f32 %v2287, %v1483
    %v2300 = vsub.f32 %v2288, %v1484
    %v2301 = vsub.f32 %v2289, %v1485
    %v2302 = vsub.f32 %v2290, %v1486
    %v2303 = vsub.f32 %v2291, %v1487
    %v2304 = vsub.f32 %v2292, %v1488
    %v2305 = vsub.f32 %v2293, %v1489
    %v2306 = vsub.f32 %v2294, %v1490
    %v2307 = vsub.f32 %v2295, %v2151
    %v2308 = vsub.f32 %v2296, %v2152
    %v2309 = vsub.f32 %v2297, %v2153
    %v2310 = vsub.f32 %v2298, %v2154
    %v2311 = vsub.f32 %v2299, %v2155
    %v2312 = vsub.f32 %v2300, %v2156
    %v2313 = vsub.f32 %v2301, %v2157
    %v2314 = vsub.f32 %v2302, %v2158
    %v2315 = vsub.f32 %v2303, %v2159
    %v2316 = vsub.f32 %v2304, %v2160
    %v2317 = vsub.f32 %v2305, %v2161
    %v2318 = vsub.f32 %v2306, %v2162
    %v2319 = vmul.f32 %v2247, %v2307
    %v2320 = vmul.f32 %v2248, %v2308
    %v2321 = vmul.f32 %v2249, %v2309
    %v2322 = vmul.f32 %v2250, %v2310
    %v2323 = vmul.f32 %v2251, %v2311
    %v2324 = vmul.f32 %v2252, %v2312
    %v2325 = vmul.f32 %v2253, %v2313
    %v2326 = vmul.f32 %v2254, %v2314
    %v2327 = vmul.f32 %v2255, %v2315
    %v2328 = vmul.f32 %v2256, %v2316
    %v2329 = vmul.f32 %v2257, %v2317
    %v2330 = vmul.f32 %v2258, %v2318
    %v2343 = vcombine.high %v2319, %v2319
    %v2344 = vcombine.high %v2320, %v2320
    %v2345 = vcombine.high %v2321, %v2321
    %v2346 = vcombine.high %v2322, %v2322
    %v2347 = vcombine.high %v2323, %v2323
    %v2348 = vcombine.high %v2324, %v2324
    %v2349 = vcombine.high %v2325, %v2325
    %v2350 = vcombine.high %v2326, %v2326
    %v2351 = vcombine.high %v2327, %v2327
    %v2352 = vcombine.high %v2328, %v2328
    %v2353 = vcombine.high %v2329, %v2329
    %v2354 = vcombine.high %v2330, %v2330
    %v2367 = vsel %vm926, %v2319, 0.0
    %v2368 = vsel %vm926, %v2343, 0.0
    %v2369 = vadd.f32 %v2367, %v2368
    %v2370 = vsel %vm926, %v2320, 0.0
    %v2371 = vadd.f32 %v2369, %v2370
    %v2372 = vsel %vm926, %v2344, 0.0
    %v2373 = vadd.f32 %v2371, %v2372
    %v2374 = vsel %vm926, %v2321, 0.0
    %v2375 = vadd.f32 %v2373, %v2374
    %v2376 = vsel %vm926, %v2345, 0.0
    %v2377 = vadd.f32 %v2375, %v2376
    %v2378 = vsel %vm926, %v2322, 0.0
    %v2379 = vadd.f32 %v2377, %v2378
    %v2380 = vsel %vm926, %v2346, 0.0
    %v2381 = vadd.f32 %v2379, %v2380
    %v2382 = vsel %vm926, %v2323, 0.0
    %v2383 = vadd.f32 %v2381, %v2382
    %v2384 = vsel %vm926, %v2347, 0.0
    %v2385 = vadd.f32 %v2383, %v2384
    %v2386 = vsel %vm926, %v2324, 0.0
    %v2387 = vadd.f32 %v2385, %v2386
    %v2388 = vsel %vm926, %v2348, 0.0
    %v2389 = vadd.f32 %v2387, %v2388
    %v2390 = vsel %vm926, %v2325, 0.0
    %v2391 = vadd.f32 %v2389, %v2390
    %v2392 = vsel %vm926, %v2349, 0.0
    %v2393 = vadd.f32 %v2391, %v2392
    %v2394 = vsel %vm926, %v2326, 0.0
    %v2395 = vadd.f32 %v2393, %v2394
    %v2396 = vsel %vm926, %v2350, 0.0
    %v2397 = vadd.f32 %v2395, %v2396
    %v2398 = vsel %vm926, %v2327, 0.0
    %v2399 = vadd.f32 %v2397, %v2398
    %v2400 = vsel %vm926, %v2351, 0.0
    %v2401 = vadd.f32 %v2399, %v2400
    %v2402 = vsel %vm926, %v2328, 0.0
    %v2403 = vadd.f32 %v2401, %v2402
    %v2404 = vsel %vm926, %v2352, 0.0
    %v2405 = vadd.f32 %v2403, %v2404
    %v2406 = vsel %vm926, %v2329, 0.0
    %v2407 = vadd.f32 %v2405, %v2406
    %v2408 = vsel %vm926, %v2353, 0.0
    %v2409 = vadd.f32 %v2407, %v2408
    %v2410 = vsel %vm926, %v2330, 0.0
    %v2411 = vadd.f32 %v2409, %v2410
    %v2412 = vsel %vm926, %v2354, 0.0
    %v2413 = vadd.f32 %v2411, %v2412
    %2414 = vadd.xlane.f32.xlu0 %v2413
    %v2415 = vpop.xlane.xlu0 %2414
    %v2416 = vld [vmem:[#allocation3] sm:$0x1]
    %v2417 = vsel %vm926, %v2415, 0.0
    %v2418 = vrot.slane %v2417, 4
    %v2419 = vadd.f32 %v2417, %v2418
    %v2420 = vrot.slane %v2419, 2
    %v2421 = vadd.f32 %v2419, %v2420
    %v2422 = vrot.slane %v2421, 1
    %v2423 = vadd.f32 %v2421, %v2422
    %v2424 = vadd.f32 %v2416, %v2423
    %vm2425 = vcmask 0
    %2426 = vst.msk [vmem:[#allocation3] sm:$0x1] %vm2425, %v2424
    // Predicated region
    $region14: #{dwloss_forward.4} parent=1 // pred_check
      %p2427 = pneg %p14
    $region15: #{dwloss_forward.4} parent=1 // pred_check_branch
      %2429 = sbr.rel (%p2427) target = $region17
    $region16: #{dwloss_forward.4} parent=1 // pred_region
      %v2430 = vld [vmem:[#allocation2] sm:$0xf]
      %v2431 = vlaneseq
      %v2432 = vshrl.u32 %v2431, 7
      %v2433 = vlaneseq
      %v2434 = vand.u32 %v2433, 127
      %vm2435 = vcmp.eq.s32.totalorder %v2432, %v2434
      %v2436 = vsel %vm2435, %v2430, 0.0
      %v2437 = vsel %vm924, %v2436, 0.0
      %2438 = vadd.xlane.f32.xlu0 %v2437
      %v2439 = vpop.xlane.xlu0 %2438
      %v2440 = vrot.slane %v2437, 4
      %v2441 = vadd.f32 %v2437, %v2440
      %v2442 = vrot.slane %v2441, 2
      %v2443 = vadd.f32 %v2441, %v2442
      %v2444 = vrot.slane %v2443, 1
      %v2445 = vadd.f32 %v2443, %v2444
      %v2446 = vadd.f32 %v2439, %v2445
      %v2447 = vmul.f32 %v2430, 2.0
      %v2448 = vsub.f32 %v2446, %v2447
      %v2449 = vmax.f32 %v2448, 0.0
      %v2450 = vrsqrt.pop %v2449
      %v2451 = vmul.f32 %v2449, %v2450
      %vm2452 = vcmp.eq.f32.partialorder %v2449, inf
      %v2453 = vsel %vm2452, %v2449, %v2451
      %vm2454 = vcmp.eq.f32.partialorder %v2449, 0.0
      %v2455 = vand.u32 %v2449, 2147483648
      %v2456 = vsel %vm2454, %v2455, %v2453
      %v2457 = vsel %vm2435, 0.0, %v2456
      %2458 = vst.msk [vmem:[%s2] sm:$0xf] %vm924, %v2457
      %v2459 = vld [vmem:[#allocation3] sm:$0x1]
      %v2460 = vmul.f32 %v2459, 0.5
      %v2461 = vmul.f32 %v2460, 0.25
      %2462 = vst.msk [vmem:[#allocation4] sm:$0x1] %vm2425, %v2461
    $region17: #{dwloss_forward.4} parent=1 // pred_fallthru
      _
    // Predicated region
    $region18: #{dwloss_forward.4} parent=1 // pred_check
      _
    $region19: #{dwloss_forward.4} parent=1 // pred_check_branch
      %2464 = sbr.rel (0) target = $region21
    $region20: #{dwloss_forward.4} parent=1 // pred_region
      _
    $region21: #{dwloss_forward.4} parent=1 // pred_fallthru
      _
    // Predicated region
    $region22: #{dwloss_forward.4} parent=1 // pred_check
      _
    $region23: #{dwloss_forward.4} parent=1 // pred_check_branch
      %2466 = sbr.rel (0) target = $region25
    $region24: #{dwloss_forward.4} parent=1 // pred_region
      %s2468 = ssub.s32 16, 16
      %2469 = vsyncadd [#allocation5], %s2468
      %s2471 = sshll.u32 [#allocation4], 4
      %s2472 = int_to_ptr.vmem [resolvable:$true] %s2471
      %2474 = dma.vmem_to_hbm [thread:$0]  %s2472, 16, %s3, [#allocation5]
    $region25: #{dwloss_forward.4} parent=1 // pred_fallthru
      _
    // Predicated region
    $region26: #{dwloss_forward.4} parent=1 // pred_check
      _
    $region27: #{dwloss_forward.4} parent=1 // pred_check_branch
      %2476 = sbr.rel (0) target = $region29
    $region28: #{dwloss_forward.4} parent=1 // pred_region
      _
    $region29: #{dwloss_forward.4} parent=1 // pred_fallthru
      _
    // Predicated region
    $region30: #{dwloss_forward.4} parent=1 // pred_check
      _
    $region31: #{dwloss_forward.4} parent=1 // pred_check_branch
      %2478 = sbr.rel (0) target = $region33
    $region32: #{dwloss_forward.4} parent=1 // pred_region
      %2479 = dma.done [#allocation5], 16
    $region33: #{dwloss_forward.4} parent=1 // pred_fallthru
      _
    %2480 = vsyncpa [#allocation5], 1

</llo_original>
